<compile_context>
chip_gen: v6e
topology: v6e:2x2x1
jax: 0.10.0
libtpu: 0.0.40
codegen_flags: <defaults>
</compile_context>

<pallas_src>
import functools

import jax
import jax.numpy as jnp
from jax.experimental import pallas as pl
from jax.experimental.pallas import tpu as pltpu


_VMEM_LIMIT = 32 * 1024 * 1024   # safe on v5e/v6e/v7x; far above actual usage


def _round_up(x, m):
    return ((x + m - 1) // m) * m


def _pick_tile(rows, target_steps=4, cap=512):
    """Row tile: multiple of 8, ~rows/target_steps, capped for VMEM."""
    t = max(1, -(-rows // target_steps))
    return int(max(8, min(cap, _round_up(t, 8))))


# ----------------------------- Pallas kernels ------------------------------ #

def _conv_kernel(p_ref, w_ref, b_ref, o_ref, *, relu):
    """One merged-K matmul per row tile: (tm, k*k*Cin) @ (k*k*Cin, Cout)."""
    y = jnp.dot(p_ref[...], w_ref[...],
                preferred_element_type=jnp.float32) + b_ref[...]
    if relu:
        y = jnp.maximum(y, 0.0)
    o_ref[...] = y


def _conv_head_kernel(p_ref, w_ref, b_ref, hw_ref, hb_ref, o_ref):
    """Conv (+ReLU) fused with the 1x1 RPN head (objectness | box deltas).

    The conv activation stays in VMEM/registers; only the (padded-to-16-wide)
    head output is written to HBM."""
    t = jnp.maximum(
        jnp.dot(p_ref[...], w_ref[...],
                preferred_element_type=jnp.float32) + b_ref[...], 0.0)
    o_ref[...] = (jnp.dot(t.astype(jnp.bfloat16), hw_ref[...],
                          preferred_element_type=jnp.float32) + hb_ref[...])


def _box_head_kernel(x_ref, w6_ref, b6_ref, w7_ref, b7_ref, wc_ref, bc_ref,
                     wr_ref, br_ref, feat_ref, logits_ref, reg_ref, scores_ref):
    """Fused TwoMLPHead (fc6+fc7+ReLU) + FastRCNNPredictor (cls/reg) + softmax.

    All intermediates stay on-chip; four outputs are emitted:
      box_features, class_logits, box_regression, softmax scores."""
    h = jnp.dot(x_ref[...], w6_ref[...],
                preferred_element_type=jnp.float32) + b6_ref[...]
    h = jnp.maximum(h, 0.0)
    h = jnp.dot(h.astype(jnp.bfloat16), w7_ref[...],
                preferred_element_type=jnp.float32) + b7_ref[...]
    h = jnp.maximum(h, 0.0)
    feat_ref[...] = h

    hb = h.astype(jnp.bfloat16)
    logits = jnp.dot(hb, wc_ref[...],
                     preferred_element_type=jnp.float32) + bc_ref[...]
    logits_ref[...] = logits
    reg_ref[...] = jnp.dot(hb, wr_ref[...],
                           preferred_element_type=jnp.float32) + br_ref[...]

    m = jnp.max(logits, axis=-1, keepdims=True)
    e = jnp.exp(logits - m)
    denom = jnp.sum(e, axis=-1, keepdims=True)
    scores_ref[...] = e * pl.reciprocal(denom, approx=True)


# ----------------------------- Pallas wrappers ------------------------------ #

def _im2col(x, ksize, stride, pad, pad_value=None):
    """Pre-pack the k*k shifted slabs into a (rows, k*k*Cin) bf16 operand so
    the conv runs as ONE merged-K matmul (K = 27/144/288 instead of 9 tiny
    matmuls).  bf16 halves the HBM->VMEM bytes of the largest per-step input.
    TODO(synk): at real feature-map sizes the k*k duplication should move
    in-kernel (tap packing from stride-parity planes)."""
    N, H, W, C = x.shape
    Ho = (H + 2 * pad - ksize) // stride + 1
    Wo = (W + 2 * pad - ksize) // stride + 1
    Hp, Wp = H + 2 * pad, W + 2 * pad
    xb = x.astype(jnp.bfloat16)
    if pad_value is None:
        xp = jnp.pad(xb, ((0, 0), (pad, pad), (pad, pad), (0, 0)))
    else:
        xp = jnp.broadcast_to(pad_value.astype(jnp.bfloat16), (N, Hp, Wp, C))
        xp = xp.at[:, pad:pad + H, pad:pad + W, :].set(xb)
    slabs = [xp[:, dy:dy + stride * Ho:stride, dx:dx + stride * Wo:stride, :]
             for dy in range(ksize) for dx in range(ksize)]
    patches = jnp.concatenate(slabs, axis=-1)            # (N, Ho, Wo, k*k*C)
    return patches.reshape(N, Ho * Wo, ksize * ksize * C), Ho, Wo


def conv2d_pallas(x, w_merged, b, *, ksize, stride=1, pad=1, relu=True,
                  pad_value=None, head_w=None, head_b=None):
    """Direct NHWC conv as a row-tiled Pallas matmul kernel.  If head_w/head_b
    are given, a 1x1 head is fused after the ReLU and only the head output is
    written (used for the RPN)."""
    N = x.shape[0]
    K, cout = w_merged.shape
    patches, Ho, Wo = _im2col(x, ksize, stride, pad, pad_value)
    rows = Ho * Wo
    tm = _pick_tile(rows)
    rows_p = _round_up(rows, tm)
    if rows_p != rows:
        patches = jnp.pad(patches, ((0, 0), (0, rows_p - rows), (0, 0)))
    bias = b.reshape(1, -1).astype(jnp.float32)

    in_specs = [
        pl.BlockSpec((None, tm, K), lambda i, r: (i, r, 0)),   # row tiles
        pl.BlockSpec((K, cout), lambda i, r: (0, 0)),          # resident weight
        pl.BlockSpec((1, cout), lambda i, r: (0, 0)),
    ]
    args = [patches, w_merged, bias]
    if head_w is None:
        kernel = functools.partial(_conv_kernel, relu=relu)
        out_cols = cout
    else:
        out_cols = head_w.shape[-1]
        kernel = _conv_head_kernel
        in_specs += [pl.BlockSpec((cout, out_cols), lambda i, r: (0, 0)),
                     pl.BlockSpec((1, out_cols), lambda i, r: (0, 0))]
        args += [head_w, head_b.reshape(1, -1).astype(jnp.float32)]

    # TODO(synk): (tm, Cout) output with Cout=16/32 is a narrow (masked) store;
    #             lane-dense (tm/G, G*Cout) repacking needs a minor-dim reshape
    #             with version-dependent Mosaic support.
    out = pl.pallas_call(
        kernel,
        out_shape=jax.ShapeDtypeStruct((N, rows_p, out_cols), jnp.float32),
        grid=(N, rows_p // tm),
        in_specs=in_specs,
        out_specs=pl.BlockSpec((None, tm, out_cols), lambda i, r: (i, r, 0)),
        compiler_params=pltpu.CompilerParams(
            dimension_semantics=("parallel", "parallel"),
            vmem_limit_bytes=_VMEM_LIMIT),
    )(*args)
    return out[:, :rows].reshape(N, Ho, Wo, out_cols)


def box_head_predictor_pallas(x, w6, b6, w7, b7, wc, bc, wr, br):
    """Fused fc6 -> fc7 -> (cls, reg) -> softmax.  Returns
    (box_features, class_logits, box_regression, scores)."""
    R, K = x.shape
    rep = w6.shape[1]
    nc = wc.shape[1]
    tm = _pick_tile(R, target_steps=4, cap=128)   # always >= 4 grid steps
    Rp = _round_up(R, tm)
    xb = x.astype(jnp.bfloat16)
    if Rp != R:
        xb = jnp.pad(xb, ((0, Rp - R), (0, 0)))

    row = lambda i: (i, 0)
    full = lambda a: pl.BlockSpec(a.shape, lambda i: (0, 0))
    # TODO(synk): at real TwoMLPHead size (12544x1024) w6 must be K-tiled
    #             ('arbitrary' reduction axis + f32 VMEM accumulator) or at
    #             least marked pl.Buffered(1) so it isn't double-buffered.
    feat, logits, reg, scores = pl.pallas_call(
        _box_head_kernel,
        out_shape=(
            jax.ShapeDtypeStruct((Rp, rep), jnp.float32),     # box_features
            jax.ShapeDtypeStruct((Rp, nc), jnp.float32),      # class_logits
            jax.ShapeDtypeStruct((Rp, 4 * nc), jnp.float32),  # box_regression
            jax.ShapeDtypeStruct((Rp, nc), jnp.float32),      # scores
        ),
        grid=(Rp // tm,),
        in_specs=[pl.BlockSpec((tm, K), row),
                  full(w6), full(b6), full(w7), full(b7),
                  full(wc), full(bc), full(wr), full(br)],
        out_specs=(pl.BlockSpec((tm, rep), row),
                   pl.BlockSpec((tm, nc), row),
                   pl.BlockSpec((tm, 4 * nc), row),
                   pl.BlockSpec((tm, nc), row)),
        compiler_params=pltpu.CompilerParams(
            dimension_semantics=("parallel",),
            vmem_limit_bytes=_VMEM_LIMIT),
    )(xb, w6, b6, w7, b7, wc, bc, wr, br)
    return feat[:R], logits[:R], reg[:R], scores[:R]


# ------------------------------- JAX glue ---------------------------------- #

def generate_anchors(Hf, Wf, stride, sizes):
    ys = (jnp.arange(Hf, dtype=jnp.float32) + 0.5) * stride
    xs = (jnp.arange(Wf, dtype=jnp.float32) + 0.5) * stride
    cy, cx = jnp.meshgrid(ys, xs, indexing="ij")
    centers = jnp.stack([cx, cy, cx, cy], axis=-1)               # (Hf, Wf, 4)
    half = jnp.asarray(sizes, jnp.float32) / 2.0                 # (A,)
    offsets = jnp.stack([-half, -half, half, half], axis=-1)     # (A, 4)
    anchors = centers[:, :, None, :] + offsets[None, None, :, :]
    return anchors.reshape(-1, 4)                                # (Hf*Wf*A, 4)


def decode_boxes(boxes, deltas):
    w = boxes[..., 2] - boxes[..., 0]
    h = boxes[..., 3] - boxes[..., 1]
    cx = boxes[..., 0] + 0.5 * w
    cy = boxes[..., 1] + 0.5 * h
    dx, dy = deltas[..., 0], deltas[..., 1]
    dw = jnp.clip(deltas[..., 2], -4.0, 4.0)
    dh = jnp.clip(deltas[..., 3], -4.0, 4.0)
    pcx = cx + dx * w
    pcy = cy + dy * h
    pw = w * jnp.exp(dw)
    ph = h * jnp.exp(dh)
    return jnp.stack([pcx - 0.5 * pw, pcy - 0.5 * ph,
                      pcx + 0.5 * pw, pcy + 0.5 * ph], axis=-1)


def clip_boxes(boxes, H, W):
    x1 = jnp.clip(boxes[..., 0], 0.0, float(W))
    y1 = jnp.clip(boxes[..., 1], 0.0, float(H))
    x2 = jnp.clip(boxes[..., 2], 0.0, float(W))
    y2 = jnp.clip(boxes[..., 3], 0.0, float(H))
    return jnp.stack([x1, y1, x2, y2], axis=-1)


def roi_align(feat, boxes, out_size, spatial_scale):
    """Single-sample bilinear RoIAlign via per-ROI one-hot interpolation
    matrices and two small matmuls (gather-free; rides the MXU under XLA).
    TODO(synk): torchvision's sampling_ratio averaging / aligned half-pixel
    offset not replicated; a dedicated Pallas kernel with SMEM-prefetched
    corner indices would remove the remaining XLA batched-matmul glue."""
    H, W, _ = feat.shape
    iy = jnp.arange(H, dtype=jnp.float32)
    ix = jnp.arange(W, dtype=jnp.float32)

    def one(box):
        b = box * spatial_scale
        x1, y1, x2, y2 = b[0], b[1], b[2], b[3]
        grid = jnp.arange(out_size, dtype=jnp.float32) + 0.5
        ys = jnp.clip(y1 + grid * (y2 - y1) / out_size, 0.0, H - 1.0)
        xs = jnp.clip(x1 + grid * (x2 - x1) / out_size, 0.0, W - 1.0)
        y0 = jnp.clip(jnp.floor(ys), 0.0, H - 2.0)
        x0 = jnp.clip(jnp.floor(xs), 0.0, W - 2.0)
        wy = ys - y0
        wx = xs - x0
        My = ((iy[None, :] == y0[:, None]) * (1.0 - wy[:, None])
              + (iy[None, :] == y0[:, None] + 1.0) * wy[:, None])   # (o, H)
        Mx = ((ix[None, :] == x0[:, None]) * (1.0 - wx[:, None])
              + (ix[None, :] == x0[:, None] + 1.0) * wx[:, None])   # (o, W)
        rows = jnp.einsum('oh,hwc->owc', My, feat)
        return jnp.einsum('pw,owc->opc', Mx, rows)                  # (o, o, C)

    return jax.vmap(one)(boxes)   # (R, out, out, C)


# --------------------------------- model ----------------------------------- #

class RCNNPallas:
    def __init__(self, num_classes, key):
        self.num_classes = num_classes
        self.anchor_sizes = (8.0, 16.0, 24.0)
        self.num_anchors = len(self.anchor_sizes)
        self.proposals_per_image = 32     # stands in for RPN post-NMS top-n
        self.roi_size = 7
        self.rep_size = 64                # 1024 in the real TwoMLPHead
        C1, C2 = 16, 32
        self.feat_channels = C2
        keys = jax.random.split(key, 9)

        def init(k, shape, scale=0.05):
            return scale * jax.random.normal(k, shape, jnp.float32)

        nc = num_classes + 1
        self.params = dict(
            conv1_w=init(keys[0], (3, 3, 3, C1)),  conv1_b=jnp.zeros((C1,), jnp.float32),
            conv2_w=init(keys[1], (3, 3, C1, C2)), conv2_b=jnp.zeros((C2,), jnp.float32),
            rpn_conv_w=init(keys[2], (3, 3, C2, C2)), rpn_conv_b=jnp.zeros((C2,), jnp.float32),
            rpn_cls_w=init(keys[3], (C2, self.num_anchors)),
            rpn_cls_b=jnp.zeros((self.num_anchors,), jnp.float32),
            rpn_reg_w=init(keys[4], (C2, 4 * self.num_anchors)),
            rpn_reg_b=jnp.zeros((4 * self.num_anchors,), jnp.float32),
            fc6_w=init(keys[5], (self.roi_size * self.roi_size * C2, self.rep_size)),
            fc6_b=jnp.zeros((self.rep_size,), jnp.float32),
            fc7_w=init(keys[6], (self.rep_size, self.rep_size)),
            fc7_b=jnp.zeros((self.rep_size,), jnp.float32),
            cls_w=init(keys[7], (self.rep_size, nc)), cls_b=jnp.zeros((nc,), jnp.float32),
            reg_w=init(keys[8], (self.rep_size, 4 * nc)), reg_b=jnp.zeros((4 * nc,), jnp.float32),
        )
        self.mean = jnp.array([0.485, 0.456, 0.406], jnp.float32)
        self.std = jnp.array([0.229, 0.224, 0.225], jnp.float32)

        # ---- derived / fused weights (computed once) ----
        p = self.params
        inv_std = 1.0 / self.std
        # Fold (x - mean)/std into conv1: w' = w/std, b' = b - sum(w*mean/std).
        w1 = p["conv1_w"] * inv_std[None, None, :, None]
        b1 = p["conv1_b"] - jnp.einsum("yxio,i->o", p["conv1_w"],
                                       self.mean * inv_std)

        def merged(w):   # (kh,kw,ci,co) -> (kh*kw*ci, co) bf16, tap-major rows
            kh, kw, ci, co = w.shape
            return w.reshape(kh * kw * ci, co).astype(jnp.bfloat16)

        # Fused RPN head: [objectness(3) | box deltas(12) | pad(1)] -> 16 cols.
        head_w = jnp.concatenate([p["rpn_cls_w"], p["rpn_reg_w"]], axis=1)
        head_w = jnp.pad(head_w, ((0, 0), (0, 1)))
        head_b = jnp.pad(jnp.concatenate([p["rpn_cls_b"], p["rpn_reg_b"]]),
                         (0, 1))

        self.d = dict(
            conv1_w=merged(w1), conv1_b=b1,
            conv2_w=merged(p["conv2_w"]), conv2_b=p["conv2_b"],
            rpn_conv_w=merged(p["rpn_conv_w"]), rpn_conv_b=p["rpn_conv_b"],
            rpn_head_w=head_w.astype(jnp.bfloat16), rpn_head_b=head_b,
            fc6_w=p["fc6_w"].astype(jnp.bfloat16), fc6_b=p["fc6_b"].reshape(1, -1),
            fc7_w=p["fc7_w"].astype(jnp.bfloat16), fc7_b=p["fc7_b"].reshape(1, -1),
            cls_w=p["cls_w"].astype(jnp.bfloat16), cls_b=p["cls_b"].reshape(1, -1),
            reg_w=p["reg_w"].astype(jnp.bfloat16), reg_b=p["reg_b"].reshape(1, -1),
        )
        self._jit_forward = jax.jit(self._forward, static_argnames=("mode",))

    # public API (keeps the original signature / assert)
    def forward(self, images, mode="full"):
        assert mode in ("full", "partial"), "mode must be either 'full' or 'partial'!"
        return self._jit_forward(images, mode=mode)

    def _forward(self, images, mode="full"):
        d = self.d
        N, _, H, W = images.shape
        # layout: NCHW (PyTorch) -> NHWC for all feature maps
        x = jnp.transpose(images, (0, 2, 3, 1)).astype(jnp.float32)

        # --- transform: normalization folded into conv1; mean-valued spatial
        #     padding keeps border semantics identical to normalize+zero-pad.
        # TODO(synk): GeneralizedRCNNTransform resize + size-divisible batching
        #             not replicated.

        # --- backbone (synthetic, single-level feature map, stride 4) ---
        f = conv2d_pallas(x, d["conv1_w"], d["conv1_b"], ksize=3, stride=2,
                          pad=1, relu=True, pad_value=self.mean)
        f = conv2d_pallas(f, d["conv2_w"], d["conv2_b"], ksize=3, stride=2,
                          pad=1, relu=True)
        _, Hf, Wf, Cf = f.shape
        spatial_scale = Hf / H

        # --- RPN: 3x3 conv + fused cls/reg heads in one Pallas kernel ---
        A = self.num_anchors
        hd = conv2d_pallas(f, d["rpn_conv_w"], d["rpn_conv_b"], ksize=3,
                           stride=1, pad=1, head_w=d["rpn_head_w"],
                           head_b=d["rpn_head_b"])            # (N,Hf,Wf,16)
        obj = hd[..., :A].reshape(N, Hf * Wf * A)
        deltas = hd[..., A:5 * A].reshape(N, Hf * Wf * A, 4)

        anchors = generate_anchors(Hf, Wf, H // Hf, self.anchor_sizes)
        boxes = clip_boxes(decode_boxes(anchors, deltas), H, W)   # (N, M, 4)
        _, idx = jax.lax.top_k(obj, self.proposals_per_image)     # (N, R)
        proposals = jnp.take_along_axis(boxes, idx[..., None], axis=1)
        # TODO(synk): RPN NMS (sequential suppression) omitted; top-k used.

        # --- box_roi_pool (single-level RoIAlign, gather-free, batched) ---
        pooled = jax.vmap(
            lambda fm, bx: roi_align(fm, bx, self.roi_size, spatial_scale)
        )(f, proposals)                                        # (N,R,7,7,C)
        R = self.proposals_per_image
        roi_feats = pooled.reshape(N * R, self.roi_size * self.roi_size * Cf)

        # --- fused box_head + box_predictor + softmax (one Pallas kernel) ---
        box_features, class_logits, box_regression, scores = \
            box_head_predictor_pallas(
                roi_feats, d["fc6_w"], d["fc6_b"], d["fc7_w"], d["fc7_b"],
                d["cls_w"], d["cls_b"], d["reg_w"], d["reg_b"])
        if mode == "partial":
            return box_features

        # --- postprocess_detections (batched over images) ---
        nc = self.num_classes + 1
        reg = box_regression.reshape(N, R, nc, 4)
        scr = scores.reshape(N, R, nc)
        dec = clip_boxes(decode_boxes(proposals[:, :, None, :], reg), H, W)
        s_fg = scr[:, :, 1:].reshape(N, R * (nc - 1))
        b_fg = dec[:, :, 1:, :].reshape(N, R * (nc - 1), 4)
        labels = jnp.tile(jnp.arange(1, nc, dtype=jnp.int32), (R,))
        # TODO(synk): score thresholding + per-class NMS omitted; global top-k.
        topk = min(5, R * (nc - 1))
        top_scores, top_idx = jax.lax.top_k(s_fg, topk)            # (N, topk)
        top_boxes = jnp.take_along_axis(b_fg, top_idx[..., None], axis=1)
        top_labels = labels[top_idx]
        return [{"boxes": top_boxes[i], "labels": top_labels[i],
                 "scores": top_scores[i]} for i in range(N)]


# --------------------------------- main ------------------------------------ #

if __name__ == "__main__":
    key = jax.random.PRNGKey(0)
    k_img, k_model = jax.random.split(key)
    num_classes = 3
    images = jax.random.uniform(k_img, (2, 3, 32, 32), jnp.float32)   # NCHW
    model = RCNNPallas(num_classes, k_model)

    detections = model.forward(images, mode="full")
    jax.block_until_ready(detections)
    box_feats = model.forward(images, mode="partial")
    jax.block_until_ready(box_feats)

    assert len(detections) == 2
    assert detections[0]["boxes"].shape == (5, 4)
    assert box_feats.shape == (2 * model.proposals_per_image, model.rep_size)
    print("KERNEL_OK")
</pallas_src>

<mosaic_0001>
module attributes {stable_mosaic.version = 11 : i64} {
  func.func @_conv_kernel(%arg0: i32, %arg1: i32, %arg2: memref<1x64x27xbf16, #tpu.memory_space<vmem>>, %arg3: memref<27x16xbf16, #tpu.memory_space<vmem>>, %arg4: memref<1x16xf32, #tpu.memory_space<vmem>>, %arg5: memref<1x64x16xf32, #tpu.memory_space<vmem>>) attributes {dimension_semantics = [#tpu.dimension_semantics<parallel>, #tpu.dimension_semantics<parallel>], iteration_bounds = array<i64: 2, 4>, scalar_prefetch = 0 : i64, scratch_operands = 0 : i64, tpu.core_type = #tpu.core_type<tc>, window_params = [{transform_indices = @transform_0, window_bounds = array<i64: 1, 64, 27>}, {pipeline_mode = #tpu.pipeline_mode<synchronous>, transform_indices = @transform_1, window_bounds = array<i64: 27, 16>}, {pipeline_mode = #tpu.pipeline_mode<synchronous>, transform_indices = @transform_2, window_bounds = array<i64: 1, 16>}, {transform_indices = @transform_3, window_bounds = array<i64: 1, 64, 16>}]} {
    %c0 = arith.constant 0 : index
    %c0_0 = arith.constant 0 : index
    %c0_1 = arith.constant 0 : index
    %0 = vector.load %arg2[%c0, %c0_0, %c0_1] : memref<1x64x27xbf16, #tpu.memory_space<vmem>>, vector<1x64x27xbf16>
    %1 = vector.shape_cast %0 : vector<1x64x27xbf16> to vector<64x27xbf16>
    %c0_2 = arith.constant 0 : index
    %c0_3 = arith.constant 0 : index
    %2 = vector.load %arg3[%c0_2, %c0_3] : memref<27x16xbf16, #tpu.memory_space<vmem>>, vector<27x16xbf16>
    %cst = arith.constant dense<0.000000e+00> : vector<64x16xf32>
    %3 = tpu.matmul %1, %2, %cst {dimension_numbers = #tpu.dot_dimension_numbers<[1], [0], [0], [1], [0, 0, 1, 1], [], []>} : vector<64x27xbf16>, vector<27x16xbf16>, vector<64x16xf32> -> vector<64x16xf32>
    %c0_4 = arith.constant 0 : index
    %c0_5 = arith.constant 0 : index
    %4 = vector.load %arg4[%c0_4, %c0_5] : memref<1x16xf32, #tpu.memory_space<vmem>>, vector<1x16xf32>
    %5 = vector.broadcast %4 : vector<1x16xf32> to vector<64x16xf32>
    %6 = arith.addf %3, %5 : vector<64x16xf32>
    %cst_6 = arith.constant 0.000000e+00 : f32
    %7 = vector.broadcast %cst_6 : f32 to vector<64x16xf32>
    %8 = arith.maximumf %6, %7 : vector<64x16xf32>
    %c0_7 = arith.constant 0 : index
    %c0_8 = arith.constant 0 : index
    %c0_9 = arith.constant 0 : index
    %9 = vector.load %arg5[%c0_7, %c0_8, %c0_9] : memref<1x64x16xf32, #tpu.memory_space<vmem>>, vector<1x64x16xf32>
    %10 = vector.shape_cast %9 : vector<1x64x16xf32> to vector<64x16xf32>
    %11 = vector.shape_cast %8 : vector<64x16xf32> to vector<1x64x16xf32>
    tpu.vector_store %arg5[%c0_7, %c0_8, %c0_9], %11 {strides = array<i32>} : memref<1x64x16xf32, #tpu.memory_space<vmem>>, vector<1x64x16xf32>,
    return
  }
  func.func @transform_0(%arg0: i32, %arg1: i32) -> (i32, i32, i32) {
    %c0_i32 = arith.constant 0 : i32
    %c0_i32_0 = arith.constant 0 : i32
    return %arg0, %arg1, %c0_i32 : i32, i32, i32
  }
  func.func @transform_1(%arg0: i32, %arg1: i32) -> (i32, i32) {
    %c0_i32 = arith.constant 0 : i32
    %c0_i32_0 = arith.constant 0 : i32
    %c0_i32_1 = arith.constant 0 : i32
    return %c0_i32, %c0_i32_0 : i32, i32
  }
  func.func @transform_2(%arg0: i32, %arg1: i32) -> (i32, i32) {
    %c0_i32 = arith.constant 0 : i32
    %c0_i32_0 = arith.constant 0 : i32
    %c0_i32_1 = arith.constant 0 : i32
    return %c0_i32, %c0_i32_0 : i32, i32
  }
  func.func @transform_3(%arg0: i32, %arg1: i32) -> (i32, i32, i32) {
    %c0_i32 = arith.constant 0 : i32
    %c0_i32_0 = arith.constant 0 : i32
    return %arg0, %arg1, %c0_i32 : i32, i32, i32
  }
}

module attributes {stable_mosaic.version = 11 : i64} {
  func.func @_conv_kernel(%arg0: i32, %arg1: i32, %arg2: memref<1x16x144xbf16, #tpu.memory_space<vmem>>, %arg3: memref<144x32xbf16, #tpu.memory_space<vmem>>, %arg4: memref<1x32xf32, #tpu.memory_space<vmem>>, %arg5: memref<1x16x32xf32, #tpu.memory_space<vmem>>) attributes {dimension_semantics = [#tpu.dimension_semantics<parallel>, #tpu.dimension_semantics<parallel>], iteration_bounds = array<i64: 2, 4>, scalar_prefetch = 0 : i64, scratch_operands = 0 : i64, tpu.core_type = #tpu.core_type<tc>, window_params = [{transform_indices = @transform_0, window_bounds = array<i64: 1, 16, 144>}, {pipeline_mode = #tpu.pipeline_mode<synchronous>, transform_indices = @transform_1, window_bounds = array<i64: 144, 32>}, {pipeline_mode = #tpu.pipeline_mode<synchronous>, transform_indices = @transform_2, window_bounds = array<i64: 1, 32>}, {transform_indices = @transform_3, window_bounds = array<i64: 1, 16, 32>}]} {
    %c0 = arith.constant 0 : index
    %c0_0 = arith.constant 0 : index
    %c0_1 = arith.constant 0 : index
    %0 = vector.load %arg2[%c0, %c0_0, %c0_1] : memref<1x16x144xbf16, #tpu.memory_space<vmem>>, vector<1x16x144xbf16>
    %1 = vector.shape_cast %0 : vector<1x16x144xbf16> to vector<16x144xbf16>
    %c0_2 = arith.constant 0 : index
    %c0_3 = arith.constant 0 : index
    %2 = vector.load %arg3[%c0_2, %c0_3] : memref<144x32xbf16, #tpu.memory_space<vmem>>, vector<144x32xbf16>
    %cst = arith.constant dense<0.000000e+00> : vector<16x32xf32>
    %3 = tpu.matmul %1, %2, %cst {dimension_numbers = #tpu.dot_dimension_numbers<[1], [0], [0], [1], [0, 0, 1, 1], [], []>} : vector<16x144xbf16>, vector<144x32xbf16>, vector<16x32xf32> -> vector<16x32xf32>
    %c0_4 = arith.constant 0 : index
    %c0_5 = arith.constant 0 : index
    %4 = vector.load %arg4[%c0_4, %c0_5] : memref<1x32xf32, #tpu.memory_space<vmem>>, vector<1x32xf32>
    %5 = vector.broadcast %4 : vector<1x32xf32> to vector<16x32xf32>
    %6 = arith.addf %3, %5 : vector<16x32xf32>
    %cst_6 = arith.constant 0.000000e+00 : f32
    %7 = vector.broadcast %cst_6 : f32 to vector<16x32xf32>
    %8 = arith.maximumf %6, %7 : vector<16x32xf32>
    %c0_7 = arith.constant 0 : index
    %c0_8 = arith.constant 0 : index
    %c0_9 = arith.constant 0 : index
    %9 = vector.load %arg5[%c0_7, %c0_8, %c0_9] : memref<1x16x32xf32, #tpu.memory_space<vmem>>, vector<1x16x32xf32>
    %10 = vector.shape_cast %9 : vector<1x16x32xf32> to vector<16x32xf32>
    %11 = vector.shape_cast %8 : vector<16x32xf32> to vector<1x16x32xf32>
    tpu.vector_store %arg5[%c0_7, %c0_8, %c0_9], %11 {strides = array<i32>} : memref<1x16x32xf32, #tpu.memory_space<vmem>>, vector<1x16x32xf32>,
    return
  }
  func.func @transform_0(%arg0: i32, %arg1: i32) -> (i32, i32, i32) {
    %c0_i32 = arith.constant 0 : i32
    %c0_i32_0 = arith.constant 0 : i32
    return %arg0, %arg1, %c0_i32 : i32, i32, i32
  }
  func.func @transform_1(%arg0: i32, %arg1: i32) -> (i32, i32) {
    %c0_i32 = arith.constant 0 : i32
    %c0_i32_0 = arith.constant 0 : i32
    %c0_i32_1 = arith.constant 0 : i32
    return %c0_i32, %c0_i32_0 : i32, i32
  }
  func.func @transform_2(%arg0: i32, %arg1: i32) -> (i32, i32) {
    %c0_i32 = arith.constant 0 : i32
    %c0_i32_0 = arith.constant 0 : i32
    %c0_i32_1 = arith.constant 0 : i32
    return %c0_i32, %c0_i32_0 : i32, i32
  }
  func.func @transform_3(%arg0: i32, %arg1: i32) -> (i32, i32, i32) {
    %c0_i32 = arith.constant 0 : i32
    %c0_i32_0 = arith.constant 0 : i32
    return %arg0, %arg1, %c0_i32 : i32, i32, i32
  }
}

module attributes {stable_mosaic.version = 11 : i64} {
  func.func @_conv_head_kernel(%arg0: i32, %arg1: i32, %arg2: memref<1x16x288xbf16, #tpu.memory_space<vmem>>, %arg3: memref<288x32xbf16, #tpu.memory_space<vmem>>, %arg4: memref<1x32xf32, #tpu.memory_space<vmem>>, %arg5: memref<32x16xbf16, #tpu.memory_space<vmem>>, %arg6: memref<1x16xf32, #tpu.memory_space<vmem>>, %arg7: memref<1x16x16xf32, #tpu.memory_space<vmem>>) attributes {dimension_semantics = [#tpu.dimension_semantics<parallel>, #tpu.dimension_semantics<parallel>], iteration_bounds = array<i64: 2, 4>, scalar_prefetch = 0 : i64, scratch_operands = 0 : i64, tpu.core_type = #tpu.core_type<tc>, window_params = [{transform_indices = @transform_0, window_bounds = array<i64: 1, 16, 288>}, {pipeline_mode = #tpu.pipeline_mode<synchronous>, transform_indices = @transform_1, window_bounds = array<i64: 288, 32>}, {pipeline_mode = #tpu.pipeline_mode<synchronous>, transform_indices = @transform_2, window_bounds = array<i64: 1, 32>}, {pipeline_mode = #tpu.pipeline_mode<synchronous>, transform_indices = @transform_3, window_bounds = array<i64: 32, 16>}, {pipeline_mode = #tpu.pipeline_mode<synchronous>, transform_indices = @transform_4, window_bounds = array<i64: 1, 16>}, {transform_indices = @transform_5, window_bounds = array<i64: 1, 16, 16>}]} {
    %c0 = arith.constant 0 : index
    %c0_0 = arith.constant 0 : index
    %c0_1 = arith.constant 0 : index
    %0 = vector.load %arg2[%c0, %c0_0, %c0_1] : memref<1x16x288xbf16, #tpu.memory_space<vmem>>, vector<1x16x288xbf16>
    %1 = vector.shape_cast %0 : vector<1x16x288xbf16> to vector<16x288xbf16>
    %c0_2 = arith.constant 0 : index
    %c0_3 = arith.constant 0 : index
    %2 = vector.load %arg3[%c0_2, %c0_3] : memref<288x32xbf16, #tpu.memory_space<vmem>>, vector<288x32xbf16>
    %cst = arith.constant dense<0.000000e+00> : vector<16x32xf32>
    %3 = tpu.matmul %1, %2, %cst {dimension_numbers = #tpu.dot_dimension_numbers<[1], [0], [0], [1], [0, 0, 1, 1], [], []>} : vector<16x288xbf16>, vector<288x32xbf16>, vector<16x32xf32> -> vector<16x32xf32>
    %c0_4 = arith.constant 0 : index
    %c0_5 = arith.constant 0 : index
    %4 = vector.load %arg4[%c0_4, %c0_5] : memref<1x32xf32, #tpu.memory_space<vmem>>, vector<1x32xf32>
    %5 = vector.broadcast %4 : vector<1x32xf32> to vector<16x32xf32>
    %6 = arith.addf %3, %5 : vector<16x32xf32>
    %cst_6 = arith.constant 0.000000e+00 : f32
    %7 = vector.broadcast %cst_6 : f32 to vector<16x32xf32>
    %8 = arith.maximumf %6, %7 : vector<16x32xf32>
    %9 = arith.truncf %8 : vector<16x32xf32> to vector<16x32xbf16>
    %c0_7 = arith.constant 0 : index
    %c0_8 = arith.constant 0 : index
    %10 = vector.load %arg5[%c0_7, %c0_8] : memref<32x16xbf16, #tpu.memory_space<vmem>>, vector<32x16xbf16>
    %cst_9 = arith.constant dense<0.000000e+00> : vector<16x16xf32>
    %11 = tpu.matmul %9, %10, %cst_9 {dimension_numbers = #tpu.dot_dimension_numbers<[1], [0], [0], [1], [0, 0, 1, 1], [], []>} : vector<16x32xbf16>, vector<32x16xbf16>, vector<16x16xf32> -> vector<16x16xf32>
    %c0_10 = arith.constant 0 : index
    %c0_11 = arith.constant 0 : index
    %12 = vector.load %arg6[%c0_10, %c0_11] : memref<1x16xf32, #tpu.memory_space<vmem>>, vector<1x16xf32>
    %13 = vector.broadcast %12 : vector<1x16xf32> to vector<16x16xf32>
    %14 = arith.addf %11, %13 : vector<16x16xf32>
    %c0_12 = arith.constant 0 : index
    %c0_13 = arith.constant 0 : index
    %c0_14 = arith.constant 0 : index
    %15 = vector.load %arg7[%c0_12, %c0_13, %c0_14] : memref<1x16x16xf32, #tpu.memory_space<vmem>>, vector<1x16x16xf32>
    %16 = vector.shape_cast %15 : vector<1x16x16xf32> to vector<16x16xf32>
    %17 = vector.shape_cast %14 : vector<16x16xf32> to vector<1x16x16xf32>
    tpu.vector_store %arg7[%c0_12, %c0_13, %c0_14], %17 {strides = array<i32>} : memref<1x16x16xf32, #tpu.memory_space<vmem>>, vector<1x16x16xf32>,
    return
  }
  func.func @transform_0(%arg0: i32, %arg1: i32) -> (i32, i32, i32) {
    %c0_i32 = arith.constant 0 : i32
    %c0_i32_0 = arith.constant 0 : i32
    return %arg0, %arg1, %c0_i32 : i32, i32, i32
  }
  func.func @transform_1(%arg0: i32, %arg1: i32) -> (i32, i32) {
    %c0_i32 = arith.constant 0 : i32
    %c0_i32_0 = arith.constant 0 : i32
    %c0_i32_1 = arith.constant 0 : i32
    return %c0_i32, %c0_i32_0 : i32, i32
  }
  func.func @transform_2(%arg0: i32, %arg1: i32) -> (i32, i32) {
    %c0_i32 = arith.constant 0 : i32
    %c0_i32_0 = arith.constant 0 : i32
    %c0_i32_1 = arith.constant 0 : i32
    return %c0_i32, %c0_i32_0 : i32, i32
  }
  func.func @transform_3(%arg0: i32, %arg1: i32) -> (i32, i32) {
    %c0_i32 = arith.constant 0 : i32
    %c0_i32_0 = arith.constant 0 : i32
    %c0_i32_1 = arith.constant 0 : i32
    return %c0_i32, %c0_i32_0 : i32, i32
  }
  func.func @transform_4(%arg0: i32, %arg1: i32) -> (i32, i32) {
    %c0_i32 = arith.constant 0 : i32
    %c0_i32_0 = arith.constant 0 : i32
    %c0_i32_1 = arith.constant 0 : i32
    return %c0_i32, %c0_i32_0 : i32, i32
  }
  func.func @transform_5(%arg0: i32, %arg1: i32) -> (i32, i32, i32) {
    %c0_i32 = arith.constant 0 : i32
    %c0_i32_0 = arith.constant 0 : i32
    return %arg0, %arg1, %c0_i32 : i32, i32, i32
  }
}

module attributes {stable_mosaic.version = 11 : i64} {
  func.func @_box_head_kernel(%arg0: i32, %arg1: memref<16x1568xbf16, #tpu.memory_space<vmem>>, %arg2: memref<1568x64xbf16, #tpu.memory_space<vmem>>, %arg3: memref<1x64xf32, #tpu.memory_space<vmem>>, %arg4: memref<64x64xbf16, #tpu.memory_space<vmem>>, %arg5: memref<1x64xf32, #tpu.memory_space<vmem>>, %arg6: memref<64x4xbf16, #tpu.memory_space<vmem>>, %arg7: memref<1x4xf32, #tpu.memory_space<vmem>>, %arg8: memref<64x16xbf16, #tpu.memory_space<vmem>>, %arg9: memref<1x16xf32, #tpu.memory_space<vmem>>, %arg10: memref<16x64xf32, #tpu.memory_space<vmem>>, %arg11: memref<16x4xf32, #tpu.memory_space<vmem>>, %arg12: memref<16x16xf32, #tpu.memory_space<vmem>>, %arg13: memref<16x4xf32, #tpu.memory_space<vmem>>) attributes {dimension_semantics = [#tpu.dimension_semantics<parallel>], iteration_bounds = array<i64: 4>, scalar_prefetch = 0 : i64, scratch_operands = 0 : i64, tpu.core_type = #tpu.core_type<tc>, window_params = [{transform_indices = @transform_0, window_bounds = array<i64: 16, 1568>}, {pipeline_mode = #tpu.pipeline_mode<synchronous>, transform_indices = @transform_1, window_bounds = array<i64: 1568, 64>}, {pipeline_mode = #tpu.pipeline_mode<synchronous>, transform_indices = @transform_2, window_bounds = array<i64: 1, 64>}, {pipeline_mode = #tpu.pipeline_mode<synchronous>, transform_indices = @transform_3, window_bounds = array<i64: 64, 64>}, {pipeline_mode = #tpu.pipeline_mode<synchronous>, transform_indices = @transform_4, window_bounds = array<i64: 1, 64>}, {pipeline_mode = #tpu.pipeline_mode<synchronous>, transform_indices = @transform_5, window_bounds = array<i64: 64, 4>}, {pipeline_mode = #tpu.pipeline_mode<synchronous>, transform_indices = @transform_6, window_bounds = array<i64: 1, 4>}, {pipeline_mode = #tpu.pipeline_mode<synchronous>, transform_indices = @transform_7, window_bounds = array<i64: 64, 16>}, {pipeline_mode = #tpu.pipeline_mode<synchronous>, transform_indices = @transform_8, window_bounds = array<i64: 1, 16>}, {transform_indices = @transform_9, window_bounds = array<i64: 16, 64>}, {transform_indices = @transform_10, window_bounds = array<i64: 16, 4>}, {transform_indices = @transform_11, window_bounds = array<i64: 16, 16>}, {transform_indices = @transform_12, window_bounds = array<i64: 16, 4>}]} {
    %c0 = arith.constant 0 : index
    %c0_0 = arith.constant 0 : index
    %0 = vector.load %arg1[%c0, %c0_0] : memref<16x1568xbf16, #tpu.memory_space<vmem>>, vector<16x1568xbf16>
    %c0_1 = arith.constant 0 : index
    %c0_2 = arith.constant 0 : index
    %1 = vector.load %arg2[%c0_1, %c0_2] : memref<1568x64xbf16, #tpu.memory_space<vmem>>, vector<1568x64xbf16>
    %cst = arith.constant dense<0.000000e+00> : vector<16x64xf32>
    %2 = tpu.matmul %0, %1, %cst {dimension_numbers = #tpu.dot_dimension_numbers<[1], [0], [0], [1], [0, 0, 1, 1], [], []>} : vector<16x1568xbf16>, vector<1568x64xbf16>, vector<16x64xf32> -> vector<16x64xf32>
    %c0_3 = arith.constant 0 : index
    %c0_4 = arith.constant 0 : index
    %3 = vector.load %arg3[%c0_3, %c0_4] : memref<1x64xf32, #tpu.memory_space<vmem>>, vector<1x64xf32>
    %4 = vector.broadcast %3 : vector<1x64xf32> to vector<16x64xf32>
    %5 = arith.addf %2, %4 : vector<16x64xf32>
    %cst_5 = arith.constant 0.000000e+00 : f32
    %6 = vector.broadcast %cst_5 : f32 to vector<16x64xf32>
    %7 = arith.maximumf %5, %6 : vector<16x64xf32>
    %8 = arith.truncf %7 : vector<16x64xf32> to vector<16x64xbf16>
    %c0_6 = arith.constant 0 : index
    %c0_7 = arith.constant 0 : index
    %9 = vector.load %arg4[%c0_6, %c0_7] : memref<64x64xbf16, #tpu.memory_space<vmem>>, vector<64x64xbf16>
    %cst_8 = arith.constant dense<0.000000e+00> : vector<16x64xf32>
    %10 = tpu.matmul %8, %9, %cst_8 {dimension_numbers = #tpu.dot_dimension_numbers<[1], [0], [0], [1], [0, 0, 1, 1], [], []>} : vector<16x64xbf16>, vector<64x64xbf16>, vector<16x64xf32> -> vector<16x64xf32>
    %c0_9 = arith.constant 0 : index
    %c0_10 = arith.constant 0 : index
    %11 = vector.load %arg5[%c0_9, %c0_10] : memref<1x64xf32, #tpu.memory_space<vmem>>, vector<1x64xf32>
    %12 = vector.broadcast %11 : vector<1x64xf32> to vector<16x64xf32>
    %13 = arith.addf %10, %12 : vector<16x64xf32>
    %cst_11 = arith.constant 0.000000e+00 : f32
    %14 = vector.broadcast %cst_11 : f32 to vector<16x64xf32>
    %15 = arith.maximumf %13, %14 : vector<16x64xf32>
    %c0_12 = arith.constant 0 : index
    %c0_13 = arith.constant 0 : index
    %16 = vector.load %arg10[%c0_12, %c0_13] : memref<16x64xf32, #tpu.memory_space<vmem>>, vector<16x64xf32>
    tpu.vector_store %arg10[%c0_12, %c0_13], %15 {strides = array<i32>} : memref<16x64xf32, #tpu.memory_space<vmem>>, vector<16x64xf32>,
    %17 = arith.truncf %15 : vector<16x64xf32> to vector<16x64xbf16>
    %c0_14 = arith.constant 0 : index
    %c0_15 = arith.constant 0 : index
    %18 = vector.load %arg6[%c0_14, %c0_15] : memref<64x4xbf16, #tpu.memory_space<vmem>>, vector<64x4xbf16>
    %cst_16 = arith.constant dense<0.000000e+00> : vector<16x4xf32>
    %19 = tpu.matmul %17, %18, %cst_16 {dimension_numbers = #tpu.dot_dimension_numbers<[1], [0], [0], [1], [0, 0, 1, 1], [], []>} : vector<16x64xbf16>, vector<64x4xbf16>, vector<16x4xf32> -> vector<16x4xf32>
    %c0_17 = arith.constant 0 : index
    %c0_18 = arith.constant 0 : index
    %20 = vector.load %arg7[%c0_17, %c0_18] : memref<1x4xf32, #tpu.memory_space<vmem>>, vector<1x4xf32>
    %21 = vector.broadcast %20 : vector<1x4xf32> to vector<16x4xf32>
    %22 = arith.addf %19, %21 : vector<16x4xf32>
    %c0_19 = arith.constant 0 : index
    %c0_20 = arith.constant 0 : index
    %23 = vector.load %arg11[%c0_19, %c0_20] : memref<16x4xf32, #tpu.memory_space<vmem>>, vector<16x4xf32>
    tpu.vector_store %arg11[%c0_19, %c0_20], %22 {strides = array<i32>} : memref<16x4xf32, #tpu.memory_space<vmem>>, vector<16x4xf32>,
    %c0_21 = arith.constant 0 : index
    %c0_22 = arith.constant 0 : index
    %24 = vector.load %arg8[%c0_21, %c0_22] : memref<64x16xbf16, #tpu.memory_space<vmem>>, vector<64x16xbf16>
    %cst_23 = arith.constant dense<0.000000e+00> : vector<16x16xf32>
    %25 = tpu.matmul %17, %24, %cst_23 {dimension_numbers = #tpu.dot_dimension_numbers<[1], [0], [0], [1], [0, 0, 1, 1], [], []>} : vector<16x64xbf16>, vector<64x16xbf16>, vector<16x16xf32> -> vector<16x16xf32>
    %c0_24 = arith.constant 0 : index
    %c0_25 = arith.constant 0 : index
    %26 = vector.load %arg9[%c0_24, %c0_25] : memref<1x16xf32, #tpu.memory_space<vmem>>, vector<1x16xf32>
    %27 = vector.broadcast %26 : vector<1x16xf32> to vector<16x16xf32>
    %28 = arith.addf %25, %27 : vector<16x16xf32>
    %c0_26 = arith.constant 0 : index
    %c0_27 = arith.constant 0 : index
    %29 = vector.load %arg12[%c0_26, %c0_27] : memref<16x16xf32, #tpu.memory_space<vmem>>, vector<16x16xf32>
    tpu.vector_store %arg12[%c0_26, %c0_27], %28 {strides = array<i32>} : memref<16x16xf32, #tpu.memory_space<vmem>>, vector<16x16xf32>,
    %cst_28 = arith.constant dense<0xFF800000> : vector<16xf32>
    %30 = vector.multi_reduction <maximumf>, %22, %cst_28 [1] : vector<16x4xf32> to vector<16xf32>
    %31 = vector.shape_cast %30 : vector<16xf32> to vector<16x1xf32>
    %32 = vector.broadcast %31 : vector<16x1xf32> to vector<16x4xf32>
    %33 = arith.subf %22, %32 : vector<16x4xf32>
    %34 = math.exp %33 : vector<16x4xf32>
    %cst_29 = arith.constant dense<0.000000e+00> : vector<16xf32>
    %35 = vector.multi_reduction <add>, %34, %cst_29 [1] : vector<16x4xf32> to vector<16xf32>
    %36 = vector.shape_cast %35 : vector<16xf32> to vector<16x1xf32>
    %37 = tpu.reciprocal %36 {approx = true} : vector<16x1xf32> -> vector<16x1xf32>
    %38 = vector.broadcast %37 : vector<16x1xf32> to vector<16x4xf32>
    %39 = arith.mulf %34, %38 : vector<16x4xf32>
    %c0_30 = arith.constant 0 : index
    %c0_31 = arith.constant 0 : index
    %40 = vector.load %arg13[%c0_30, %c0_31] : memref<16x4xf32, #tpu.memory_space<vmem>>, vector<16x4xf32>
    tpu.vector_store %arg13[%c0_30, %c0_31], %39 {strides = array<i32>} : memref<16x4xf32, #tpu.memory_space<vmem>>, vector<16x4xf32>,
    return
  }
  func.func @transform_0(%arg0: i32) -> (i32, i32) {
    %c0_i32 = arith.constant 0 : i32
    %c0_i32_0 = arith.constant 0 : i32
    return %arg0, %c0_i32 : i32, i32
  }
  func.func @transform_1(%arg0: i32) -> (i32, i32) {
    %c0_i32 = arith.constant 0 : i32
    %c0_i32_0 = arith.constant 0 : i32
    %c0_i32_1 = arith.constant 0 : i32
    return %c0_i32, %c0_i32_0 : i32, i32
  }
  func.func @transform_2(%arg0: i32) -> (i32, i32) {
    %c0_i32 = arith.constant 0 : i32
    %c0_i32_0 = arith.constant 0 : i32
    %c0_i32_1 = arith.constant 0 : i32
    return %c0_i32, %c0_i32_0 : i32, i32
  }
  func.func @transform_3(%arg0: i32) -> (i32, i32) {
    %c0_i32 = arith.constant 0 : i32
    %c0_i32_0 = arith.constant 0 : i32
    %c0_i32_1 = arith.constant 0 : i32
    return %c0_i32, %c0_i32_0 : i32, i32
  }
  func.func @transform_4(%arg0: i32) -> (i32, i32) {
    %c0_i32 = arith.constant 0 : i32
    %c0_i32_0 = arith.constant 0 : i32
    %c0_i32_1 = arith.constant 0 : i32
    return %c0_i32, %c0_i32_0 : i32, i32
  }
  func.func @transform_5(%arg0: i32) -> (i32, i32) {
    %c0_i32 = arith.constant 0 : i32
    %c0_i32_0 = arith.constant 0 : i32
    %c0_i32_1 = arith.constant 0 : i32
    return %c0_i32, %c0_i32_0 : i32, i32
  }
  func.func @transform_6(%arg0: i32) -> (i32, i32) {
    %c0_i32 = arith.constant 0 : i32
    %c0_i32_0 = arith.constant 0 : i32
    %c0_i32_1 = arith.constant 0 : i32
    return %c0_i32, %c0_i32_0 : i32, i32
  }
  func.func @transform_7(%arg0: i32) -> (i32, i32) {
    %c0_i32 = arith.constant 0 : i32
    %c0_i32_0 = arith.constant 0 : i32
    %c0_i32_1 = arith.constant 0 : i32
    return %c0_i32, %c0_i32_0 : i32, i32
  }
  func.func @transform_8(%arg0: i32) -> (i32, i32) {
    %c0_i32 = arith.constant 0 : i32
    %c0_i32_0 = arith.constant 0 : i32
    %c0_i32_1 = arith.constant 0 : i32
    return %c0_i32, %c0_i32_0 : i32, i32
  }
  func.func @transform_9(%arg0: i32) -> (i32, i32) {
    %c0_i32 = arith.constant 0 : i32
    %c0_i32_0 = arith.constant 0 : i32
    return %arg0, %c0_i32 : i32, i32
  }
  func.func @transform_10(%arg0: i32) -> (i32, i32) {
    %c0_i32 = arith.constant 0 : i32
    %c0_i32_0 = arith.constant 0 : i32
    return %arg0, %c0_i32 : i32, i32
  }
  func.func @transform_11(%arg0: i32) -> (i32, i32) {
    %c0_i32 = arith.constant 0 : i32
    %c0_i32_0 = arith.constant 0 : i32
    return %arg0, %c0_i32 : i32, i32
  }
  func.func @transform_12(%arg0: i32) -> (i32, i32) {
    %c0_i32 = arith.constant 0 : i32
    %c0_i32_0 = arith.constant 0 : i32
    return %arg0, %c0_i32 : i32, i32
  }
}

</mosaic_0001>

<llo_original>
// kernel: _forward.4
$region0: #{_forward.4}
  #allocation0 [shape = 'u32[]', space=smem, size = 0x4, offset = 0x4, fixed_abs, tag = 'smem constant byte address 0x4 - core index']
  #allocation1 [shape = 'u32[144,128]{1,0:T(1,128)}', space=vmem, size = 0x12000, scoped, tag = 'internal scratch']
  %s0 = inlined_call_operand.vmem [shape: bf16[2,256,27], index: 0, kind: input, shape index: {}]
  %s1 = inlined_call_operand.vmem [shape: bf16[27,16], index: 1, kind: input, shape index: {}]
  %s2 = inlined_call_operand.vmem [shape: f32[1,16], index: 2, kind: input, shape index: {}]
  %s3 = inlined_call_operand.vmem [shape: f32[2,256,16], index: 3, kind: output, shape index: {}]
  %s4 = sld [smem:[#allocation0]]
  $region45: #{_forward.4} parent=0
    _
  %s6 = ssub.s32 1, %s4
  %s7 = scalar_select 0, %s6, %s4
  loop: start=0, step=1, limit=10
  $region2: #{_forward.4} parent=0 // loop_pre_header
    _
  $region3: #{_forward.4} parent=0 // loop_header
    %s9 = sphi 0, %s13
    %p10 = scmp.ge.s32.totalorder %s9, 10
    %s16 = sphi 0, %s28
    %s17 = sphi 0, %s24
    %s18 = sphi 0, %s16
    %s19 = sphi 0, %s17
    %s20 = sphi 0, %s18
    %s21 = sphi 0, %s19
    %s33 = sphi 0, %s35
    %s36 = sphi 0, %s33
    %s37 = sphi 0, %s36
    %s53 = sphi 0, %s37
    %s57 = sphi 0, %s57
    %s59 = sphi 0, %s57
    %s60 = sphi 0, %s59
    %s74 = sphi 0, %s60
    %s78 = sphi 0, %s78
    %s80 = sphi 0, %s78
    %s81 = sphi 0, %s80
    %s95 = sphi 0, %s81
    %s103 = sphi 0, %s105
    %s106 = sphi 0, %s103
    %s107 = sphi 0, %s106
    %s123 = sphi 0, %s107
  $region4: #{_forward.4} parent=0 // loop_header_branch
    %12 = sbr.rel (%p10) target = $region8
  $region5: #{_forward.4} parent=0 // loop_body
    %s14 = ssub.s32 %s9, 1
    %s15 = ssub.s32 %s9, 2
    %s22 = sadd.s32 1, %s17
    %p23 = scmp.ge.s32.totalorder %s22, 4
    %s24 = scalar_select %p23, 0, %s22
    %s25 = sadd.s32 1, %s16
    %s26 = scalar_select %p23, %s25, %s16
    %p27 = scmp.ge.s32.totalorder %s26, 2
    %s28 = scalar_select %p27, 0, %s26
    %s29 = ssub.s32 %s16, %s28
    %s30 = ssub.s32 %s17, %s24
    %s31 = sor.u32 %s29, %s30
    %p32 = scmp.eq.s32.totalorder %s31, 0
    %s34 = sadd.s32 %s33, 1
    %s35 = scalar_select %p32, %s33, %s34
    %p38 = pneg %p32
    %p39 = scmp.eq.s32.totalorder %s9, 7
    %p40 = por %p38, %p39
    %p41 = scmp.ne.s32.totalorder %s33, %s36
    %p42 = scmp.eq.s32.totalorder %s9, 0
    %p43 = por %p41, %p42
    %p44 = scmp.ne.s32.totalorder %s33, %s36
    %p45 = scmp.eq.s32.totalorder %s14, 7
    %p46 = por %p44, %p45
    %p47 = scmp.ne.s32.totalorder %s36, %s37
    %p48 = scmp.eq.s32.totalorder %s14, 0
    %p49 = por %p47, %p48
    %p50 = scmp.ne.s32.totalorder %s36, %s37
    %p51 = scmp.eq.s32.totalorder %s15, 7
    %p52 = por %p50, %p51
    %p54 = scmp.ne.s32.totalorder %s37, %s53
    %p55 = scmp.eq.s32.totalorder %s15, 0
    %p56 = por %p54, %p55
    %s58 = sadd.s32 %s57, 1
    %p61 = scmp.eq.s32.totalorder %s9, 7
    %p62 = scmp.ne.s32.totalorder %s57, %s59
    %p63 = scmp.eq.s32.totalorder %s9, 0
    %p64 = por %p62, %p63
    %p65 = scmp.ne.s32.totalorder %s57, %s59
    %p66 = scmp.eq.s32.totalorder %s14, 7
    %p67 = por %p65, %p66
    %p68 = scmp.ne.s32.totalorder %s59, %s60
    %p69 = scmp.eq.s32.totalorder %s14, 0
    %p70 = por %p68, %p69
    %p71 = scmp.ne.s32.totalorder %s59, %s60
    %p72 = scmp.eq.s32.totalorder %s15, 7
    %p73 = por %p71, %p72
    %p75 = scmp.ne.s32.totalorder %s60, %s74
    %p76 = scmp.eq.s32.totalorder %s15, 0
    %p77 = por %p75, %p76
    %s79 = sadd.s32 %s78, 1
    %p82 = scmp.eq.s32.totalorder %s9, 7
    %p83 = scmp.ne.s32.totalorder %s78, %s80
    %p84 = scmp.eq.s32.totalorder %s9, 0
    %p85 = por %p83, %p84
    %p86 = scmp.ne.s32.totalorder %s78, %s80
    %p87 = scmp.eq.s32.totalorder %s14, 7
    %p88 = por %p86, %p87
    %p89 = scmp.ne.s32.totalorder %s80, %s81
    %p90 = scmp.eq.s32.totalorder %s14, 0
    %p91 = por %p89, %p90
    %p92 = scmp.ne.s32.totalorder %s80, %s81
    %p93 = scmp.eq.s32.totalorder %s15, 7
    %p94 = por %p92, %p93
    %p96 = scmp.ne.s32.totalorder %s81, %s95
    %p97 = scmp.eq.s32.totalorder %s15, 0
    %p98 = por %p96, %p97
    %s99 = ssub.s32 %s16, %s28
    %s100 = ssub.s32 %s17, %s24
    %s101 = sor.u32 %s99, %s100
    %p102 = scmp.eq.s32.totalorder %s101, 0
    %s104 = sadd.s32 %s103, 1
    %s105 = scalar_select %p102, %s103, %s104
    %p108 = pneg %p102
    %p109 = scmp.eq.s32.totalorder %s9, 7
    %p110 = por %p108, %p109
    %p111 = scmp.ne.s32.totalorder %s103, %s106
    %p112 = scmp.eq.s32.totalorder %s9, 0
    %p113 = por %p111, %p112
    %p114 = scmp.ne.s32.totalorder %s103, %s106
    %p115 = scmp.eq.s32.totalorder %s14, 7
    %p116 = por %p114, %p115
    %p117 = scmp.ne.s32.totalorder %s106, %s107
    %p118 = scmp.eq.s32.totalorder %s14, 0
    %p119 = por %p117, %p118
    %p120 = scmp.ne.s32.totalorder %s106, %s107
    %p121 = scmp.eq.s32.totalorder %s15, 7
    %p122 = por %p120, %p121
    %p124 = scmp.ne.s32.totalorder %s107, %s123
    %p125 = scmp.eq.s32.totalorder %s15, 0
    %p126 = por %p124, %p125
    %p127 = scmp.le.s32.totalorder 1, %s9
    %p128 = scmp.lt.s32.totalorder %s9, 9
    %p129 = pnand %p127, %p128
    %p130 = pneg %p129
    // Predicated region
    $region9: #{_forward.4} parent=5 // pred_check
      _
    $region10: #{_forward.4} parent=5 // pred_check_branch
      %132 = sbr.rel (%p129) target = $region12
    $region11: #{_forward.4} parent=5 // pred_region
      %s133 = ssub.s32 %s9, 1
      // Predicated region
      $region13: #{_forward.4} parent=11 // pred_check
        %p134 = pneg %p70
      $region14: #{_forward.4} parent=11 // pred_check_branch
        %136 = sbr.rel (%p134) target = $region16
      $region15: #{_forward.4} parent=11 // pred_region
        _
      $region16: #{_forward.4} parent=11 // pred_fallthru
        _
      // Predicated region
      $region17: #{_forward.4} parent=11 // pred_check
        %p137 = pneg %p91
      $region18: #{_forward.4} parent=11 // pred_check_branch
        %139 = sbr.rel (%p137) target = $region20
      $region19: #{_forward.4} parent=11 // pred_region
        _
      $region20: #{_forward.4} parent=11 // pred_fallthru
        _
    $region12: #{_forward.4} parent=5 // pred_fallthru
      _
    %p140 = scmp.lt.s32.totalorder %s9, 8
    // Predicated region
    $region21: #{_forward.4} parent=5 // pred_check
      %p141 = pneg %p140
    $region22: #{_forward.4} parent=5 // pred_check_branch
      %143 = sbr.rel (%p141) target = $region24
    $region23: #{_forward.4} parent=5 // pred_region
      // Predicated region
      $region25: #{_forward.4} parent=23 // pred_check
        %p144 = pneg %p43
      $region26: #{_forward.4} parent=23 // pred_check_branch
        %146 = sbr.rel (%p144) target = $region28
      $region27: #{_forward.4} parent=23 // pred_region
        %s147 = smul.u32 8, %s17
        %p148 = scmp.lt.s32.totalorder %s16, 1
        %s149 = scalar_select %p148, %s16, 1
        %p150 = scmp.lt.s32.totalorder %s147, 31
        %s151 = scalar_select %p150, %s147, 31
        %s152 = smul.addr %s149, 32
        %s153 = sadd.s32 %s151, %s152
        %s154 = smul.addr %s153, 4
        %s155 = scalar_lea.vmem %s0, %s154
        %s156 = smul.u32 8, %s17
      $region28: #{_forward.4} parent=23 // pred_fallthru
        _
    $region24: #{_forward.4} parent=5 // pred_fallthru
      _
    %p157 = scmp.le.s32.totalorder 1, %s9
    %p158 = scmp.lt.s32.totalorder %s9, 9
    %p159 = pnand %p157, %p158
    %p160 = pneg %p159
    // Predicated region
    $region29: #{_forward.4} parent=5 // pred_check
      _
    $region30: #{_forward.4} parent=5 // pred_check_branch
      %162 = sbr.rel (%p159) target = $region32
    $region31: #{_forward.4} parent=5 // pred_region
      %s163 = ssub.s32 %s9, 1
      %s164 = smul.u32 8, %s19
      %p165 = scmp.lt.s32.totalorder %s18, 1
      %s166 = scalar_select %p165, %s18, 1
      %p167 = scmp.lt.s32.totalorder %s164, 31
      %s168 = scalar_select %p167, %s164, 31
      %s169 = smul.addr %s166, 32
      %s170 = sadd.s32 %s168, %s169
      %s171 = smul.addr %s170, 4
      %s172 = scalar_lea.vmem %s0, %s171
      %p173 = pneg %p49
      %p174 = pneg %p46
      %p175 = pneg %p70
      %p176 = pneg %p67
      %p177 = pneg %p91
      %p178 = pneg %p88
      %p179 = pneg %p119
      %p180 = pneg %p116
      %s181 = smul.u32 8, %s19
      %p182 = scmp.lt.s32.totalorder %s18, 1
      %s183 = scalar_select %p182, %s18, 1
      %p184 = scmp.lt.s32.totalorder %s181, 31
      %s185 = scalar_select %p184, %s181, 31
      %s186 = smul.addr %s183, 32
      %s187 = sadd.s32 %s185, %s186
      %s188 = smul.addr %s187, 8
      %s189 = scalar_lea.vmem %s3, %s188
      %s190 = smul.u32 8, %s19
      %p191 = scmp.lt.s32.totalorder %s18, 1
      %s192 = scalar_select %p191, %s18, 1
      %p193 = scmp.lt.s32.totalorder %s190, 31
      %s194 = scalar_select %p193, %s190, 31
      %s195 = smul.addr %s192, 32
      %s196 = sadd.s32 %s194, %s195
      %s197 = smul.addr %s196, 4
      %s198 = scalar_lea.vmem %s0, %s197
      %s199 = smul.u32 8, %s19
      %s200 = smul.u32 8, %s19
      %p201 = scmp.lt.s32.totalorder %s18, 1
      %s202 = scalar_select %p201, %s18, 1
      %p203 = scmp.lt.s32.totalorder %s200, 31
      %s204 = scalar_select %p203, %s200, 31
      %s205 = smul.addr %s202, 32
      %s206 = sadd.s32 %s204, %s205
      %s207 = smul.addr %s206, 8
      %s208 = scalar_lea.vmem %s3, %s207
      %s209 = smul.u32 8, %s19
      %v211 = vld [vmem:[%s198] sm:$0xf]
      %v212 = vld [vmem:[%s198 + $0x4] sm:$0xf]
      %v213 = vld [vmem:[%s198 + $0x8] sm:$0xf]
      %v214 = vld [vmem:[%s198 + $0xc] sm:$0xf]
      %v215 = vld [vmem:[%s198 + $0x10] sm:$0xf]
      %v216 = vld [vmem:[%s198 + $0x14] sm:$0xf]
      %v217 = vld [vmem:[%s198 + $0x18] sm:$0xf]
      %v218 = vld [vmem:[%s198 + $0x1c] sm:$0xf]
      %v219 = vld [vmem:[%s1] sm:$0xf]
      %v220 = vld [vmem:[%s1 + $0x4] sm:$0xf]
      %v221 = vld [vmem:[%s1 + $0x8] sm:$0xf]
      %v222 = vld [vmem:[%s1 + $0xc] sm:$0x3]
      %v223 = vld [vmem:[%s2] sm:$0x1]
      %v225 = vlaneseq
      %v226 = vshrl.u32 %v225, 7
      %v227 = vsub.s32 0, %v226
      %v228 = vrot.slane %v223, %v227
      %v238 = vunpack.c.l.b16 %v211
      %v239 = vunpack.c.l.b16 %v212
      %v240 = vunpack.c.l.b16 %v213
      %v241 = vunpack.c.l.b16 %v214
      %v242 = vunpack.c.l.b16 %v215
      %v243 = vunpack.c.l.b16 %v216
      %v244 = vunpack.c.l.b16 %v217
      %v245 = vunpack.c.l.b16 %v218
      %v246 = vpack.c.b16 %v239, %v238
      %v247 = vpack.c.b16 %v241, %v240
      %v248 = vpack.c.b16 %v243, %v242
      %v249 = vpack.c.b16 %v245, %v244
      %v254 = vunpack.c.l.b16 %v219
      %v255 = vunpack.c.l.b16 %v220
      %v256 = vunpack.c.l.b16 %v221
      %v257 = vunpack.c.l.b16 %v222
      %v258 = vpack.c.b16 %v255, %v254
      %v259 = vpack.c.b16 %v257, %v256
      %vm261 = vcmask 220160
      %v263 = vsel %vm261, %v246, 0
      %v266 = vsel %vm261, %v247, 0
      %v269 = vsel %vm261, %v248, 0
      %v272 = vsel %vm261, %v249, 0
      %vm274 = vcmask 1044480
      %vm275 = vcmask 1045504
      %v276 = vsel %vm274, 4294967295, 65535
      %v277 = vsel %vm275, %v276, 0
      %v279 = vand.u32 %v259, %v277
      %281 = vmatprep.subr.bf16.mxu0 0
      %282 = vmatpush1.bf16.msra.mxu0 0
      %283 = vmatprep.subr.bf16.mxu0 0
      %284 = vmatpush1.bf16.msra.mxu0 0
      %285 = vmatprep.subr.bf16.mxu0 0
      %286 = vmatpush1.bf16.msra.mxu0 0
      %287 = vmatprep.subr.bf16.mxu0 0
      %288 = vmatpush1.bf16.msra.mxu0 0
      %289 = vmatprep.subr.bf16.mxu0 0
      %290 = vmatpush1.bf16.msra.mxu0 0
      %291 = vmatprep.subr.bf16.mxu0 0
      %292 = vmatpush1.bf16.msra.mxu0 0
      %293 = vmatprep.subr.bf16.mxu0 0
      %294 = vmatpush1.bf16.msra.mxu0 %v279
      %295 = vmatprep.subr.bf16.mxu0 0
      %296 = vmatpush1.bf16.msra.mxu0 %v258
      %297 = vmatprep.subr.bf16.mxu0 0
      %298 = vmatpush2.bf16.msra.mxu0 0
      %299 = vmatprep.subr.bf16.mxu0 0
      %300 = vmatpush2.bf16.msra.mxu0 0
      %301 = vmatprep.subr.bf16.mxu0 0
      %302 = vmatpush2.bf16.msra.mxu0 0
      %303 = vmatprep.subr.bf16.mxu0 0
      %304 = vmatpush2.bf16.msra.mxu0 0
      %305 = vmatprep.subr.bf16.mxu0 0
      %306 = vmatpush2.bf16.msra.mxu0 0
      %307 = vmatprep.subr.bf16.mxu0 0
      %308 = vmatpush2.bf16.msra.mxu0 0
      %309 = vmatprep.subr.bf16.mxu0 0
      %310 = vmatpush2.bf16.msra.mxu0 0
      %311 = vmatprep.subr.bf16.mxu0 0
      %312 = vmatpush2.bf16.msra.mxu0 0
      %313 = vmatprep.mubr.bf16.mxu0 0
      %314 = vmatmul.mubr.bf16.gmra.mxu0 %v263
      %v315 = vpop.f32.mrf.mxu0
      %v316 = vadd.f32 %v228, %v315
      %v317 = vpop.f32.mrf.mxu0
      %v318 = vpop.f32.mrf.mxu0
      %v319 = vadd.f32 %v228, %v318
      %v320 = vpop.f32.mrf.mxu0
      %321 = vmatprep.mubr.bf16.mxu0 0
      %322 = vmatmul.mubr.bf16.gmra.mxu0 %v266
      %v323 = vpop.f32.mrf.mxu0
      %v324 = vadd.f32 %v228, %v323
      %v325 = vpop.f32.mrf.mxu0
      %v326 = vpop.f32.mrf.mxu0
      %v327 = vadd.f32 %v228, %v326
      %v328 = vpop.f32.mrf.mxu0
      %329 = vmatprep.mubr.bf16.mxu0 0
      %330 = vmatmul.mubr.bf16.gmra.mxu0 %v269
      %v331 = vpop.f32.mrf.mxu0
      %v332 = vadd.f32 %v228, %v331
      %v333 = vpop.f32.mrf.mxu0
      %v334 = vpop.f32.mrf.mxu0
      %v335 = vadd.f32 %v228, %v334
      %v336 = vpop.f32.mrf.mxu0
      %337 = vmatprep.mubr.bf16.mxu0 0
      %338 = vmatmul.mubr.bf16.gmra.mxu0 %v272
      %v339 = vpop.f32.mrf.mxu0
      %v340 = vadd.f32 %v228, %v339
      %v341 = vpop.f32.mrf.mxu0
      %v342 = vpop.f32.mrf.mxu0
      %v343 = vadd.f32 %v228, %v342
      %v344 = vpop.f32.mrf.mxu0
      %345 = vdwg.mxu0
      %v346 = vmax.f32 %v316, 0.0
      %v347 = vmax.f32 %v319, 0.0
      %v348 = vmax.f32 %v324, 0.0
      %v349 = vmax.f32 %v327, 0.0
      %v350 = vmax.f32 %v332, 0.0
      %v351 = vmax.f32 %v335, 0.0
      %v352 = vmax.f32 %v340, 0.0
      %v353 = vmax.f32 %v343, 0.0
      %vm354 = vcmask 130048
      %355 = vst.msk [vmem:[%s208] sm:$0xff] %vm354, %v346
      %356 = vst.msk [vmem:[%s208 + $0x8] sm:$0xff] %vm354, %v347
      %357 = vst.msk [vmem:[%s208 + $0x10] sm:$0xff] %vm354, %v348
      %358 = vst.msk [vmem:[%s208 + $0x18] sm:$0xff] %vm354, %v349
      %359 = vst.msk [vmem:[%s208 + $0x20] sm:$0xff] %vm354, %v350
      %360 = vst.msk [vmem:[%s208 + $0x28] sm:$0xff] %vm354, %v351
      %361 = vst.msk [vmem:[%s208 + $0x30] sm:$0xff] %vm354, %v352
      %362 = vst.msk [vmem:[%s208 + $0x38] sm:$0xff] %vm354, %v353
      %s363 = smul.u32 8, %s19
      %p364 = scmp.lt.s32.totalorder %s18, 1
      %s365 = scalar_select %p364, %s18, 1
      %p366 = scmp.lt.s32.totalorder %s363, 31
      %s367 = scalar_select %p366, %s363, 31
      %s368 = smul.addr %s365, 32
      %s369 = sadd.s32 %s367, %s368
      %s370 = smul.addr %s369, 8
      %s371 = scalar_lea.vmem %s3, %s370
      // Predicated region
      $region33: #{_forward.4} parent=31 // pred_check
        %p372 = pneg %p116
      $region34: #{_forward.4} parent=31 // pred_check_branch
        %374 = sbr.rel (%p372) target = $region36
      $region35: #{_forward.4} parent=31 // pred_region
        %s375 = smul.u32 8, %s19
      $region36: #{_forward.4} parent=31 // pred_fallthru
        _
    $region32: #{_forward.4} parent=5 // pred_fallthru
      _
    %p376 = scmp.le.s32.totalorder 2, %s9
    // Predicated region
    $region37: #{_forward.4} parent=5 // pred_check
      %p377 = pneg %p376
    $region38: #{_forward.4} parent=5 // pred_check_branch
      %379 = sbr.rel (%p377) target = $region40
    $region39: #{_forward.4} parent=5 // pred_region
      %s380 = ssub.s32 %s9, 2
      // Predicated region
      $region41: #{_forward.4} parent=39 // pred_check
        %p381 = pneg %p122
      $region42: #{_forward.4} parent=39 // pred_check_branch
        %383 = sbr.rel (%p381) target = $region44
      $region43: #{_forward.4} parent=39 // pred_region
        %s384 = smul.u32 8, %s21
        %p385 = scmp.lt.s32.totalorder %s20, 1
        %s386 = scalar_select %p385, %s20, 1
        %p387 = scmp.lt.s32.totalorder %s384, 31
        %s388 = scalar_select %p387, %s384, 31
        %s389 = smul.addr %s386, 32
        %s390 = sadd.s32 %s388, %s389
        %s391 = smul.addr %s390, 8
        %s392 = scalar_lea.vmem %s3, %s391
      $region44: #{_forward.4} parent=39 // pred_fallthru
        _
    $region40: #{_forward.4} parent=5 // pred_fallthru
      _
  $region6: #{_forward.4} parent=0 // loop_footer
    %s13 = sadd.s32 1, %s9
  $region7: #{_forward.4} parent=0 // loop_footer_branch
    %8 = sbr.rel target = $region3
  $region8: #{_forward.4} parent=0 // loop_exit
    _

// kernel: _forward.5
$region0: #{_forward.5}
  #allocation0 [shape = 'u32[]', space=smem, size = 0x4, offset = 0x4, fixed_abs, tag = 'smem constant byte address 0x4 - core index']
  #allocation1 [shape = 'u32[144,128]{1,0:T(1,128)}', space=vmem, size = 0x12000, scoped, tag = 'internal scratch']
  %s0 = inlined_call_operand.vmem [shape: bf16[2,64,144], index: 0, kind: input, shape index: {}]
  %s1 = inlined_call_operand.vmem [shape: bf16[144,32], index: 1, kind: input, shape index: {}]
  %s2 = inlined_call_operand.vmem [shape: f32[1,32], index: 2, kind: input, shape index: {}]
  %s3 = inlined_call_operand.vmem [shape: f32[2,64,32], index: 3, kind: output, shape index: {}]
  %s4 = sld [smem:[#allocation0]]
  $region45: #{_forward.5} parent=0
    _
  %s6 = ssub.s32 1, %s4
  %s7 = scalar_select 0, %s6, %s4
  loop: start=0, step=1, limit=10
  $region2: #{_forward.5} parent=0 // loop_pre_header
    _
  $region3: #{_forward.5} parent=0 // loop_header
    %s9 = sphi 0, %s13
    %p10 = scmp.ge.s32.totalorder %s9, 10
    %s16 = sphi 0, %s28
    %s17 = sphi 0, %s24
    %s18 = sphi 0, %s16
    %s19 = sphi 0, %s17
    %s20 = sphi 0, %s18
    %s21 = sphi 0, %s19
    %s33 = sphi 0, %s35
    %s36 = sphi 0, %s33
    %s37 = sphi 0, %s36
    %s53 = sphi 0, %s37
    %s57 = sphi 0, %s57
    %s59 = sphi 0, %s57
    %s60 = sphi 0, %s59
    %s74 = sphi 0, %s60
    %s78 = sphi 0, %s78
    %s80 = sphi 0, %s78
    %s81 = sphi 0, %s80
    %s95 = sphi 0, %s81
    %s103 = sphi 0, %s105
    %s106 = sphi 0, %s103
    %s107 = sphi 0, %s106
    %s123 = sphi 0, %s107
  $region4: #{_forward.5} parent=0 // loop_header_branch
    %12 = sbr.rel (%p10) target = $region8
  $region5: #{_forward.5} parent=0 // loop_body
    %s14 = ssub.s32 %s9, 1
    %s15 = ssub.s32 %s9, 2
    %s22 = sadd.s32 1, %s17
    %p23 = scmp.ge.s32.totalorder %s22, 4
    %s24 = scalar_select %p23, 0, %s22
    %s25 = sadd.s32 1, %s16
    %s26 = scalar_select %p23, %s25, %s16
    %p27 = scmp.ge.s32.totalorder %s26, 2
    %s28 = scalar_select %p27, 0, %s26
    %s29 = ssub.s32 %s16, %s28
    %s30 = ssub.s32 %s17, %s24
    %s31 = sor.u32 %s29, %s30
    %p32 = scmp.eq.s32.totalorder %s31, 0
    %s34 = sadd.s32 %s33, 1
    %s35 = scalar_select %p32, %s33, %s34
    %p38 = pneg %p32
    %p39 = scmp.eq.s32.totalorder %s9, 7
    %p40 = por %p38, %p39
    %p41 = scmp.ne.s32.totalorder %s33, %s36
    %p42 = scmp.eq.s32.totalorder %s9, 0
    %p43 = por %p41, %p42
    %p44 = scmp.ne.s32.totalorder %s33, %s36
    %p45 = scmp.eq.s32.totalorder %s14, 7
    %p46 = por %p44, %p45
    %p47 = scmp.ne.s32.totalorder %s36, %s37
    %p48 = scmp.eq.s32.totalorder %s14, 0
    %p49 = por %p47, %p48
    %p50 = scmp.ne.s32.totalorder %s36, %s37
    %p51 = scmp.eq.s32.totalorder %s15, 7
    %p52 = por %p50, %p51
    %p54 = scmp.ne.s32.totalorder %s37, %s53
    %p55 = scmp.eq.s32.totalorder %s15, 0
    %p56 = por %p54, %p55
    %s58 = sadd.s32 %s57, 1
    %p61 = scmp.eq.s32.totalorder %s9, 7
    %p62 = scmp.ne.s32.totalorder %s57, %s59
    %p63 = scmp.eq.s32.totalorder %s9, 0
    %p64 = por %p62, %p63
    %p65 = scmp.ne.s32.totalorder %s57, %s59
    %p66 = scmp.eq.s32.totalorder %s14, 7
    %p67 = por %p65, %p66
    %p68 = scmp.ne.s32.totalorder %s59, %s60
    %p69 = scmp.eq.s32.totalorder %s14, 0
    %p70 = por %p68, %p69
    %p71 = scmp.ne.s32.totalorder %s59, %s60
    %p72 = scmp.eq.s32.totalorder %s15, 7
    %p73 = por %p71, %p72
    %p75 = scmp.ne.s32.totalorder %s60, %s74
    %p76 = scmp.eq.s32.totalorder %s15, 0
    %p77 = por %p75, %p76
    %s79 = sadd.s32 %s78, 1
    %p82 = scmp.eq.s32.totalorder %s9, 7
    %p83 = scmp.ne.s32.totalorder %s78, %s80
    %p84 = scmp.eq.s32.totalorder %s9, 0
    %p85 = por %p83, %p84
    %p86 = scmp.ne.s32.totalorder %s78, %s80
    %p87 = scmp.eq.s32.totalorder %s14, 7
    %p88 = por %p86, %p87
    %p89 = scmp.ne.s32.totalorder %s80, %s81
    %p90 = scmp.eq.s32.totalorder %s14, 0
    %p91 = por %p89, %p90
    %p92 = scmp.ne.s32.totalorder %s80, %s81
    %p93 = scmp.eq.s32.totalorder %s15, 7
    %p94 = por %p92, %p93
    %p96 = scmp.ne.s32.totalorder %s81, %s95
    %p97 = scmp.eq.s32.totalorder %s15, 0
    %p98 = por %p96, %p97
    %s99 = ssub.s32 %s16, %s28
    %s100 = ssub.s32 %s17, %s24
    %s101 = sor.u32 %s99, %s100
    %p102 = scmp.eq.s32.totalorder %s101, 0
    %s104 = sadd.s32 %s103, 1
    %s105 = scalar_select %p102, %s103, %s104
    %p108 = pneg %p102
    %p109 = scmp.eq.s32.totalorder %s9, 7
    %p110 = por %p108, %p109
    %p111 = scmp.ne.s32.totalorder %s103, %s106
    %p112 = scmp.eq.s32.totalorder %s9, 0
    %p113 = por %p111, %p112
    %p114 = scmp.ne.s32.totalorder %s103, %s106
    %p115 = scmp.eq.s32.totalorder %s14, 7
    %p116 = por %p114, %p115
    %p117 = scmp.ne.s32.totalorder %s106, %s107
    %p118 = scmp.eq.s32.totalorder %s14, 0
    %p119 = por %p117, %p118
    %p120 = scmp.ne.s32.totalorder %s106, %s107
    %p121 = scmp.eq.s32.totalorder %s15, 7
    %p122 = por %p120, %p121
    %p124 = scmp.ne.s32.totalorder %s107, %s123
    %p125 = scmp.eq.s32.totalorder %s15, 0
    %p126 = por %p124, %p125
    %p127 = scmp.le.s32.totalorder 1, %s9
    %p128 = scmp.lt.s32.totalorder %s9, 9
    %p129 = pnand %p127, %p128
    %p130 = pneg %p129
    // Predicated region
    $region9: #{_forward.5} parent=5 // pred_check
      _
    $region10: #{_forward.5} parent=5 // pred_check_branch
      %132 = sbr.rel (%p129) target = $region12
    $region11: #{_forward.5} parent=5 // pred_region
      %s133 = ssub.s32 %s9, 1
      // Predicated region
      $region13: #{_forward.5} parent=11 // pred_check
        %p134 = pneg %p70
      $region14: #{_forward.5} parent=11 // pred_check_branch
        %136 = sbr.rel (%p134) target = $region16
      $region15: #{_forward.5} parent=11 // pred_region
        _
      $region16: #{_forward.5} parent=11 // pred_fallthru
        _
      // Predicated region
      $region17: #{_forward.5} parent=11 // pred_check
        %p137 = pneg %p91
      $region18: #{_forward.5} parent=11 // pred_check_branch
        %139 = sbr.rel (%p137) target = $region20
      $region19: #{_forward.5} parent=11 // pred_region
        _
      $region20: #{_forward.5} parent=11 // pred_fallthru
        _
    $region12: #{_forward.5} parent=5 // pred_fallthru
      _
    %p140 = scmp.lt.s32.totalorder %s9, 8
    // Predicated region
    $region21: #{_forward.5} parent=5 // pred_check
      %p141 = pneg %p140
    $region22: #{_forward.5} parent=5 // pred_check_branch
      %143 = sbr.rel (%p141) target = $region24
    $region23: #{_forward.5} parent=5 // pred_region
      // Predicated region
      $region25: #{_forward.5} parent=23 // pred_check
        %p144 = pneg %p43
      $region26: #{_forward.5} parent=23 // pred_check_branch
        %146 = sbr.rel (%p144) target = $region28
      $region27: #{_forward.5} parent=23 // pred_region
        %s147 = smul.u32 2, %s17
        %p148 = scmp.lt.s32.totalorder %s16, 1
        %s149 = scalar_select %p148, %s16, 1
        %p150 = scmp.lt.s32.totalorder %s147, 7
        %s151 = scalar_select %p150, %s147, 7
        %s152 = smul.addr %s151, 2
        %s153 = smul.addr %s149, 16
        %s154 = sadd.s32 %s152, %s153
        %s155 = smul.addr %s154, 4
        %s156 = scalar_lea.vmem %s0, %s155
        %s157 = smul.u32 2, %s17
      $region28: #{_forward.5} parent=23 // pred_fallthru
        _
    $region24: #{_forward.5} parent=5 // pred_fallthru
      _
    %p158 = scmp.le.s32.totalorder 1, %s9
    %p159 = scmp.lt.s32.totalorder %s9, 9
    %p160 = pnand %p158, %p159
    %p161 = pneg %p160
    // Predicated region
    $region29: #{_forward.5} parent=5 // pred_check
      _
    $region30: #{_forward.5} parent=5 // pred_check_branch
      %163 = sbr.rel (%p160) target = $region32
    $region31: #{_forward.5} parent=5 // pred_region
      %s164 = ssub.s32 %s9, 1
      %s165 = smul.u32 2, %s19
      %p166 = scmp.lt.s32.totalorder %s18, 1
      %s167 = scalar_select %p166, %s18, 1
      %p168 = scmp.lt.s32.totalorder %s165, 7
      %s169 = scalar_select %p168, %s165, 7
      %s170 = smul.addr %s169, 2
      %s171 = smul.addr %s167, 16
      %s172 = sadd.s32 %s170, %s171
      %s173 = smul.addr %s172, 4
      %s174 = scalar_lea.vmem %s0, %s173
      %p175 = pneg %p49
      %p176 = pneg %p46
      %p177 = pneg %p70
      %p178 = pneg %p67
      %p179 = pneg %p91
      %p180 = pneg %p88
      %p181 = pneg %p119
      %p182 = pneg %p116
      %s183 = smul.u32 2, %s19
      %p184 = scmp.lt.s32.totalorder %s18, 1
      %s185 = scalar_select %p184, %s18, 1
      %p186 = scmp.lt.s32.totalorder %s183, 7
      %s187 = scalar_select %p186, %s183, 7
      %s188 = smul.addr %s185, 8
      %s189 = sadd.s32 %s187, %s188
      %s190 = smul.addr %s189, 8
      %s191 = scalar_lea.vmem %s3, %s190
      %s192 = smul.u32 2, %s19
      %p193 = scmp.lt.s32.totalorder %s18, 1
      %s194 = scalar_select %p193, %s18, 1
      %p195 = scmp.lt.s32.totalorder %s192, 7
      %s196 = scalar_select %p195, %s192, 7
      %s197 = smul.addr %s196, 2
      %s198 = smul.addr %s194, 16
      %s199 = sadd.s32 %s197, %s198
      %s200 = smul.addr %s199, 4
      %s201 = scalar_lea.vmem %s0, %s200
      %s202 = smul.u32 2, %s19
      %s203 = smul.u32 2, %s19
      %p204 = scmp.lt.s32.totalorder %s18, 1
      %s205 = scalar_select %p204, %s18, 1
      %p206 = scmp.lt.s32.totalorder %s203, 7
      %s207 = scalar_select %p206, %s203, 7
      %s208 = smul.addr %s205, 8
      %s209 = sadd.s32 %s207, %s208
      %s210 = smul.addr %s209, 8
      %s211 = scalar_lea.vmem %s3, %s210
      %s212 = smul.u32 2, %s19
      %v214 = vld [vmem:[%s201] sm:$0xff]
      %v215 = vld [vmem:[%s201 + $0x8] sm:$0xff]
      %v216 = vld [vmem:[%s1] sm:$0xf]
      %v217 = vld [vmem:[%s1 + $0x4] sm:$0xf]
      %v218 = vld [vmem:[%s1 + $0x8] sm:$0xf]
      %v219 = vld [vmem:[%s1 + $0xc] sm:$0xf]
      %v220 = vld [vmem:[%s1 + $0x10] sm:$0xf]
      %v221 = vld [vmem:[%s1 + $0x14] sm:$0xf]
      %v222 = vld [vmem:[%s1 + $0x18] sm:$0xf]
      %v223 = vld [vmem:[%s1 + $0x1c] sm:$0xf]
      %v224 = vld [vmem:[%s1 + $0x20] sm:$0xf]
      %v225 = vld [vmem:[%s1 + $0x24] sm:$0xf]
      %v226 = vld [vmem:[%s1 + $0x28] sm:$0xf]
      %v227 = vld [vmem:[%s1 + $0x2c] sm:$0xf]
      %v228 = vld [vmem:[%s1 + $0x30] sm:$0xf]
      %v229 = vld [vmem:[%s1 + $0x34] sm:$0xf]
      %v230 = vld [vmem:[%s1 + $0x38] sm:$0xf]
      %v231 = vld [vmem:[%s1 + $0x3c] sm:$0xf]
      %v232 = vld [vmem:[%s1 + $0x40] sm:$0xf]
      %v233 = vld [vmem:[%s1 + $0x44] sm:$0xf]
      %v234 = vld [vmem:[%s2] sm:$0x1]
      %v236 = vlaneseq
      %v237 = vshrl.u32 %v236, 7
      %v238 = vsub.s32 0, %v237
      %v239 = vrot.slane %v234, %v238
      %v243 = vunpack.c.l.b16 %v214
      %v244 = vunpack.c.h.b16 %v214
      %v245 = vunpack.c.l.b16 %v215
      %v246 = vunpack.c.h.b16 %v215
      %v247 = vpack.c.b16 %v245, %v243
      %v248 = vpack.c.b16 %v246, %v244
      %v268 = vunpack.c.l.b16 %v216
      %v269 = vunpack.c.l.b16 %v217
      %v270 = vunpack.c.l.b16 %v218
      %v271 = vunpack.c.l.b16 %v219
      %v272 = vunpack.c.l.b16 %v220
      %v273 = vunpack.c.l.b16 %v221
      %v274 = vunpack.c.l.b16 %v222
      %v275 = vunpack.c.l.b16 %v223
      %v276 = vunpack.c.l.b16 %v224
      %v277 = vunpack.c.l.b16 %v225
      %v278 = vunpack.c.l.b16 %v226
      %v279 = vunpack.c.l.b16 %v227
      %v280 = vunpack.c.l.b16 %v228
      %v281 = vunpack.c.l.b16 %v229
      %v282 = vunpack.c.l.b16 %v230
      %v283 = vunpack.c.l.b16 %v231
      %v284 = vunpack.c.l.b16 %v232
      %v285 = vunpack.c.l.b16 %v233
      %v286 = vpack.c.b16 %v269, %v268
      %v287 = vpack.c.b16 %v271, %v270
      %v288 = vpack.c.b16 %v273, %v272
      %v289 = vpack.c.b16 %v275, %v274
      %v290 = vpack.c.b16 %v277, %v276
      %v291 = vpack.c.b16 %v279, %v278
      %v292 = vpack.c.b16 %v281, %v280
      %v293 = vpack.c.b16 %v283, %v282
      %v294 = vpack.c.b16 %v285, %v284
      %vm304 = vcmask 130048
      %v306 = vsel %vm304, %v248, 0
      %308 = vmatprep.subr.bf16.mxu0 0
      %309 = vmatpush1.bf16.msra.mxu0 %v293
      %310 = vmatprep.subr.bf16.mxu0 0
      %311 = vmatpush1.bf16.msra.mxu0 %v292
      %312 = vmatprep.subr.bf16.mxu0 0
      %313 = vmatpush1.bf16.msra.mxu0 %v291
      %314 = vmatprep.subr.bf16.mxu0 0
      %315 = vmatpush1.bf16.msra.mxu0 %v290
      %316 = vmatprep.subr.bf16.mxu0 0
      %317 = vmatpush1.bf16.msra.mxu0 %v289
      %318 = vmatprep.subr.bf16.mxu0 0
      %319 = vmatpush1.bf16.msra.mxu0 %v288
      %320 = vmatprep.subr.bf16.mxu0 0
      %321 = vmatpush1.bf16.msra.mxu0 %v287
      %322 = vmatprep.subr.bf16.mxu0 0
      %323 = vmatpush1.bf16.msra.mxu0 %v286
      %324 = vmatprep.subr.bf16.mxu0 0
      %325 = vmatpush2.bf16.msra.mxu0 0
      %326 = vmatprep.subr.bf16.mxu0 0
      %327 = vmatpush2.bf16.msra.mxu0 0
      %328 = vmatprep.subr.bf16.mxu0 0
      %329 = vmatpush2.bf16.msra.mxu0 0
      %330 = vmatprep.subr.bf16.mxu0 0
      %331 = vmatpush2.bf16.msra.mxu0 0
      %332 = vmatprep.subr.bf16.mxu0 0
      %333 = vmatpush2.bf16.msra.mxu0 0
      %334 = vmatprep.subr.bf16.mxu0 0
      %335 = vmatpush2.bf16.msra.mxu0 0
      %336 = vmatprep.subr.bf16.mxu0 0
      %337 = vmatpush2.bf16.msra.mxu0 0
      %338 = vmatprep.subr.bf16.mxu0 0
      %339 = vmatpush2.bf16.msra.mxu0 %v294
      %340 = vmatprep.mubr.bf16.mxu0 %v306
      %341 = vmatmul.mubr.bf16.gmra.mxu0 %v247
      %v342 = vpop.f32.mrf.mxu0
      %v343 = vadd.f32 %v239, %v342
      %v344 = vpop.f32.mrf.mxu0
      %v345 = vpop.f32.mrf.mxu0
      %v346 = vadd.f32 %v239, %v345
      %v347 = vpop.f32.mrf.mxu0
      %348 = vdwg.mxu0
      %v349 = vmax.f32 %v343, 0.0
      %v350 = vmax.f32 %v346, 0.0
      %vm351 = vcmask 261120
      %352 = vst.msk [vmem:[%s211] sm:$0xff] %vm351, %v349
      %353 = vst.msk [vmem:[%s211 + $0x8] sm:$0xff] %vm351, %v350
      %s354 = smul.u32 2, %s19
      %p355 = scmp.lt.s32.totalorder %s18, 1
      %s356 = scalar_select %p355, %s18, 1
      %p357 = scmp.lt.s32.totalorder %s354, 7
      %s358 = scalar_select %p357, %s354, 7
      %s359 = smul.addr %s356, 8
      %s360 = sadd.s32 %s358, %s359
      %s361 = smul.addr %s360, 8
      %s362 = scalar_lea.vmem %s3, %s361
      // Predicated region
      $region33: #{_forward.5} parent=31 // pred_check
        %p363 = pneg %p116
      $region34: #{_forward.5} parent=31 // pred_check_branch
        %365 = sbr.rel (%p363) target = $region36
      $region35: #{_forward.5} parent=31 // pred_region
        %s366 = smul.u32 2, %s19
      $region36: #{_forward.5} parent=31 // pred_fallthru
        _
    $region32: #{_forward.5} parent=5 // pred_fallthru
      _
    %p367 = scmp.le.s32.totalorder 2, %s9
    // Predicated region
    $region37: #{_forward.5} parent=5 // pred_check
      %p368 = pneg %p367
    $region38: #{_forward.5} parent=5 // pred_check_branch
      %370 = sbr.rel (%p368) target = $region40
    $region39: #{_forward.5} parent=5 // pred_region
      %s371 = ssub.s32 %s9, 2
      // Predicated region
      $region41: #{_forward.5} parent=39 // pred_check
        %p372 = pneg %p122
      $region42: #{_forward.5} parent=39 // pred_check_branch
        %374 = sbr.rel (%p372) target = $region44
      $region43: #{_forward.5} parent=39 // pred_region
        %s375 = smul.u32 2, %s21
        %p376 = scmp.lt.s32.totalorder %s20, 1
        %s377 = scalar_select %p376, %s20, 1
        %p378 = scmp.lt.s32.totalorder %s375, 7
        %s379 = scalar_select %p378, %s375, 7
        %s380 = smul.addr %s377, 8
        %s381 = sadd.s32 %s379, %s380
        %s382 = smul.addr %s381, 8
        %s383 = scalar_lea.vmem %s3, %s382
      $region44: #{_forward.5} parent=39 // pred_fallthru
        _
    $region40: #{_forward.5} parent=5 // pred_fallthru
      _
  $region6: #{_forward.5} parent=0 // loop_footer
    %s13 = sadd.s32 1, %s9
  $region7: #{_forward.5} parent=0 // loop_footer_branch
    %8 = sbr.rel target = $region3
  $region8: #{_forward.5} parent=0 // loop_exit
    _

// kernel: _forward.6
$region0: #{_forward.6}
  #allocation0 [shape = 'u32[]', space=smem, size = 0x4, offset = 0x4, fixed_abs, tag = 'smem constant byte address 0x4 - core index']
  #allocation1 [shape = 'u32[144,128]{1,0:T(1,128)}', space=vmem, size = 0x12000, scoped, tag = 'internal scratch']
  %s0 = inlined_call_operand.vmem [shape: bf16[2,64,288], index: 0, kind: input, shape index: {}]
  %s1 = inlined_call_operand.vmem [shape: bf16[288,32], index: 1, kind: input, shape index: {}]
  %s2 = inlined_call_operand.vmem [shape: f32[1,32], index: 2, kind: input, shape index: {}]
  %s3 = inlined_call_operand.vmem [shape: bf16[32,16], index: 3, kind: input, shape index: {}]
  %s4 = inlined_call_operand.vmem [shape: f32[1,16], index: 4, kind: input, shape index: {}]
  %s5 = inlined_call_operand.vmem [shape: f32[2,64,16], index: 5, kind: output, shape index: {}]
  %s6 = sld [smem:[#allocation0]]
  $region53: #{_forward.6} parent=0
    _
  %s8 = ssub.s32 1, %s6
  %s9 = scalar_select 0, %s8, %s6
  loop: start=0, step=1, limit=10
  $region2: #{_forward.6} parent=0 // loop_pre_header
    _
  $region3: #{_forward.6} parent=0 // loop_header
    %s11 = sphi 0, %s15
    %p12 = scmp.ge.s32.totalorder %s11, 10
    %s18 = sphi 0, %s30
    %s19 = sphi 0, %s26
    %s20 = sphi 0, %s18
    %s21 = sphi 0, %s19
    %s22 = sphi 0, %s20
    %s23 = sphi 0, %s21
    %s35 = sphi 0, %s37
    %s38 = sphi 0, %s35
    %s39 = sphi 0, %s38
    %s55 = sphi 0, %s39
    %s59 = sphi 0, %s59
    %s61 = sphi 0, %s59
    %s62 = sphi 0, %s61
    %s76 = sphi 0, %s62
    %s80 = sphi 0, %s80
    %s82 = sphi 0, %s80
    %s83 = sphi 0, %s82
    %s97 = sphi 0, %s83
    %s101 = sphi 0, %s101
    %s103 = sphi 0, %s101
    %s104 = sphi 0, %s103
    %s118 = sphi 0, %s104
    %s122 = sphi 0, %s122
    %s124 = sphi 0, %s122
    %s125 = sphi 0, %s124
    %s139 = sphi 0, %s125
    %s147 = sphi 0, %s149
    %s150 = sphi 0, %s147
    %s151 = sphi 0, %s150
    %s167 = sphi 0, %s151
  $region4: #{_forward.6} parent=0 // loop_header_branch
    %14 = sbr.rel (%p12) target = $region8
  $region5: #{_forward.6} parent=0 // loop_body
    %s16 = ssub.s32 %s11, 1
    %s17 = ssub.s32 %s11, 2
    %s24 = sadd.s32 1, %s19
    %p25 = scmp.ge.s32.totalorder %s24, 4
    %s26 = scalar_select %p25, 0, %s24
    %s27 = sadd.s32 1, %s18
    %s28 = scalar_select %p25, %s27, %s18
    %p29 = scmp.ge.s32.totalorder %s28, 2
    %s30 = scalar_select %p29, 0, %s28
    %s31 = ssub.s32 %s18, %s30
    %s32 = ssub.s32 %s19, %s26
    %s33 = sor.u32 %s31, %s32
    %p34 = scmp.eq.s32.totalorder %s33, 0
    %s36 = sadd.s32 %s35, 1
    %s37 = scalar_select %p34, %s35, %s36
    %p40 = pneg %p34
    %p41 = scmp.eq.s32.totalorder %s11, 7
    %p42 = por %p40, %p41
    %p43 = scmp.ne.s32.totalorder %s35, %s38
    %p44 = scmp.eq.s32.totalorder %s11, 0
    %p45 = por %p43, %p44
    %p46 = scmp.ne.s32.totalorder %s35, %s38
    %p47 = scmp.eq.s32.totalorder %s16, 7
    %p48 = por %p46, %p47
    %p49 = scmp.ne.s32.totalorder %s38, %s39
    %p50 = scmp.eq.s32.totalorder %s16, 0
    %p51 = por %p49, %p50
    %p52 = scmp.ne.s32.totalorder %s38, %s39
    %p53 = scmp.eq.s32.totalorder %s17, 7
    %p54 = por %p52, %p53
    %p56 = scmp.ne.s32.totalorder %s39, %s55
    %p57 = scmp.eq.s32.totalorder %s17, 0
    %p58 = por %p56, %p57
    %s60 = sadd.s32 %s59, 1
    %p63 = scmp.eq.s32.totalorder %s11, 7
    %p64 = scmp.ne.s32.totalorder %s59, %s61
    %p65 = scmp.eq.s32.totalorder %s11, 0
    %p66 = por %p64, %p65
    %p67 = scmp.ne.s32.totalorder %s59, %s61
    %p68 = scmp.eq.s32.totalorder %s16, 7
    %p69 = por %p67, %p68
    %p70 = scmp.ne.s32.totalorder %s61, %s62
    %p71 = scmp.eq.s32.totalorder %s16, 0
    %p72 = por %p70, %p71
    %p73 = scmp.ne.s32.totalorder %s61, %s62
    %p74 = scmp.eq.s32.totalorder %s17, 7
    %p75 = por %p73, %p74
    %p77 = scmp.ne.s32.totalorder %s62, %s76
    %p78 = scmp.eq.s32.totalorder %s17, 0
    %p79 = por %p77, %p78
    %s81 = sadd.s32 %s80, 1
    %p84 = scmp.eq.s32.totalorder %s11, 7
    %p85 = scmp.ne.s32.totalorder %s80, %s82
    %p86 = scmp.eq.s32.totalorder %s11, 0
    %p87 = por %p85, %p86
    %p88 = scmp.ne.s32.totalorder %s80, %s82
    %p89 = scmp.eq.s32.totalorder %s16, 7
    %p90 = por %p88, %p89
    %p91 = scmp.ne.s32.totalorder %s82, %s83
    %p92 = scmp.eq.s32.totalorder %s16, 0
    %p93 = por %p91, %p92
    %p94 = scmp.ne.s32.totalorder %s82, %s83
    %p95 = scmp.eq.s32.totalorder %s17, 7
    %p96 = por %p94, %p95
    %p98 = scmp.ne.s32.totalorder %s83, %s97
    %p99 = scmp.eq.s32.totalorder %s17, 0
    %p100 = por %p98, %p99
    %s102 = sadd.s32 %s101, 1
    %p105 = scmp.eq.s32.totalorder %s11, 7
    %p106 = scmp.ne.s32.totalorder %s101, %s103
    %p107 = scmp.eq.s32.totalorder %s11, 0
    %p108 = por %p106, %p107
    %p109 = scmp.ne.s32.totalorder %s101, %s103
    %p110 = scmp.eq.s32.totalorder %s16, 7
    %p111 = por %p109, %p110
    %p112 = scmp.ne.s32.totalorder %s103, %s104
    %p113 = scmp.eq.s32.totalorder %s16, 0
    %p114 = por %p112, %p113
    %p115 = scmp.ne.s32.totalorder %s103, %s104
    %p116 = scmp.eq.s32.totalorder %s17, 7
    %p117 = por %p115, %p116
    %p119 = scmp.ne.s32.totalorder %s104, %s118
    %p120 = scmp.eq.s32.totalorder %s17, 0
    %p121 = por %p119, %p120
    %s123 = sadd.s32 %s122, 1
    %p126 = scmp.eq.s32.totalorder %s11, 7
    %p127 = scmp.ne.s32.totalorder %s122, %s124
    %p128 = scmp.eq.s32.totalorder %s11, 0
    %p129 = por %p127, %p128
    %p130 = scmp.ne.s32.totalorder %s122, %s124
    %p131 = scmp.eq.s32.totalorder %s16, 7
    %p132 = por %p130, %p131
    %p133 = scmp.ne.s32.totalorder %s124, %s125
    %p134 = scmp.eq.s32.totalorder %s16, 0
    %p135 = por %p133, %p134
    %p136 = scmp.ne.s32.totalorder %s124, %s125
    %p137 = scmp.eq.s32.totalorder %s17, 7
    %p138 = por %p136, %p137
    %p140 = scmp.ne.s32.totalorder %s125, %s139
    %p141 = scmp.eq.s32.totalorder %s17, 0
    %p142 = por %p140, %p141
    %s143 = ssub.s32 %s18, %s30
    %s144 = ssub.s32 %s19, %s26
    %s145 = sor.u32 %s143, %s144
    %p146 = scmp.eq.s32.totalorder %s145, 0
    %s148 = sadd.s32 %s147, 1
    %s149 = scalar_select %p146, %s147, %s148
    %p152 = pneg %p146
    %p153 = scmp.eq.s32.totalorder %s11, 7
    %p154 = por %p152, %p153
    %p155 = scmp.ne.s32.totalorder %s147, %s150
    %p156 = scmp.eq.s32.totalorder %s11, 0
    %p157 = por %p155, %p156
    %p158 = scmp.ne.s32.totalorder %s147, %s150
    %p159 = scmp.eq.s32.totalorder %s16, 7
    %p160 = por %p158, %p159
    %p161 = scmp.ne.s32.totalorder %s150, %s151
    %p162 = scmp.eq.s32.totalorder %s16, 0
    %p163 = por %p161, %p162
    %p164 = scmp.ne.s32.totalorder %s150, %s151
    %p165 = scmp.eq.s32.totalorder %s17, 7
    %p166 = por %p164, %p165
    %p168 = scmp.ne.s32.totalorder %s151, %s167
    %p169 = scmp.eq.s32.totalorder %s17, 0
    %p170 = por %p168, %p169
    %p171 = scmp.le.s32.totalorder 1, %s11
    %p172 = scmp.lt.s32.totalorder %s11, 9
    %p173 = pnand %p171, %p172
    %p174 = pneg %p173
    // Predicated region
    $region9: #{_forward.6} parent=5 // pred_check
      _
    $region10: #{_forward.6} parent=5 // pred_check_branch
      %176 = sbr.rel (%p173) target = $region12
    $region11: #{_forward.6} parent=5 // pred_region
      %s177 = ssub.s32 %s11, 1
      // Predicated region
      $region13: #{_forward.6} parent=11 // pred_check
        %p178 = pneg %p72
      $region14: #{_forward.6} parent=11 // pred_check_branch
        %180 = sbr.rel (%p178) target = $region16
      $region15: #{_forward.6} parent=11 // pred_region
        _
      $region16: #{_forward.6} parent=11 // pred_fallthru
        _
      // Predicated region
      $region17: #{_forward.6} parent=11 // pred_check
        %p181 = pneg %p93
      $region18: #{_forward.6} parent=11 // pred_check_branch
        %183 = sbr.rel (%p181) target = $region20
      $region19: #{_forward.6} parent=11 // pred_region
        _
      $region20: #{_forward.6} parent=11 // pred_fallthru
        _
      // Predicated region
      $region21: #{_forward.6} parent=11 // pred_check
        %p184 = pneg %p114
      $region22: #{_forward.6} parent=11 // pred_check_branch
        %186 = sbr.rel (%p184) target = $region24
      $region23: #{_forward.6} parent=11 // pred_region
        _
      $region24: #{_forward.6} parent=11 // pred_fallthru
        _
      // Predicated region
      $region25: #{_forward.6} parent=11 // pred_check
        %p187 = pneg %p135
      $region26: #{_forward.6} parent=11 // pred_check_branch
        %189 = sbr.rel (%p187) target = $region28
      $region27: #{_forward.6} parent=11 // pred_region
        _
      $region28: #{_forward.6} parent=11 // pred_fallthru
        _
    $region12: #{_forward.6} parent=5 // pred_fallthru
      _
    %p190 = scmp.lt.s32.totalorder %s11, 8
    // Predicated region
    $region29: #{_forward.6} parent=5 // pred_check
      %p191 = pneg %p190
    $region30: #{_forward.6} parent=5 // pred_check_branch
      %193 = sbr.rel (%p191) target = $region32
    $region31: #{_forward.6} parent=5 // pred_region
      // Predicated region
      $region33: #{_forward.6} parent=31 // pred_check
        %p194 = pneg %p45
      $region34: #{_forward.6} parent=31 // pred_check_branch
        %196 = sbr.rel (%p194) target = $region36
      $region35: #{_forward.6} parent=31 // pred_region
        %s197 = smul.u32 2, %s19
        %p198 = scmp.lt.s32.totalorder %s18, 1
        %s199 = scalar_select %p198, %s18, 1
        %p200 = scmp.lt.s32.totalorder %s197, 7
        %s201 = scalar_select %p200, %s197, 7
        %s202 = smul.addr %s201, 3
        %s203 = smul.addr %s199, 24
        %s204 = sadd.s32 %s202, %s203
        %s205 = smul.addr %s204, 4
        %s206 = scalar_lea.vmem %s0, %s205
        %s207 = smul.u32 2, %s19
      $region36: #{_forward.6} parent=31 // pred_fallthru
        _
    $region32: #{_forward.6} parent=5 // pred_fallthru
      _
    %p208 = scmp.le.s32.totalorder 1, %s11
    %p209 = scmp.lt.s32.totalorder %s11, 9
    %p210 = pnand %p208, %p209
    %p211 = pneg %p210
    // Predicated region
    $region37: #{_forward.6} parent=5 // pred_check
      _
    $region38: #{_forward.6} parent=5 // pred_check_branch
      %213 = sbr.rel (%p210) target = $region40
    $region39: #{_forward.6} parent=5 // pred_region
      %s214 = ssub.s32 %s11, 1
      %s215 = smul.u32 2, %s21
      %p216 = scmp.lt.s32.totalorder %s20, 1
      %s217 = scalar_select %p216, %s20, 1
      %p218 = scmp.lt.s32.totalorder %s215, 7
      %s219 = scalar_select %p218, %s215, 7
      %s220 = smul.addr %s219, 3
      %s221 = smul.addr %s217, 24
      %s222 = sadd.s32 %s220, %s221
      %s223 = smul.addr %s222, 4
      %s224 = scalar_lea.vmem %s0, %s223
      %p225 = pneg %p51
      %p226 = pneg %p48
      %p227 = pneg %p72
      %p228 = pneg %p69
      %p229 = pneg %p93
      %p230 = pneg %p90
      %p231 = pneg %p114
      %p232 = pneg %p111
      %p233 = pneg %p135
      %p234 = pneg %p132
      %p235 = pneg %p163
      %p236 = pneg %p160
      %s237 = smul.u32 2, %s21
      %p238 = scmp.lt.s32.totalorder %s20, 1
      %s239 = scalar_select %p238, %s20, 1
      %p240 = scmp.lt.s32.totalorder %s237, 7
      %s241 = scalar_select %p240, %s237, 7
      %s242 = smul.addr %s239, 8
      %s243 = sadd.s32 %s241, %s242
      %s244 = smul.addr %s243, 8
      %s245 = scalar_lea.vmem %s5, %s244
      %s246 = smul.u32 2, %s21
      %p247 = scmp.lt.s32.totalorder %s20, 1
      %s248 = scalar_select %p247, %s20, 1
      %p249 = scmp.lt.s32.totalorder %s246, 7
      %s250 = scalar_select %p249, %s246, 7
      %s251 = smul.addr %s250, 3
      %s252 = smul.addr %s248, 24
      %s253 = sadd.s32 %s251, %s252
      %s254 = smul.addr %s253, 4
      %s255 = scalar_lea.vmem %s0, %s254
      %s256 = smul.u32 2, %s21
      %s257 = smul.u32 2, %s21
      %p258 = scmp.lt.s32.totalorder %s20, 1
      %s259 = scalar_select %p258, %s20, 1
      %p260 = scmp.lt.s32.totalorder %s257, 7
      %s261 = scalar_select %p260, %s257, 7
      %s262 = smul.addr %s259, 8
      %s263 = sadd.s32 %s261, %s262
      %s264 = smul.addr %s263, 8
      %s265 = scalar_lea.vmem %s5, %s264
      %s266 = smul.u32 2, %s21
      %v268 = vld [vmem:[%s255] sm:$0xff]
      %v269 = vld [vmem:[%s255 + $0x8] sm:$0xf]
      %v270 = vld [vmem:[%s255 + $0xc] sm:$0xff]
      %v271 = vld [vmem:[%s255 + $0x14] sm:$0xf]
      %v272 = vld [vmem:[%s1] sm:$0xf]
      %v273 = vld [vmem:[%s1 + $0x4] sm:$0xf]
      %v274 = vld [vmem:[%s1 + $0x8] sm:$0xf]
      %v275 = vld [vmem:[%s1 + $0xc] sm:$0xf]
      %v276 = vld [vmem:[%s1 + $0x10] sm:$0xf]
      %v277 = vld [vmem:[%s1 + $0x14] sm:$0xf]
      %v278 = vld [vmem:[%s1 + $0x18] sm:$0xf]
      %v279 = vld [vmem:[%s1 + $0x1c] sm:$0xf]
      %v280 = vld [vmem:[%s1 + $0x20] sm:$0xf]
      %v281 = vld [vmem:[%s1 + $0x24] sm:$0xf]
      %v282 = vld [vmem:[%s1 + $0x28] sm:$0xf]
      %v283 = vld [vmem:[%s1 + $0x2c] sm:$0xf]
      %v284 = vld [vmem:[%s1 + $0x30] sm:$0xf]
      %v285 = vld [vmem:[%s1 + $0x34] sm:$0xf]
      %v286 = vld [vmem:[%s1 + $0x38] sm:$0xf]
      %v287 = vld [vmem:[%s1 + $0x3c] sm:$0xf]
      %v288 = vld [vmem:[%s1 + $0x40] sm:$0xf]
      %v289 = vld [vmem:[%s1 + $0x44] sm:$0xf]
      %v290 = vld [vmem:[%s1 + $0x48] sm:$0xf]
      %v291 = vld [vmem:[%s1 + $0x4c] sm:$0xf]
      %v292 = vld [vmem:[%s1 + $0x50] sm:$0xf]
      %v293 = vld [vmem:[%s1 + $0x54] sm:$0xf]
      %v294 = vld [vmem:[%s1 + $0x58] sm:$0xf]
      %v295 = vld [vmem:[%s1 + $0x5c] sm:$0xf]
      %v296 = vld [vmem:[%s1 + $0x60] sm:$0xf]
      %v297 = vld [vmem:[%s1 + $0x64] sm:$0xf]
      %v298 = vld [vmem:[%s1 + $0x68] sm:$0xf]
      %v299 = vld [vmem:[%s1 + $0x6c] sm:$0xf]
      %v300 = vld [vmem:[%s1 + $0x70] sm:$0xf]
      %v301 = vld [vmem:[%s1 + $0x74] sm:$0xf]
      %v302 = vld [vmem:[%s1 + $0x78] sm:$0xf]
      %v303 = vld [vmem:[%s1 + $0x7c] sm:$0xf]
      %v304 = vld [vmem:[%s1 + $0x80] sm:$0xf]
      %v305 = vld [vmem:[%s1 + $0x84] sm:$0xf]
      %v306 = vld [vmem:[%s1 + $0x88] sm:$0xf]
      %v307 = vld [vmem:[%s1 + $0x8c] sm:$0xf]
      %v308 = vld [vmem:[%s2] sm:$0x1]
      %v310 = vlaneseq
      %v311 = vshrl.u32 %v310, 7
      %v312 = vsub.s32 0, %v311
      %v313 = vrot.slane %v308, %v312
      %v319 = vunpack.c.l.b16 %v268
      %v320 = vunpack.c.h.b16 %v268
      %v321 = vunpack.c.l.b16 %v269
      %v322 = vunpack.c.l.b16 %v270
      %v323 = vunpack.c.h.b16 %v270
      %v324 = vunpack.c.l.b16 %v271
      %v325 = vpack.c.b16 %v322, %v319
      %v326 = vpack.c.b16 %v323, %v320
      %v327 = vpack.c.b16 %v324, %v321
      %v366 = vunpack.c.l.b16 %v272
      %v367 = vunpack.c.l.b16 %v273
      %v368 = vunpack.c.l.b16 %v274
      %v369 = vunpack.c.l.b16 %v275
      %v370 = vunpack.c.l.b16 %v276
      %v371 = vunpack.c.l.b16 %v277
      %v372 = vunpack.c.l.b16 %v278
      %v373 = vunpack.c.l.b16 %v279
      %v374 = vunpack.c.l.b16 %v280
      %v375 = vunpack.c.l.b16 %v281
      %v376 = vunpack.c.l.b16 %v282
      %v377 = vunpack.c.l.b16 %v283
      %v378 = vunpack.c.l.b16 %v284
      %v379 = vunpack.c.l.b16 %v285
      %v380 = vunpack.c.l.b16 %v286
      %v381 = vunpack.c.l.b16 %v287
      %v382 = vunpack.c.l.b16 %v288
      %v383 = vunpack.c.l.b16 %v289
      %v384 = vunpack.c.l.b16 %v290
      %v385 = vunpack.c.l.b16 %v291
      %v386 = vunpack.c.l.b16 %v292
      %v387 = vunpack.c.l.b16 %v293
      %v388 = vunpack.c.l.b16 %v294
      %v389 = vunpack.c.l.b16 %v295
      %v390 = vunpack.c.l.b16 %v296
      %v391 = vunpack.c.l.b16 %v297
      %v392 = vunpack.c.l.b16 %v298
      %v393 = vunpack.c.l.b16 %v299
      %v394 = vunpack.c.l.b16 %v300
      %v395 = vunpack.c.l.b16 %v301
      %v396 = vunpack.c.l.b16 %v302
      %v397 = vunpack.c.l.b16 %v303
      %v398 = vunpack.c.l.b16 %v304
      %v399 = vunpack.c.l.b16 %v305
      %v400 = vunpack.c.l.b16 %v306
      %v401 = vunpack.c.l.b16 %v307
      %v402 = vpack.c.b16 %v367, %v366
      %v403 = vpack.c.b16 %v369, %v368
      %v404 = vpack.c.b16 %v371, %v370
      %v405 = vpack.c.b16 %v373, %v372
      %v406 = vpack.c.b16 %v375, %v374
      %v407 = vpack.c.b16 %v377, %v376
      %v408 = vpack.c.b16 %v379, %v378
      %v409 = vpack.c.b16 %v381, %v380
      %v410 = vpack.c.b16 %v383, %v382
      %v411 = vpack.c.b16 %v385, %v384
      %v412 = vpack.c.b16 %v387, %v386
      %v413 = vpack.c.b16 %v389, %v388
      %v414 = vpack.c.b16 %v391, %v390
      %v415 = vpack.c.b16 %v393, %v392
      %v416 = vpack.c.b16 %v395, %v394
      %v417 = vpack.c.b16 %v397, %v396
      %v418 = vpack.c.b16 %v399, %v398
      %v419 = vpack.c.b16 %v401, %v400
      %vm438 = vcmask 261120
      %v440 = vsel %vm438, %v327, 0
      %442 = vmatprep.subr.bf16.mxu0 0
      %443 = vmatpush1.bf16.msra.mxu0 %v409
      %444 = vmatprep.subr.bf16.mxu0 0
      %445 = vmatpush1.bf16.msra.mxu0 %v408
      %446 = vmatprep.subr.bf16.mxu0 0
      %447 = vmatpush1.bf16.msra.mxu0 %v407
      %448 = vmatprep.subr.bf16.mxu0 0
      %449 = vmatpush1.bf16.msra.mxu0 %v406
      %450 = vmatprep.subr.bf16.mxu0 0
      %451 = vmatpush1.bf16.msra.mxu0 %v405
      %452 = vmatprep.subr.bf16.mxu0 0
      %453 = vmatpush1.bf16.msra.mxu0 %v404
      %454 = vmatprep.subr.bf16.mxu0 0
      %455 = vmatpush1.bf16.msra.mxu0 %v403
      %456 = vmatprep.subr.bf16.mxu0 0
      %457 = vmatpush1.bf16.msra.mxu0 %v402
      %458 = vmatprep.subr.bf16.mxu0 0
      %459 = vmatpush2.bf16.msra.mxu0 %v417
      %460 = vmatprep.subr.bf16.mxu0 0
      %461 = vmatpush2.bf16.msra.mxu0 %v416
      %462 = vmatprep.subr.bf16.mxu0 0
      %463 = vmatpush2.bf16.msra.mxu0 %v415
      %464 = vmatprep.subr.bf16.mxu0 0
      %465 = vmatpush2.bf16.msra.mxu0 %v414
      %466 = vmatprep.subr.bf16.mxu0 0
      %467 = vmatpush2.bf16.msra.mxu0 %v413
      %468 = vmatprep.subr.bf16.mxu0 0
      %469 = vmatpush2.bf16.msra.mxu0 %v412
      %470 = vmatprep.subr.bf16.mxu0 0
      %471 = vmatpush2.bf16.msra.mxu0 %v411
      %472 = vmatprep.subr.bf16.mxu0 0
      %473 = vmatpush2.bf16.msra.mxu0 %v410
      %474 = vmatprep.mubr.bf16.mxu0 %v326
      %475 = vmatmul.mubr.bf16.gmra.mxu0 %v325
      %v476 = vpop.f32.mrf.mxu0
      %v477 = vadd.f32 %v313, %v476
      %v478 = vpop.f32.mrf.mxu0
      %v479 = vpop.f32.mrf.mxu0
      %v480 = vadd.f32 %v313, %v479
      %v481 = vpop.f32.mrf.mxu0
      %482 = vdwg.mxu0
      %483 = vmatprep.subr.bf16.mxu0 0
      %484 = vmatpush1.bf16.msra.mxu0 0
      %485 = vmatprep.subr.bf16.mxu0 0
      %486 = vmatpush1.bf16.msra.mxu0 0
      %487 = vmatprep.subr.bf16.mxu0 0
      %488 = vmatpush1.bf16.msra.mxu0 0
      %489 = vmatprep.subr.bf16.mxu0 0
      %490 = vmatpush1.bf16.msra.mxu0 0
      %491 = vmatprep.subr.bf16.mxu0 0
      %492 = vmatpush1.bf16.msra.mxu0 0
      %493 = vmatprep.subr.bf16.mxu0 0
      %494 = vmatpush1.bf16.msra.mxu0 0
      %495 = vmatprep.subr.bf16.mxu0 0
      %496 = vmatpush1.bf16.msra.mxu0 %v419
      %497 = vmatprep.subr.bf16.mxu0 0
      %498 = vmatpush1.bf16.msra.mxu0 %v418
      %499 = vmatprep.subr.bf16.mxu0 0
      %500 = vmatpush2.bf16.msra.mxu0 0
      %501 = vmatprep.subr.bf16.mxu0 0
      %502 = vmatpush2.bf16.msra.mxu0 0
      %503 = vmatprep.subr.bf16.mxu0 0
      %504 = vmatpush2.bf16.msra.mxu0 0
      %505 = vmatprep.subr.bf16.mxu0 0
      %506 = vmatpush2.bf16.msra.mxu0 0
      %507 = vmatprep.subr.bf16.mxu0 0
      %508 = vmatpush2.bf16.msra.mxu0 0
      %509 = vmatprep.subr.bf16.mxu0 0
      %510 = vmatpush2.bf16.msra.mxu0 0
      %511 = vmatprep.subr.bf16.mxu0 0
      %512 = vmatpush2.bf16.msra.mxu0 0
      %513 = vmatprep.subr.bf16.mxu0 0
      %514 = vmatpush2.bf16.msra.mxu0 0
      %515 = vmatprep.mubr.bf16.mxu0 0
      %516 = vmatmul.mubr.bf16.gmra.mxu0 %v440
      %v517 = vpop.f32.mrf.mxu0
      %v518 = vadd.f32 %v477, %v517
      %v519 = vpop.f32.mrf.mxu0
      %v520 = vpop.f32.mrf.mxu0
      %v521 = vadd.f32 %v480, %v520
      %v522 = vpop.f32.mrf.mxu0
      %523 = vdwg.mxu0
      %v524 = vmax.f32 %v518, 0.0
      %v525 = vmax.f32 %v521, 0.0
      %v526 = vpack.c.bf16 %v525, %v524
      %v527 = vld [vmem:[%s3] sm:$0xf]
      %v528 = vld [vmem:[%s3 + $0x4] sm:$0xf]
      %v529 = vld [vmem:[%s3 + $0x8] sm:$0xf]
      %v530 = vld [vmem:[%s3 + $0xc] sm:$0xf]
      %v531 = vld [vmem:[%s4] sm:$0x1]
      %v533 = vlaneseq
      %v534 = vshrl.u32 %v533, 7
      %v535 = vsub.s32 0, %v534
      %v536 = vrot.slane %v531, %v535
      %v542 = vunpack.c.l.b16 %v527
      %v543 = vunpack.c.l.b16 %v528
      %v544 = vunpack.c.l.b16 %v529
      %v545 = vunpack.c.l.b16 %v530
      %v546 = vpack.c.b16 %v543, %v542
      %v547 = vpack.c.b16 %v545, %v544
      %v551 = vsel %vm438, %v526, 0
      %553 = vmatprep.subr.bf16.mxu0 0
      %554 = vmatpush1.bf16.msra.mxu0 0
      %555 = vmatprep.subr.bf16.mxu0 0
      %556 = vmatpush1.bf16.msra.mxu0 0
      %557 = vmatprep.subr.bf16.mxu0 0
      %558 = vmatpush1.bf16.msra.mxu0 0
      %559 = vmatprep.subr.bf16.mxu0 0
      %560 = vmatpush1.bf16.msra.mxu0 0
      %561 = vmatprep.subr.bf16.mxu0 0
      %562 = vmatpush1.bf16.msra.mxu0 0
      %563 = vmatprep.subr.bf16.mxu0 0
      %564 = vmatpush1.bf16.msra.mxu0 0
      %565 = vmatprep.subr.bf16.mxu0 0
      %566 = vmatpush1.bf16.msra.mxu0 %v547
      %567 = vmatprep.subr.bf16.mxu0 0
      %568 = vmatpush1.bf16.msra.mxu0 %v546
      %569 = vmatprep.subr.bf16.mxu0 0
      %570 = vmatpush2.bf16.msra.mxu0 0
      %571 = vmatprep.subr.bf16.mxu0 0
      %572 = vmatpush2.bf16.msra.mxu0 0
      %573 = vmatprep.subr.bf16.mxu0 0
      %574 = vmatpush2.bf16.msra.mxu0 0
      %575 = vmatprep.subr.bf16.mxu0 0
      %576 = vmatpush2.bf16.msra.mxu0 0
      %577 = vmatprep.subr.bf16.mxu0 0
      %578 = vmatpush2.bf16.msra.mxu0 0
      %579 = vmatprep.subr.bf16.mxu0 0
      %580 = vmatpush2.bf16.msra.mxu0 0
      %581 = vmatprep.subr.bf16.mxu0 0
      %582 = vmatpush2.bf16.msra.mxu0 0
      %583 = vmatprep.subr.bf16.mxu0 0
      %584 = vmatpush2.bf16.msra.mxu0 0
      %585 = vmatprep.mubr.bf16.mxu0 0
      %586 = vmatmul.mubr.bf16.gmra.mxu0 %v551
      %v587 = vpop.f32.mrf.mxu0
      %v588 = vadd.f32 %v536, %v587
      %v589 = vpop.f32.mrf.mxu0
      %v590 = vpop.f32.mrf.mxu0
      %v591 = vadd.f32 %v536, %v590
      %v592 = vpop.f32.mrf.mxu0
      %593 = vdwg.mxu0
      %vm594 = vcmask 130048
      %595 = vst.msk [vmem:[%s265] sm:$0xff] %vm594, %v588
      %596 = vst.msk [vmem:[%s265 + $0x8] sm:$0xff] %vm594, %v591
      %s597 = smul.u32 2, %s21
      %p598 = scmp.lt.s32.totalorder %s20, 1
      %s599 = scalar_select %p598, %s20, 1
      %p600 = scmp.lt.s32.totalorder %s597, 7
      %s601 = scalar_select %p600, %s597, 7
      %s602 = smul.addr %s599, 8
      %s603 = sadd.s32 %s601, %s602
      %s604 = smul.addr %s603, 8
      %s605 = scalar_lea.vmem %s5, %s604
      // Predicated region
      $region41: #{_forward.6} parent=39 // pred_check
        %p606 = pneg %p160
      $region42: #{_forward.6} parent=39 // pred_check_branch
        %608 = sbr.rel (%p606) target = $region44
      $region43: #{_forward.6} parent=39 // pred_region
        %s609 = smul.u32 2, %s21
      $region44: #{_forward.6} parent=39 // pred_fallthru
        _
    $region40: #{_forward.6} parent=5 // pred_fallthru
      _
    %p610 = scmp.le.s32.totalorder 2, %s11
    // Predicated region
    $region45: #{_forward.6} parent=5 // pred_check
      %p611 = pneg %p610
    $region46: #{_forward.6} parent=5 // pred_check_branch
      %613 = sbr.rel (%p611) target = $region48
    $region47: #{_forward.6} parent=5 // pred_region
      %s614 = ssub.s32 %s11, 2
      // Predicated region
      $region49: #{_forward.6} parent=47 // pred_check
        %p615 = pneg %p166
      $region50: #{_forward.6} parent=47 // pred_check_branch
        %617 = sbr.rel (%p615) target = $region52
      $region51: #{_forward.6} parent=47 // pred_region
        %s618 = smul.u32 2, %s23
        %p619 = scmp.lt.s32.totalorder %s22, 1
        %s620 = scalar_select %p619, %s22, 1
        %p621 = scmp.lt.s32.totalorder %s618, 7
        %s622 = scalar_select %p621, %s618, 7
        %s623 = smul.addr %s620, 8
        %s624 = sadd.s32 %s622, %s623
        %s625 = smul.addr %s624, 8
        %s626 = scalar_lea.vmem %s5, %s625
      $region52: #{_forward.6} parent=47 // pred_fallthru
        _
    $region48: #{_forward.6} parent=5 // pred_fallthru
      _
  $region6: #{_forward.6} parent=0 // loop_footer
    %s15 = sadd.s32 1, %s11
  $region7: #{_forward.6} parent=0 // loop_footer_branch
    %10 = sbr.rel target = $region3
  $region8: #{_forward.6} parent=0 // loop_exit
    _

// kernel: _forward.7
$region0: #{_forward.7}
  #allocation0 [shape = 'u32[]', space=smem, size = 0x4, offset = 0x4, fixed_abs, tag = 'smem constant byte address 0x4 - core index']
  #allocation1 [shape = 'u32[144,128]{1,0:T(1,128)}', space=vmem, size = 0x12000, scoped, tag = 'internal scratch']
  %s0 = inlined_call_operand.vmem [shape: bf16[64,1568], index: 0, kind: input, shape index: {}]
  %s1 = inlined_call_operand.vmem [shape: bf16[1568,64], index: 1, kind: input, shape index: {}]
  %s2 = inlined_call_operand.vmem [shape: f32[1,64], index: 2, kind: input, shape index: {}, may-alias: {2,4}]
  %s3 = inlined_call_operand.vmem [shape: bf16[64,64], index: 3, kind: input, shape index: {}]
  %s4 = inlined_call_operand.vmem [shape: f32[1,64], index: 4, kind: input, shape index: {}, may-alias: {2,4}]
  %s5 = inlined_call_operand.vmem [shape: bf16[64,4], index: 5, kind: input, shape index: {}]
  %s6 = inlined_call_operand.vmem [shape: f32[1,4], index: 6, kind: input, shape index: {}]
  %s7 = inlined_call_operand.vmem [shape: bf16[64,16], index: 7, kind: input, shape index: {}]
  %s8 = inlined_call_operand.vmem [shape: f32[1,16], index: 8, kind: input, shape index: {}]
  %s9 = inlined_call_operand.hbm [shape: f32[64,64], index: 9, kind: output, shape index: {0}]
  %s10 = inlined_call_operand.hbm [shape: f32[64,4], index: 10, kind: output, shape index: {1}]
  %s11 = inlined_call_operand.vmem [shape: f32[64,16], index: 11, kind: output, shape index: {2}]
  %s12 = inlined_call_operand.vmem [shape: f32[64,4], index: 12, kind: output, shape index: {3}]
  %13 = xla_tuple %s9, %s10, %s11, %s12
  %s14 = sld [smem:[#allocation0]]
  $region93: #{_forward.7} parent=0
    _
  %s16 = ssub.s32 1, %s14
  %s17 = scalar_select 0, %s16, %s14
  $region1: #{_forward.7} parent=0
    #allocation2 [shape = 'u8[16384]{0}', space=vmem, size = 0x4000, scoped, tag = 'output window, operand 0']
    #allocation3 [shape = 's32[2]{0}', space=sflag, size = 0x8, scoped, tag = 'scoped memory for _forward.7']
    #allocation4 [shape = 'u8[16384]{0}', space=vmem, size = 0x4000, scoped, tag = 'output window, operand 1']
    #allocation5 [shape = 's32[2]{0}', space=sflag, size = 0x8, scoped, tag = 'scoped memory for _forward.7']
    %18 = vsyncpa [#allocation3], 0
    %s19 = scalar_lea.sflag [#allocation3], 1
    %20 = vsyncpa %s19, 0
    %21 = vsyncpa [#allocation5], 0
    %s22 = scalar_lea.sflag [#allocation5], 1
    %23 = vsyncpa %s22, 0
    loop: start=0, step=1, limit=6
    $region2: #{_forward.7} parent=1 // loop_pre_header
      _
    $region3: #{_forward.7} parent=1 // loop_header
      %s25 = sphi 0, %s29
      %p26 = scmp.ge.s32.totalorder %s25, 6
      %s35 = sphi 0, %s37
      %s38 = sphi 0, %s35
      %s39 = sphi 0, %s38
      %s55 = sphi 0, %s39
      %s59 = sphi 0, %s59
      %s61 = sphi 0, %s59
      %s62 = sphi 0, %s61
      %s76 = sphi 0, %s62
      %s80 = sphi 0, %s80
      %s82 = sphi 0, %s80
      %s83 = sphi 0, %s82
      %s97 = sphi 0, %s83
      %s101 = sphi 0, %s101
      %s103 = sphi 0, %s101
      %s104 = sphi 0, %s103
      %s118 = sphi 0, %s104
      %s122 = sphi 0, %s122
      %s124 = sphi 0, %s122
      %s125 = sphi 0, %s124
      %s139 = sphi 0, %s125
      %s143 = sphi 0, %s143
      %s145 = sphi 0, %s143
      %s146 = sphi 0, %s145
      %s160 = sphi 0, %s146
      %s164 = sphi 0, %s164
      %s166 = sphi 0, %s164
      %s167 = sphi 0, %s166
      %s181 = sphi 0, %s167
      %s185 = sphi 0, %s185
      %s187 = sphi 0, %s185
      %s188 = sphi 0, %s187
      %s202 = sphi 0, %s188
      %s206 = sphi 0, %s206
      %s208 = sphi 0, %s206
      %s209 = sphi 0, %s208
      %s223 = sphi 0, %s209
      %s229 = sphi 0, %s231
      %s232 = sphi 0, %s229
      %s233 = sphi 0, %s232
      %s249 = sphi 0, %s233
      %s255 = sphi 0, %s257
      %s258 = sphi 0, %s255
      %s259 = sphi 0, %s258
      %s275 = sphi 0, %s259
      %s281 = sphi 0, %s283
      %s284 = sphi 0, %s281
      %s285 = sphi 0, %s284
      %s301 = sphi 0, %s285
      %s307 = sphi 0, %s309
      %s310 = sphi 0, %s307
      %s311 = sphi 0, %s310
      %s327 = sphi 0, %s311
    $region4: #{_forward.7} parent=1 // loop_header_branch
      %28 = sbr.rel (%p26) target = $region8
    $region5: #{_forward.7} parent=1 // loop_body
      %s30 = ssub.s32 %s25, 1
      %s31 = ssub.s32 %s25, 2
      %s32 = sadd.s32 %s25, 1
      %s33 = ssub.s32 %s25, %s32
      %p34 = scmp.eq.s32.totalorder %s33, 0
      %s36 = sadd.s32 %s35, 1
      %s37 = scalar_select %p34, %s35, %s36
      %p40 = pneg %p34
      %p41 = scmp.eq.s32.totalorder %s25, 3
      %p42 = por %p40, %p41
      %p43 = scmp.ne.s32.totalorder %s35, %s38
      %p44 = scmp.eq.s32.totalorder %s25, 0
      %p45 = por %p43, %p44
      %p46 = scmp.ne.s32.totalorder %s35, %s38
      %p47 = scmp.eq.s32.totalorder %s30, 3
      %p48 = por %p46, %p47
      %p49 = scmp.ne.s32.totalorder %s38, %s39
      %p50 = scmp.eq.s32.totalorder %s30, 0
      %p51 = por %p49, %p50
      %p52 = scmp.ne.s32.totalorder %s38, %s39
      %p53 = scmp.eq.s32.totalorder %s31, 3
      %p54 = por %p52, %p53
      %p56 = scmp.ne.s32.totalorder %s39, %s55
      %p57 = scmp.eq.s32.totalorder %s31, 0
      %p58 = por %p56, %p57
      %s60 = sadd.s32 %s59, 1
      %p63 = scmp.eq.s32.totalorder %s25, 3
      %p64 = scmp.ne.s32.totalorder %s59, %s61
      %p65 = scmp.eq.s32.totalorder %s25, 0
      %p66 = por %p64, %p65
      %p67 = scmp.ne.s32.totalorder %s59, %s61
      %p68 = scmp.eq.s32.totalorder %s30, 3
      %p69 = por %p67, %p68
      %p70 = scmp.ne.s32.totalorder %s61, %s62
      %p71 = scmp.eq.s32.totalorder %s30, 0
      %p72 = por %p70, %p71
      %p73 = scmp.ne.s32.totalorder %s61, %s62
      %p74 = scmp.eq.s32.totalorder %s31, 3
      %p75 = por %p73, %p74
      %p77 = scmp.ne.s32.totalorder %s62, %s76
      %p78 = scmp.eq.s32.totalorder %s31, 0
      %p79 = por %p77, %p78
      %s81 = sadd.s32 %s80, 1
      %p84 = scmp.eq.s32.totalorder %s25, 3
      %p85 = scmp.ne.s32.totalorder %s80, %s82
      %p86 = scmp.eq.s32.totalorder %s25, 0
      %p87 = por %p85, %p86
      %p88 = scmp.ne.s32.totalorder %s80, %s82
      %p89 = scmp.eq.s32.totalorder %s30, 3
      %p90 = por %p88, %p89
      %p91 = scmp.ne.s32.totalorder %s82, %s83
      %p92 = scmp.eq.s32.totalorder %s30, 0
      %p93 = por %p91, %p92
      %p94 = scmp.ne.s32.totalorder %s82, %s83
      %p95 = scmp.eq.s32.totalorder %s31, 3
      %p96 = por %p94, %p95
      %p98 = scmp.ne.s32.totalorder %s83, %s97
      %p99 = scmp.eq.s32.totalorder %s31, 0
      %p100 = por %p98, %p99
      %s102 = sadd.s32 %s101, 1
      %p105 = scmp.eq.s32.totalorder %s25, 3
      %p106 = scmp.ne.s32.totalorder %s101, %s103
      %p107 = scmp.eq.s32.totalorder %s25, 0
      %p108 = por %p106, %p107
      %p109 = scmp.ne.s32.totalorder %s101, %s103
      %p110 = scmp.eq.s32.totalorder %s30, 3
      %p111 = por %p109, %p110
      %p112 = scmp.ne.s32.totalorder %s103, %s104
      %p113 = scmp.eq.s32.totalorder %s30, 0
      %p114 = por %p112, %p113
      %p115 = scmp.ne.s32.totalorder %s103, %s104
      %p116 = scmp.eq.s32.totalorder %s31, 3
      %p117 = por %p115, %p116
      %p119 = scmp.ne.s32.totalorder %s104, %s118
      %p120 = scmp.eq.s32.totalorder %s31, 0
      %p121 = por %p119, %p120
      %s123 = sadd.s32 %s122, 1
      %p126 = scmp.eq.s32.totalorder %s25, 3
      %p127 = scmp.ne.s32.totalorder %s122, %s124
      %p128 = scmp.eq.s32.totalorder %s25, 0
      %p129 = por %p127, %p128
      %p130 = scmp.ne.s32.totalorder %s122, %s124
      %p131 = scmp.eq.s32.totalorder %s30, 3
      %p132 = por %p130, %p131
      %p133 = scmp.ne.s32.totalorder %s124, %s125
      %p134 = scmp.eq.s32.totalorder %s30, 0
      %p135 = por %p133, %p134
      %p136 = scmp.ne.s32.totalorder %s124, %s125
      %p137 = scmp.eq.s32.totalorder %s31, 3
      %p138 = por %p136, %p137
      %p140 = scmp.ne.s32.totalorder %s125, %s139
      %p141 = scmp.eq.s32.totalorder %s31, 0
      %p142 = por %p140, %p141
      %s144 = sadd.s32 %s143, 1
      %p147 = scmp.eq.s32.totalorder %s25, 3
      %p148 = scmp.ne.s32.totalorder %s143, %s145
      %p149 = scmp.eq.s32.totalorder %s25, 0
      %p150 = por %p148, %p149
      %p151 = scmp.ne.s32.totalorder %s143, %s145
      %p152 = scmp.eq.s32.totalorder %s30, 3
      %p153 = por %p151, %p152
      %p154 = scmp.ne.s32.totalorder %s145, %s146
      %p155 = scmp.eq.s32.totalorder %s30, 0
      %p156 = por %p154, %p155
      %p157 = scmp.ne.s32.totalorder %s145, %s146
      %p158 = scmp.eq.s32.totalorder %s31, 3
      %p159 = por %p157, %p158
      %p161 = scmp.ne.s32.totalorder %s146, %s160
      %p162 = scmp.eq.s32.totalorder %s31, 0
      %p163 = por %p161, %p162
      %s165 = sadd.s32 %s164, 1
      %p168 = scmp.eq.s32.totalorder %s25, 3
      %p169 = scmp.ne.s32.totalorder %s164, %s166
      %p170 = scmp.eq.s32.totalorder %s25, 0
      %p171 = por %p169, %p170
      %p172 = scmp.ne.s32.totalorder %s164, %s166
      %p173 = scmp.eq.s32.totalorder %s30, 3
      %p174 = por %p172, %p173
      %p175 = scmp.ne.s32.totalorder %s166, %s167
      %p176 = scmp.eq.s32.totalorder %s30, 0
      %p177 = por %p175, %p176
      %p178 = scmp.ne.s32.totalorder %s166, %s167
      %p179 = scmp.eq.s32.totalorder %s31, 3
      %p180 = por %p178, %p179
      %p182 = scmp.ne.s32.totalorder %s167, %s181
      %p183 = scmp.eq.s32.totalorder %s31, 0
      %p184 = por %p182, %p183
      %s186 = sadd.s32 %s185, 1
      %p189 = scmp.eq.s32.totalorder %s25, 3
      %p190 = scmp.ne.s32.totalorder %s185, %s187
      %p191 = scmp.eq.s32.totalorder %s25, 0
      %p192 = por %p190, %p191
      %p193 = scmp.ne.s32.totalorder %s185, %s187
      %p194 = scmp.eq.s32.totalorder %s30, 3
      %p195 = por %p193, %p194
      %p196 = scmp.ne.s32.totalorder %s187, %s188
      %p197 = scmp.eq.s32.totalorder %s30, 0
      %p198 = por %p196, %p197
      %p199 = scmp.ne.s32.totalorder %s187, %s188
      %p200 = scmp.eq.s32.totalorder %s31, 3
      %p201 = por %p199, %p200
      %p203 = scmp.ne.s32.totalorder %s188, %s202
      %p204 = scmp.eq.s32.totalorder %s31, 0
      %p205 = por %p203, %p204
      %s207 = sadd.s32 %s206, 1
      %p210 = scmp.eq.s32.totalorder %s25, 3
      %p211 = scmp.ne.s32.totalorder %s206, %s208
      %p212 = scmp.eq.s32.totalorder %s25, 0
      %p213 = por %p211, %p212
      %p214 = scmp.ne.s32.totalorder %s206, %s208
      %p215 = scmp.eq.s32.totalorder %s30, 3
      %p216 = por %p214, %p215
      %p217 = scmp.ne.s32.totalorder %s208, %s209
      %p218 = scmp.eq.s32.totalorder %s30, 0
      %p219 = por %p217, %p218
      %p220 = scmp.ne.s32.totalorder %s208, %s209
      %p221 = scmp.eq.s32.totalorder %s31, 3
      %p222 = por %p220, %p221
      %p224 = scmp.ne.s32.totalorder %s209, %s223
      %p225 = scmp.eq.s32.totalorder %s31, 0
      %p226 = por %p224, %p225
      %s227 = ssub.s32 %s25, %s32
      %p228 = scmp.eq.s32.totalorder %s227, 0
      %s230 = sadd.s32 %s229, 1
      %s231 = scalar_select %p228, %s229, %s230
      %p234 = pneg %p228
      %p235 = scmp.eq.s32.totalorder %s25, 3
      %p236 = por %p234, %p235
      %p237 = scmp.ne.s32.totalorder %s229, %s232
      %p238 = scmp.eq.s32.totalorder %s25, 0
      %p239 = por %p237, %p238
      %p240 = scmp.ne.s32.totalorder %s229, %s232
      %p241 = scmp.eq.s32.totalorder %s30, 3
      %p242 = por %p240, %p241
      %p243 = scmp.ne.s32.totalorder %s232, %s233
      %p244 = scmp.eq.s32.totalorder %s30, 0
      %p245 = por %p243, %p244
      %p246 = scmp.ne.s32.totalorder %s232, %s233
      %p247 = scmp.eq.s32.totalorder %s31, 3
      %p248 = por %p246, %p247
      %p250 = scmp.ne.s32.totalorder %s233, %s249
      %p251 = scmp.eq.s32.totalorder %s31, 0
      %p252 = por %p250, %p251
      %s253 = ssub.s32 %s25, %s32
      %p254 = scmp.eq.s32.totalorder %s253, 0
      %s256 = sadd.s32 %s255, 1
      %s257 = scalar_select %p254, %s255, %s256
      %p260 = pneg %p254
      %p261 = scmp.eq.s32.totalorder %s25, 3
      %p262 = por %p260, %p261
      %p263 = scmp.ne.s32.totalorder %s255, %s258
      %p264 = scmp.eq.s32.totalorder %s25, 0
      %p265 = por %p263, %p264
      %p266 = scmp.ne.s32.totalorder %s255, %s258
      %p267 = scmp.eq.s32.totalorder %s30, 3
      %p268 = por %p266, %p267
      %p269 = scmp.ne.s32.totalorder %s258, %s259
      %p270 = scmp.eq.s32.totalorder %s30, 0
      %p271 = por %p269, %p270
      %p272 = scmp.ne.s32.totalorder %s258, %s259
      %p273 = scmp.eq.s32.totalorder %s31, 3
      %p274 = por %p272, %p273
      %p276 = scmp.ne.s32.totalorder %s259, %s275
      %p277 = scmp.eq.s32.totalorder %s31, 0
      %p278 = por %p276, %p277
      %s279 = ssub.s32 %s25, %s32
      %p280 = scmp.eq.s32.totalorder %s279, 0
      %s282 = sadd.s32 %s281, 1
      %s283 = scalar_select %p280, %s281, %s282
      %p286 = pneg %p280
      %p287 = scmp.eq.s32.totalorder %s25, 3
      %p288 = por %p286, %p287
      %p289 = scmp.ne.s32.totalorder %s281, %s284
      %p290 = scmp.eq.s32.totalorder %s25, 0
      %p291 = por %p289, %p290
      %p292 = scmp.ne.s32.totalorder %s281, %s284
      %p293 = scmp.eq.s32.totalorder %s30, 3
      %p294 = por %p292, %p293
      %p295 = scmp.ne.s32.totalorder %s284, %s285
      %p296 = scmp.eq.s32.totalorder %s30, 0
      %p297 = por %p295, %p296
      %p298 = scmp.ne.s32.totalorder %s284, %s285
      %p299 = scmp.eq.s32.totalorder %s31, 3
      %p300 = por %p298, %p299
      %p302 = scmp.ne.s32.totalorder %s285, %s301
      %p303 = scmp.eq.s32.totalorder %s31, 0
      %p304 = por %p302, %p303
      %s305 = ssub.s32 %s25, %s32
      %p306 = scmp.eq.s32.totalorder %s305, 0
      %s308 = sadd.s32 %s307, 1
      %s309 = scalar_select %p306, %s307, %s308
      %p312 = pneg %p306
      %p313 = scmp.eq.s32.totalorder %s25, 3
      %p314 = por %p312, %p313
      %p315 = scmp.ne.s32.totalorder %s307, %s310
      %p316 = scmp.eq.s32.totalorder %s25, 0
      %p317 = por %p315, %p316
      %p318 = scmp.ne.s32.totalorder %s307, %s310
      %p319 = scmp.eq.s32.totalorder %s30, 3
      %p320 = por %p318, %p319
      %p321 = scmp.ne.s32.totalorder %s310, %s311
      %p322 = scmp.eq.s32.totalorder %s30, 0
      %p323 = por %p321, %p322
      %p324 = scmp.ne.s32.totalorder %s310, %s311
      %p325 = scmp.eq.s32.totalorder %s31, 3
      %p326 = por %p324, %p325
      %p328 = scmp.ne.s32.totalorder %s311, %s327
      %p329 = scmp.eq.s32.totalorder %s31, 0
      %p330 = por %p328, %p329
      %p331 = scmp.le.s32.totalorder 1, %s25
      %p332 = scmp.lt.s32.totalorder %s25, 5
      %p333 = pnand %p331, %p332
      %p334 = pneg %p333
      // Predicated region
      $region9: #{_forward.7} parent=5 // pred_check
        _
      $region10: #{_forward.7} parent=5 // pred_check_branch
        %336 = sbr.rel (%p333) target = $region12
      $region11: #{_forward.7} parent=5 // pred_region
        %s337 = ssub.s32 %s25, 1
        // Predicated region
        $region13: #{_forward.7} parent=11 // pred_check
          %p338 = pneg %p72
        $region14: #{_forward.7} parent=11 // pred_check_branch
          %340 = sbr.rel (%p338) target = $region16
        $region15: #{_forward.7} parent=11 // pred_region
          _
        $region16: #{_forward.7} parent=11 // pred_fallthru
          _
        // Predicated region
        $region17: #{_forward.7} parent=11 // pred_check
          %p341 = pneg %p93
        $region18: #{_forward.7} parent=11 // pred_check_branch
          %343 = sbr.rel (%p341) target = $region20
        $region19: #{_forward.7} parent=11 // pred_region
          _
        $region20: #{_forward.7} parent=11 // pred_fallthru
          _
        // Predicated region
        $region21: #{_forward.7} parent=11 // pred_check
          %p344 = pneg %p114
        $region22: #{_forward.7} parent=11 // pred_check_branch
          %346 = sbr.rel (%p344) target = $region24
        $region23: #{_forward.7} parent=11 // pred_region
          _
        $region24: #{_forward.7} parent=11 // pred_fallthru
          _
        // Predicated region
        $region25: #{_forward.7} parent=11 // pred_check
          %p347 = pneg %p135
        $region26: #{_forward.7} parent=11 // pred_check_branch
          %349 = sbr.rel (%p347) target = $region28
        $region27: #{_forward.7} parent=11 // pred_region
          _
        $region28: #{_forward.7} parent=11 // pred_fallthru
          _
        // Predicated region
        $region29: #{_forward.7} parent=11 // pred_check
          %p350 = pneg %p156
        $region30: #{_forward.7} parent=11 // pred_check_branch
          %352 = sbr.rel (%p350) target = $region32
        $region31: #{_forward.7} parent=11 // pred_region
          _
        $region32: #{_forward.7} parent=11 // pred_fallthru
          _
        // Predicated region
        $region33: #{_forward.7} parent=11 // pred_check
          %p353 = pneg %p177
        $region34: #{_forward.7} parent=11 // pred_check_branch
          %355 = sbr.rel (%p353) target = $region36
        $region35: #{_forward.7} parent=11 // pred_region
          _
        $region36: #{_forward.7} parent=11 // pred_fallthru
          _
        // Predicated region
        $region37: #{_forward.7} parent=11 // pred_check
          %p356 = pneg %p198
        $region38: #{_forward.7} parent=11 // pred_check_branch
          %358 = sbr.rel (%p356) target = $region40
        $region39: #{_forward.7} parent=11 // pred_region
          _
        $region40: #{_forward.7} parent=11 // pred_fallthru
          _
        // Predicated region
        $region41: #{_forward.7} parent=11 // pred_check
          %p359 = pneg %p219
        $region42: #{_forward.7} parent=11 // pred_check_branch
          %361 = sbr.rel (%p359) target = $region44
        $region43: #{_forward.7} parent=11 // pred_region
          _
        $region44: #{_forward.7} parent=11 // pred_fallthru
          _
      $region12: #{_forward.7} parent=5 // pred_fallthru
        _
      %p362 = scmp.lt.s32.totalorder %s25, 4
      // Predicated region
      $region45: #{_forward.7} parent=5 // pred_check
        %p363 = pneg %p362
      $region46: #{_forward.7} parent=5 // pred_check_branch
        %365 = sbr.rel (%p363) target = $region48
      $region47: #{_forward.7} parent=5 // pred_region
        // Predicated region
        $region49: #{_forward.7} parent=47 // pred_check
          %p366 = pneg %p45
        $region50: #{_forward.7} parent=47 // pred_check_branch
          %368 = sbr.rel (%p366) target = $region52
        $region51: #{_forward.7} parent=47 // pred_region
          %s369 = smul.u32 2, %s25
          %p370 = scmp.lt.s32.totalorder %s369, 7
          %s371 = scalar_select %p370, %s369, 7
          %s372 = smul.addr %s371, 13
          %s373 = smul.addr %s372, 4
          %s374 = scalar_lea.vmem %s0, %s373
          %s375 = smul.u32 2, %s25
        $region52: #{_forward.7} parent=47 // pred_fallthru
          _
      $region48: #{_forward.7} parent=5 // pred_fallthru
        _
      %p376 = scmp.le.s32.totalorder 1, %s25
      %p377 = scmp.lt.s32.totalorder %s25, 5
      %p378 = pnand %p376, %p377
      %p379 = pneg %p378
      // Predicated region
      $region53: #{_forward.7} parent=5 // pred_check
        _
      $region54: #{_forward.7} parent=5 // pred_check_branch
        %381 = sbr.rel (%p378) target = $region56
      $region55: #{_forward.7} parent=5 // pred_region
        %s382 = ssub.s32 %s25, 1
        %s383 = smul.u32 2, %s30
        %p384 = scmp.lt.s32.totalorder %s383, 7
        %s385 = scalar_select %p384, %s383, 7
        %s386 = smul.addr %s385, 13
        %s387 = smul.addr %s386, 4
        %s388 = scalar_lea.vmem %s0, %s387
        %p389 = pneg %p51
        %p390 = pneg %p48
        %p391 = pneg %p72
        %p392 = pneg %p69
        %p393 = pneg %p93
        %p394 = pneg %p90
        %p395 = pneg %p114
        %p396 = pneg %p111
        %p397 = pneg %p135
        %p398 = pneg %p132
        %p399 = pneg %p156
        %p400 = pneg %p153
        %p401 = pneg %p177
        %p402 = pneg %p174
        %p403 = pneg %p198
        %p404 = pneg %p195
        %p405 = pneg %p219
        %p406 = pneg %p216
        %p407 = pneg %p245
        %p408 = pneg %p242
        %s409 = sand.u32 %s232, 1
        %s410 = scalar_lea.sflag [#allocation3], %s409
        %s411 = sand.u32 %s232, 1
        %s412 = smul.addr %s411, 16
        %s413 = scalar_lea.vmem [#allocation2], %s412
        %p414 = pneg %p271
        %p415 = pneg %p268
        %s416 = sand.u32 %s258, 1
        %s417 = scalar_lea.sflag [#allocation5], %s416
        %s418 = sand.u32 %s258, 1
        %s419 = smul.addr %s418, 16
        %s420 = scalar_lea.vmem [#allocation4], %s419
        %p421 = pneg %p297
        %p422 = pneg %p294
        %s423 = smul.u32 2, %s30
        %p424 = scmp.lt.s32.totalorder %s423, 7
        %s425 = scalar_select %p424, %s423, 7
        %s426 = smul.addr %s425, 8
        %s427 = scalar_lea.vmem %s11, %s426
        %p428 = pneg %p323
        %p429 = pneg %p320
        %s430 = smul.u32 2, %s30
        %p431 = scmp.lt.s32.totalorder %s430, 7
        %s432 = scalar_select %p431, %s430, 7
        %s433 = smul.addr %s432, 8
        %s434 = scalar_lea.vmem %s12, %s433
        %s435 = smul.u32 2, %s30
        %p436 = scmp.lt.s32.totalorder %s435, 7
        %s437 = scalar_select %p436, %s435, 7
        %s438 = smul.addr %s437, 13
        %s439 = smul.addr %s438, 4
        %s440 = scalar_lea.vmem %s0, %s439
        %s441 = smul.u32 2, %s30
        %s442 = smul.u32 2, %s30
        %s443 = smul.u32 2, %s30
        %s444 = smul.u32 2, %s30
        %p445 = scmp.lt.s32.totalorder %s444, 7
        %s446 = scalar_select %p445, %s444, 7
        %s447 = smul.addr %s446, 8
        %s448 = scalar_lea.vmem %s11, %s447
        %s449 = smul.u32 2, %s30
        %s450 = smul.u32 2, %s30
        %p451 = scmp.lt.s32.totalorder %s450, 7
        %s452 = scalar_select %p451, %s450, 7
        %s453 = smul.addr %s452, 8
        %s454 = scalar_lea.vmem %s12, %s453
        %s455 = smul.u32 2, %s30
        %v457 = vld [vmem:[%s440] sm:$0xff]
        %v458 = vld [vmem:[%s440 + $0x8] sm:$0xff]
        %v459 = vld [vmem:[%s440 + $0x10] sm:$0xff]
        %v460 = vld [vmem:[%s440 + $0x18] sm:$0xff]
        %v461 = vld [vmem:[%s440 + $0x20] sm:$0xff]
        %v462 = vld [vmem:[%s440 + $0x28] sm:$0xff]
        %v463 = vld [vmem:[%s440 + $0x30] sm:$0xf]
        %v464 = vld [vmem:[%s440 + $0x34] sm:$0xff]
        %v465 = vld [vmem:[%s440 + $0x3c] sm:$0xff]
        %v466 = vld [vmem:[%s440 + $0x44] sm:$0xff]
        %v467 = vld [vmem:[%s440 + $0x4c] sm:$0xff]
        %v468 = vld [vmem:[%s440 + $0x54] sm:$0xff]
        %v469 = vld [vmem:[%s440 + $0x5c] sm:$0xff]
        %v470 = vld [vmem:[%s440 + $0x64] sm:$0xf]
        %v471 = vld [vmem:[%s1] sm:$0xf]
        %v472 = vld [vmem:[%s1 + $0x4] sm:$0xf]
        %v473 = vld [vmem:[%s1 + $0x8] sm:$0xf]
        %v474 = vld [vmem:[%s1 + $0xc] sm:$0xf]
        %v475 = vld [vmem:[%s1 + $0x10] sm:$0xf]
        %v476 = vld [vmem:[%s1 + $0x14] sm:$0xf]
        %v477 = vld [vmem:[%s1 + $0x18] sm:$0xf]
        %v478 = vld [vmem:[%s1 + $0x1c] sm:$0xf]
        %v479 = vld [vmem:[%s1 + $0x20] sm:$0xf]
        %v480 = vld [vmem:[%s1 + $0x24] sm:$0xf]
        %v481 = vld [vmem:[%s1 + $0x28] sm:$0xf]
        %v482 = vld [vmem:[%s1 + $0x2c] sm:$0xf]
        %v483 = vld [vmem:[%s1 + $0x30] sm:$0xf]
        %v484 = vld [vmem:[%s1 + $0x34] sm:$0xf]
        %v485 = vld [vmem:[%s1 + $0x38] sm:$0xf]
        %v486 = vld [vmem:[%s1 + $0x3c] sm:$0xf]
        %v487 = vld [vmem:[%s1 + $0x40] sm:$0xf]
        %v488 = vld [vmem:[%s1 + $0x44] sm:$0xf]
        %v489 = vld [vmem:[%s1 + $0x48] sm:$0xf]
        %v490 = vld [vmem:[%s1 + $0x4c] sm:$0xf]
        %v491 = vld [vmem:[%s1 + $0x50] sm:$0xf]
        %v492 = vld [vmem:[%s1 + $0x54] sm:$0xf]
        %v493 = vld [vmem:[%s1 + $0x58] sm:$0xf]
        %v494 = vld [vmem:[%s1 + $0x5c] sm:$0xf]
        %v495 = vld [vmem:[%s1 + $0x60] sm:$0xf]
        %v496 = vld [vmem:[%s1 + $0x64] sm:$0xf]
        %v497 = vld [vmem:[%s1 + $0x68] sm:$0xf]
        %v498 = vld [vmem:[%s1 + $0x6c] sm:$0xf]
        %v499 = vld [vmem:[%s1 + $0x70] sm:$0xf]
        %v500 = vld [vmem:[%s1 + $0x74] sm:$0xf]
        %v501 = vld [vmem:[%s1 + $0x78] sm:$0xf]
        %v502 = vld [vmem:[%s1 + $0x7c] sm:$0xf]
        %v503 = vld [vmem:[%s1 + $0x80] sm:$0xf]
        %v504 = vld [vmem:[%s1 + $0x84] sm:$0xf]
        %v505 = vld [vmem:[%s1 + $0x88] sm:$0xf]
        %v506 = vld [vmem:[%s1 + $0x8c] sm:$0xf]
        %v507 = vld [vmem:[%s1 + $0x90] sm:$0xf]
        %v508 = vld [vmem:[%s1 + $0x94] sm:$0xf]
        %v509 = vld [vmem:[%s1 + $0x98] sm:$0xf]
        %v510 = vld [vmem:[%s1 + $0x9c] sm:$0xf]
        %v511 = vld [vmem:[%s1 + $0xa0] sm:$0xf]
        %v512 = vld [vmem:[%s1 + $0xa4] sm:$0xf]
        %v513 = vld [vmem:[%s1 + $0xa8] sm:$0xf]
        %v514 = vld [vmem:[%s1 + $0xac] sm:$0xf]
        %v515 = vld [vmem:[%s1 + $0xb0] sm:$0xf]
        %v516 = vld [vmem:[%s1 + $0xb4] sm:$0xf]
        %v517 = vld [vmem:[%s1 + $0xb8] sm:$0xf]
        %v518 = vld [vmem:[%s1 + $0xbc] sm:$0xf]
        %v519 = vld [vmem:[%s1 + $0xc0] sm:$0xf]
        %v520 = vld [vmem:[%s1 + $0xc4] sm:$0xf]
        %v521 = vld [vmem:[%s1 + $0xc8] sm:$0xf]
        %v522 = vld [vmem:[%s1 + $0xcc] sm:$0xf]
        %v523 = vld [vmem:[%s1 + $0xd0] sm:$0xf]
        %v524 = vld [vmem:[%s1 + $0xd4] sm:$0xf]
        %v525 = vld [vmem:[%s1 + $0xd8] sm:$0xf]
        %v526 = vld [vmem:[%s1 + $0xdc] sm:$0xf]
        %v527 = vld [vmem:[%s1 + $0xe0] sm:$0xf]
        %v528 = vld [vmem:[%s1 + $0xe4] sm:$0xf]
        %v529 = vld [vmem:[%s1 + $0xe8] sm:$0xf]
        %v530 = vld [vmem:[%s1 + $0xec] sm:$0xf]
        %v531 = vld [vmem:[%s1 + $0xf0] sm:$0xf]
        %v532 = vld [vmem:[%s1 + $0xf4] sm:$0xf]
        %v533 = vld [vmem:[%s1 + $0xf8] sm:$0xf]
        %v534 = vld [vmem:[%s1 + $0xfc] sm:$0xf]
        %v535 = vld [vmem:[%s1 + $0x100] sm:$0xf]
        %v536 = vld [vmem:[%s1 + $0x104] sm:$0xf]
        %v537 = vld [vmem:[%s1 + $0x108] sm:$0xf]
        %v538 = vld [vmem:[%s1 + $0x10c] sm:$0xf]
        %v539 = vld [vmem:[%s1 + $0x110] sm:$0xf]
        %v540 = vld [vmem:[%s1 + $0x114] sm:$0xf]
        %v541 = vld [vmem:[%s1 + $0x118] sm:$0xf]
        %v542 = vld [vmem:[%s1 + $0x11c] sm:$0xf]
        %v543 = vld [vmem:[%s1 + $0x120] sm:$0xf]
        %v544 = vld [vmem:[%s1 + $0x124] sm:$0xf]
        %v545 = vld [vmem:[%s1 + $0x128] sm:$0xf]
        %v546 = vld [vmem:[%s1 + $0x12c] sm:$0xf]
        %v547 = vld [vmem:[%s1 + $0x130] sm:$0xf]
        %v548 = vld [vmem:[%s1 + $0x134] sm:$0xf]
        %v549 = vld [vmem:[%s1 + $0x138] sm:$0xf]
        %v550 = vld [vmem:[%s1 + $0x13c] sm:$0xf]
        %v551 = vld [vmem:[%s1 + $0x140] sm:$0xf]
        %v552 = vld [vmem:[%s1 + $0x144] sm:$0xf]
        %v553 = vld [vmem:[%s1 + $0x148] sm:$0xf]
        %v554 = vld [vmem:[%s1 + $0x14c] sm:$0xf]
        %v555 = vld [vmem:[%s1 + $0x150] sm:$0xf]
        %v556 = vld [vmem:[%s1 + $0x154] sm:$0xf]
        %v557 = vld [vmem:[%s1 + $0x158] sm:$0xf]
        %v558 = vld [vmem:[%s1 + $0x15c] sm:$0xf]
        %v559 = vld [vmem:[%s1 + $0x160] sm:$0xf]
        %v560 = vld [vmem:[%s1 + $0x164] sm:$0xf]
        %v561 = vld [vmem:[%s1 + $0x168] sm:$0xf]
        %v562 = vld [vmem:[%s1 + $0x16c] sm:$0xf]
        %v563 = vld [vmem:[%s1 + $0x170] sm:$0xf]
        %v564 = vld [vmem:[%s1 + $0x174] sm:$0xf]
        %v565 = vld [vmem:[%s1 + $0x178] sm:$0xf]
        %v566 = vld [vmem:[%s1 + $0x17c] sm:$0xf]
        %v567 = vld [vmem:[%s1 + $0x180] sm:$0xf]
        %v568 = vld [vmem:[%s1 + $0x184] sm:$0xf]
        %v569 = vld [vmem:[%s1 + $0x188] sm:$0xf]
        %v570 = vld [vmem:[%s1 + $0x18c] sm:$0xf]
        %v571 = vld [vmem:[%s1 + $0x190] sm:$0xf]
        %v572 = vld [vmem:[%s1 + $0x194] sm:$0xf]
        %v573 = vld [vmem:[%s1 + $0x198] sm:$0xf]
        %v574 = vld [vmem:[%s1 + $0x19c] sm:$0xf]
        %v575 = vld [vmem:[%s1 + $0x1a0] sm:$0xf]
        %v576 = vld [vmem:[%s1 + $0x1a4] sm:$0xf]
        %v577 = vld [vmem:[%s1 + $0x1a8] sm:$0xf]
        %v578 = vld [vmem:[%s1 + $0x1ac] sm:$0xf]
        %v579 = vld [vmem:[%s1 + $0x1b0] sm:$0xf]
        %v580 = vld [vmem:[%s1 + $0x1b4] sm:$0xf]
        %v581 = vld [vmem:[%s1 + $0x1b8] sm:$0xf]
        %v582 = vld [vmem:[%s1 + $0x1bc] sm:$0xf]
        %v583 = vld [vmem:[%s1 + $0x1c0] sm:$0xf]
        %v584 = vld [vmem:[%s1 + $0x1c4] sm:$0xf]
        %v585 = vld [vmem:[%s1 + $0x1c8] sm:$0xf]
        %v586 = vld [vmem:[%s1 + $0x1cc] sm:$0xf]
        %v587 = vld [vmem:[%s1 + $0x1d0] sm:$0xf]
        %v588 = vld [vmem:[%s1 + $0x1d4] sm:$0xf]
        %v589 = vld [vmem:[%s1 + $0x1d8] sm:$0xf]
        %v590 = vld [vmem:[%s1 + $0x1dc] sm:$0xf]
        %v591 = vld [vmem:[%s1 + $0x1e0] sm:$0xf]
        %v592 = vld [vmem:[%s1 + $0x1e4] sm:$0xf]
        %v593 = vld [vmem:[%s1 + $0x1e8] sm:$0xf]
        %v594 = vld [vmem:[%s1 + $0x1ec] sm:$0xf]
        %v595 = vld [vmem:[%s1 + $0x1f0] sm:$0xf]
        %v596 = vld [vmem:[%s1 + $0x1f4] sm:$0xf]
        %v597 = vld [vmem:[%s1 + $0x1f8] sm:$0xf]
        %v598 = vld [vmem:[%s1 + $0x1fc] sm:$0xf]
        %v599 = vld [vmem:[%s1 + $0x200] sm:$0xf]
        %v600 = vld [vmem:[%s1 + $0x204] sm:$0xf]
        %v601 = vld [vmem:[%s1 + $0x208] sm:$0xf]
        %v602 = vld [vmem:[%s1 + $0x20c] sm:$0xf]
        %v603 = vld [vmem:[%s1 + $0x210] sm:$0xf]
        %v604 = vld [vmem:[%s1 + $0x214] sm:$0xf]
        %v605 = vld [vmem:[%s1 + $0x218] sm:$0xf]
        %v606 = vld [vmem:[%s1 + $0x21c] sm:$0xf]
        %v607 = vld [vmem:[%s1 + $0x220] sm:$0xf]
        %v608 = vld [vmem:[%s1 + $0x224] sm:$0xf]
        %v609 = vld [vmem:[%s1 + $0x228] sm:$0xf]
        %v610 = vld [vmem:[%s1 + $0x22c] sm:$0xf]
        %v611 = vld [vmem:[%s1 + $0x230] sm:$0xf]
        %v612 = vld [vmem:[%s1 + $0x234] sm:$0xf]
        %v613 = vld [vmem:[%s1 + $0x238] sm:$0xf]
        %v614 = vld [vmem:[%s1 + $0x23c] sm:$0xf]
        %v615 = vld [vmem:[%s1 + $0x240] sm:$0xf]
        %v616 = vld [vmem:[%s1 + $0x244] sm:$0xf]
        %v617 = vld [vmem:[%s1 + $0x248] sm:$0xf]
        %v618 = vld [vmem:[%s1 + $0x24c] sm:$0xf]
        %v619 = vld [vmem:[%s1 + $0x250] sm:$0xf]
        %v620 = vld [vmem:[%s1 + $0x254] sm:$0xf]
        %v621 = vld [vmem:[%s1 + $0x258] sm:$0xf]
        %v622 = vld [vmem:[%s1 + $0x25c] sm:$0xf]
        %v623 = vld [vmem:[%s1 + $0x260] sm:$0xf]
        %v624 = vld [vmem:[%s1 + $0x264] sm:$0xf]
        %v625 = vld [vmem:[%s1 + $0x268] sm:$0xf]
        %v626 = vld [vmem:[%s1 + $0x26c] sm:$0xf]
        %v627 = vld [vmem:[%s1 + $0x270] sm:$0xf]
        %v628 = vld [vmem:[%s1 + $0x274] sm:$0xf]
        %v629 = vld [vmem:[%s1 + $0x278] sm:$0xf]
        %v630 = vld [vmem:[%s1 + $0x27c] sm:$0xf]
        %v631 = vld [vmem:[%s1 + $0x280] sm:$0xf]
        %v632 = vld [vmem:[%s1 + $0x284] sm:$0xf]
        %v633 = vld [vmem:[%s1 + $0x288] sm:$0xf]
        %v634 = vld [vmem:[%s1 + $0x28c] sm:$0xf]
        %v635 = vld [vmem:[%s1 + $0x290] sm:$0xf]
        %v636 = vld [vmem:[%s1 + $0x294] sm:$0xf]
        %v637 = vld [vmem:[%s1 + $0x298] sm:$0xf]
        %v638 = vld [vmem:[%s1 + $0x29c] sm:$0xf]
        %v639 = vld [vmem:[%s1 + $0x2a0] sm:$0xf]
        %v640 = vld [vmem:[%s1 + $0x2a4] sm:$0xf]
        %v641 = vld [vmem:[%s1 + $0x2a8] sm:$0xf]
        %v642 = vld [vmem:[%s1 + $0x2ac] sm:$0xf]
        %v643 = vld [vmem:[%s1 + $0x2b0] sm:$0xf]
        %v644 = vld [vmem:[%s1 + $0x2b4] sm:$0xf]
        %v645 = vld [vmem:[%s1 + $0x2b8] sm:$0xf]
        %v646 = vld [vmem:[%s1 + $0x2bc] sm:$0xf]
        %v647 = vld [vmem:[%s1 + $0x2c0] sm:$0xf]
        %v648 = vld [vmem:[%s1 + $0x2c4] sm:$0xf]
        %v649 = vld [vmem:[%s1 + $0x2c8] sm:$0xf]
        %v650 = vld [vmem:[%s1 + $0x2cc] sm:$0xf]
        %v651 = vld [vmem:[%s1 + $0x2d0] sm:$0xf]
        %v652 = vld [vmem:[%s1 + $0x2d4] sm:$0xf]
        %v653 = vld [vmem:[%s1 + $0x2d8] sm:$0xf]
        %v654 = vld [vmem:[%s1 + $0x2dc] sm:$0xf]
        %v655 = vld [vmem:[%s1 + $0x2e0] sm:$0xf]
        %v656 = vld [vmem:[%s1 + $0x2e4] sm:$0xf]
        %v657 = vld [vmem:[%s1 + $0x2e8] sm:$0xf]
        %v658 = vld [vmem:[%s1 + $0x2ec] sm:$0xf]
        %v659 = vld [vmem:[%s1 + $0x2f0] sm:$0xf]
        %v660 = vld [vmem:[%s1 + $0x2f4] sm:$0xf]
        %v661 = vld [vmem:[%s1 + $0x2f8] sm:$0xf]
        %v662 = vld [vmem:[%s1 + $0x2fc] sm:$0xf]
        %v663 = vld [vmem:[%s1 + $0x300] sm:$0xf]
        %v664 = vld [vmem:[%s1 + $0x304] sm:$0xf]
        %v665 = vld [vmem:[%s1 + $0x308] sm:$0xf]
        %v666 = vld [vmem:[%s1 + $0x30c] sm:$0xf]
        %v667 = vld [vmem:[%s2] sm:$0x1]
        %v669 = vlaneseq
        %v670 = vshrl.u32 %v669, 7
        %v671 = vsub.s32 0, %v670
        %v672 = vrot.slane %v667, %v671
        %v688 = vunpack.c.l.b16 %v457
        %v689 = vunpack.c.h.b16 %v457
        %v690 = vunpack.c.l.b16 %v458
        %v691 = vunpack.c.h.b16 %v458
        %v692 = vunpack.c.l.b16 %v459
        %v693 = vunpack.c.h.b16 %v459
        %v694 = vunpack.c.l.b16 %v460
        %v695 = vunpack.c.h.b16 %v460
        %v696 = vunpack.c.l.b16 %v461
        %v697 = vunpack.c.h.b16 %v461
        %v698 = vunpack.c.l.b16 %v462
        %v699 = vunpack.c.h.b16 %v462
        %v700 = vunpack.c.l.b16 %v463
        %v701 = vunpack.c.l.b16 %v464
        %v702 = vunpack.c.h.b16 %v464
        %v703 = vunpack.c.l.b16 %v465
        %v704 = vunpack.c.h.b16 %v465
        %v705 = vunpack.c.l.b16 %v466
        %v706 = vunpack.c.h.b16 %v466
        %v707 = vunpack.c.l.b16 %v467
        %v708 = vunpack.c.h.b16 %v467
        %v709 = vunpack.c.l.b16 %v468
        %v710 = vunpack.c.h.b16 %v468
        %v711 = vunpack.c.l.b16 %v469
        %v712 = vunpack.c.h.b16 %v469
        %v713 = vunpack.c.l.b16 %v470
        %v714 = vpack.c.b16 %v701, %v688
        %v715 = vpack.c.b16 %v702, %v689
        %v716 = vpack.c.b16 %v703, %v690
        %v717 = vpack.c.b16 %v704, %v691
        %v718 = vpack.c.b16 %v705, %v692
        %v719 = vpack.c.b16 %v706, %v693
        %v720 = vpack.c.b16 %v707, %v694
        %v721 = vpack.c.b16 %v708, %v695
        %v722 = vpack.c.b16 %v709, %v696
        %v723 = vpack.c.b16 %v710, %v697
        %v724 = vpack.c.b16 %v711, %v698
        %v725 = vpack.c.b16 %v712, %v699
        %v726 = vpack.c.b16 %v713, %v700
        %v935 = vunpack.c.l.b16 %v471
        %v936 = vunpack.c.l.b16 %v472
        %v937 = vunpack.c.l.b16 %v473
        %v938 = vunpack.c.l.b16 %v474
        %v939 = vunpack.c.l.b16 %v475
        %v940 = vunpack.c.l.b16 %v476
        %v941 = vunpack.c.l.b16 %v477
        %v942 = vunpack.c.l.b16 %v478
        %v943 = vunpack.c.l.b16 %v479
        %v944 = vunpack.c.l.b16 %v480
        %v945 = vunpack.c.l.b16 %v481
        %v946 = vunpack.c.l.b16 %v482
        %v947 = vunpack.c.l.b16 %v483
        %v948 = vunpack.c.l.b16 %v484
        %v949 = vunpack.c.l.b16 %v485
        %v950 = vunpack.c.l.b16 %v486
        %v951 = vunpack.c.l.b16 %v487
        %v952 = vunpack.c.l.b16 %v488
        %v953 = vunpack.c.l.b16 %v489
        %v954 = vunpack.c.l.b16 %v490
        %v955 = vunpack.c.l.b16 %v491
        %v956 = vunpack.c.l.b16 %v492
        %v957 = vunpack.c.l.b16 %v493
        %v958 = vunpack.c.l.b16 %v494
        %v959 = vunpack.c.l.b16 %v495
        %v960 = vunpack.c.l.b16 %v496
        %v961 = vunpack.c.l.b16 %v497
        %v962 = vunpack.c.l.b16 %v498
        %v963 = vunpack.c.l.b16 %v499
        %v964 = vunpack.c.l.b16 %v500
        %v965 = vunpack.c.l.b16 %v501
        %v966 = vunpack.c.l.b16 %v502
        %v967 = vunpack.c.l.b16 %v503
        %v968 = vunpack.c.l.b16 %v504
        %v969 = vunpack.c.l.b16 %v505
        %v970 = vunpack.c.l.b16 %v506
        %v971 = vunpack.c.l.b16 %v507
        %v972 = vunpack.c.l.b16 %v508
        %v973 = vunpack.c.l.b16 %v509
        %v974 = vunpack.c.l.b16 %v510
        %v975 = vunpack.c.l.b16 %v511
        %v976 = vunpack.c.l.b16 %v512
        %v977 = vunpack.c.l.b16 %v513
        %v978 = vunpack.c.l.b16 %v514
        %v979 = vunpack.c.l.b16 %v515
        %v980 = vunpack.c.l.b16 %v516
        %v981 = vunpack.c.l.b16 %v517
        %v982 = vunpack.c.l.b16 %v518
        %v983 = vunpack.c.l.b16 %v519
        %v984 = vunpack.c.l.b16 %v520
        %v985 = vunpack.c.l.b16 %v521
        %v986 = vunpack.c.l.b16 %v522
        %v987 = vunpack.c.l.b16 %v523
        %v988 = vunpack.c.l.b16 %v524
        %v989 = vunpack.c.l.b16 %v525
        %v990 = vunpack.c.l.b16 %v526
        %v991 = vunpack.c.l.b16 %v527
        %v992 = vunpack.c.l.b16 %v528
        %v993 = vunpack.c.l.b16 %v529
        %v994 = vunpack.c.l.b16 %v530
        %v995 = vunpack.c.l.b16 %v531
        %v996 = vunpack.c.l.b16 %v532
        %v997 = vunpack.c.l.b16 %v533
        %v998 = vunpack.c.l.b16 %v534
        %v999 = vunpack.c.l.b16 %v535
        %v1000 = vunpack.c.l.b16 %v536
        %v1001 = vunpack.c.l.b16 %v537
        %v1002 = vunpack.c.l.b16 %v538
        %v1003 = vunpack.c.l.b16 %v539
        %v1004 = vunpack.c.l.b16 %v540
        %v1005 = vunpack.c.l.b16 %v541
        %v1006 = vunpack.c.l.b16 %v542
        %v1007 = vunpack.c.l.b16 %v543
        %v1008 = vunpack.c.l.b16 %v544
        %v1009 = vunpack.c.l.b16 %v545
        %v1010 = vunpack.c.l.b16 %v546
        %v1011 = vunpack.c.l.b16 %v547
        %v1012 = vunpack.c.l.b16 %v548
        %v1013 = vunpack.c.l.b16 %v549
        %v1014 = vunpack.c.l.b16 %v550
        %v1015 = vunpack.c.l.b16 %v551
        %v1016 = vunpack.c.l.b16 %v552
        %v1017 = vunpack.c.l.b16 %v553
        %v1018 = vunpack.c.l.b16 %v554
        %v1019 = vunpack.c.l.b16 %v555
        %v1020 = vunpack.c.l.b16 %v556
        %v1021 = vunpack.c.l.b16 %v557
        %v1022 = vunpack.c.l.b16 %v558
        %v1023 = vunpack.c.l.b16 %v559
        %v1024 = vunpack.c.l.b16 %v560
        %v1025 = vunpack.c.l.b16 %v561
        %v1026 = vunpack.c.l.b16 %v562
        %v1027 = vunpack.c.l.b16 %v563
        %v1028 = vunpack.c.l.b16 %v564
        %v1029 = vunpack.c.l.b16 %v565
        %v1030 = vunpack.c.l.b16 %v566
        %v1031 = vunpack.c.l.b16 %v567
        %v1032 = vunpack.c.l.b16 %v568
        %v1033 = vunpack.c.l.b16 %v569
        %v1034 = vunpack.c.l.b16 %v570
        %v1035 = vunpack.c.l.b16 %v571
        %v1036 = vunpack.c.l.b16 %v572
        %v1037 = vunpack.c.l.b16 %v573
        %v1038 = vunpack.c.l.b16 %v574
        %v1039 = vunpack.c.l.b16 %v575
        %v1040 = vunpack.c.l.b16 %v576
        %v1041 = vunpack.c.l.b16 %v577
        %v1042 = vunpack.c.l.b16 %v578
        %v1043 = vunpack.c.l.b16 %v579
        %v1044 = vunpack.c.l.b16 %v580
        %v1045 = vunpack.c.l.b16 %v581
        %v1046 = vunpack.c.l.b16 %v582
        %v1047 = vunpack.c.l.b16 %v583
        %v1048 = vunpack.c.l.b16 %v584
        %v1049 = vunpack.c.l.b16 %v585
        %v1050 = vunpack.c.l.b16 %v586
        %v1051 = vunpack.c.l.b16 %v587
        %v1052 = vunpack.c.l.b16 %v588
        %v1053 = vunpack.c.l.b16 %v589
        %v1054 = vunpack.c.l.b16 %v590
        %v1055 = vunpack.c.l.b16 %v591
        %v1056 = vunpack.c.l.b16 %v592
        %v1057 = vunpack.c.l.b16 %v593
        %v1058 = vunpack.c.l.b16 %v594
        %v1059 = vunpack.c.l.b16 %v595
        %v1060 = vunpack.c.l.b16 %v596
        %v1061 = vunpack.c.l.b16 %v597
        %v1062 = vunpack.c.l.b16 %v598
        %v1063 = vunpack.c.l.b16 %v599
        %v1064 = vunpack.c.l.b16 %v600
        %v1065 = vunpack.c.l.b16 %v601
        %v1066 = vunpack.c.l.b16 %v602
        %v1067 = vunpack.c.l.b16 %v603
        %v1068 = vunpack.c.l.b16 %v604
        %v1069 = vunpack.c.l.b16 %v605
        %v1070 = vunpack.c.l.b16 %v606
        %v1071 = vunpack.c.l.b16 %v607
        %v1072 = vunpack.c.l.b16 %v608
        %v1073 = vunpack.c.l.b16 %v609
        %v1074 = vunpack.c.l.b16 %v610
        %v1075 = vunpack.c.l.b16 %v611
        %v1076 = vunpack.c.l.b16 %v612
        %v1077 = vunpack.c.l.b16 %v613
        %v1078 = vunpack.c.l.b16 %v614
        %v1079 = vunpack.c.l.b16 %v615
        %v1080 = vunpack.c.l.b16 %v616
        %v1081 = vunpack.c.l.b16 %v617
        %v1082 = vunpack.c.l.b16 %v618
        %v1083 = vunpack.c.l.b16 %v619
        %v1084 = vunpack.c.l.b16 %v620
        %v1085 = vunpack.c.l.b16 %v621
        %v1086 = vunpack.c.l.b16 %v622
        %v1087 = vunpack.c.l.b16 %v623
        %v1088 = vunpack.c.l.b16 %v624
        %v1089 = vunpack.c.l.b16 %v625
        %v1090 = vunpack.c.l.b16 %v626
        %v1091 = vunpack.c.l.b16 %v627
        %v1092 = vunpack.c.l.b16 %v628
        %v1093 = vunpack.c.l.b16 %v629
        %v1094 = vunpack.c.l.b16 %v630
        %v1095 = vunpack.c.l.b16 %v631
        %v1096 = vunpack.c.l.b16 %v632
        %v1097 = vunpack.c.l.b16 %v633
        %v1098 = vunpack.c.l.b16 %v634
        %v1099 = vunpack.c.l.b16 %v635
        %v1100 = vunpack.c.l.b16 %v636
        %v1101 = vunpack.c.l.b16 %v637
        %v1102 = vunpack.c.l.b16 %v638
        %v1103 = vunpack.c.l.b16 %v639
        %v1104 = vunpack.c.l.b16 %v640
        %v1105 = vunpack.c.l.b16 %v641
        %v1106 = vunpack.c.l.b16 %v642
        %v1107 = vunpack.c.l.b16 %v643
        %v1108 = vunpack.c.l.b16 %v644
        %v1109 = vunpack.c.l.b16 %v645
        %v1110 = vunpack.c.l.b16 %v646
        %v1111 = vunpack.c.l.b16 %v647
        %v1112 = vunpack.c.l.b16 %v648
        %v1113 = vunpack.c.l.b16 %v649
        %v1114 = vunpack.c.l.b16 %v650
        %v1115 = vunpack.c.l.b16 %v651
        %v1116 = vunpack.c.l.b16 %v652
        %v1117 = vunpack.c.l.b16 %v653
        %v1118 = vunpack.c.l.b16 %v654
        %v1119 = vunpack.c.l.b16 %v655
        %v1120 = vunpack.c.l.b16 %v656
        %v1121 = vunpack.c.l.b16 %v657
        %v1122 = vunpack.c.l.b16 %v658
        %v1123 = vunpack.c.l.b16 %v659
        %v1124 = vunpack.c.l.b16 %v660
        %v1125 = vunpack.c.l.b16 %v661
        %v1126 = vunpack.c.l.b16 %v662
        %v1127 = vunpack.c.l.b16 %v663
        %v1128 = vunpack.c.l.b16 %v664
        %v1129 = vunpack.c.l.b16 %v665
        %v1130 = vunpack.c.l.b16 %v666
        %v1131 = vpack.c.b16 %v936, %v935
        %v1132 = vpack.c.b16 %v938, %v937
        %v1133 = vpack.c.b16 %v940, %v939
        %v1134 = vpack.c.b16 %v942, %v941
        %v1135 = vpack.c.b16 %v944, %v943
        %v1136 = vpack.c.b16 %v946, %v945
        %v1137 = vpack.c.b16 %v948, %v947
        %v1138 = vpack.c.b16 %v950, %v949
        %v1139 = vpack.c.b16 %v952, %v951
        %v1140 = vpack.c.b16 %v954, %v953
        %v1141 = vpack.c.b16 %v956, %v955
        %v1142 = vpack.c.b16 %v958, %v957
        %v1143 = vpack.c.b16 %v960, %v959
        %v1144 = vpack.c.b16 %v962, %v961
        %v1145 = vpack.c.b16 %v964, %v963
        %v1146 = vpack.c.b16 %v966, %v965
        %v1147 = vpack.c.b16 %v968, %v967
        %v1148 = vpack.c.b16 %v970, %v969
        %v1149 = vpack.c.b16 %v972, %v971
        %v1150 = vpack.c.b16 %v974, %v973
        %v1151 = vpack.c.b16 %v976, %v975
        %v1152 = vpack.c.b16 %v978, %v977
        %v1153 = vpack.c.b16 %v980, %v979
        %v1154 = vpack.c.b16 %v982, %v981
        %v1155 = vpack.c.b16 %v984, %v983
        %v1156 = vpack.c.b16 %v986, %v985
        %v1157 = vpack.c.b16 %v988, %v987
        %v1158 = vpack.c.b16 %v990, %v989
        %v1159 = vpack.c.b16 %v992, %v991
        %v1160 = vpack.c.b16 %v994, %v993
        %v1161 = vpack.c.b16 %v996, %v995
        %v1162 = vpack.c.b16 %v998, %v997
        %v1163 = vpack.c.b16 %v1000, %v999
        %v1164 = vpack.c.b16 %v1002, %v1001
        %v1165 = vpack.c.b16 %v1004, %v1003
        %v1166 = vpack.c.b16 %v1006, %v1005
        %v1167 = vpack.c.b16 %v1008, %v1007
        %v1168 = vpack.c.b16 %v1010, %v1009
        %v1169 = vpack.c.b16 %v1012, %v1011
        %v1170 = vpack.c.b16 %v1014, %v1013
        %v1171 = vpack.c.b16 %v1016, %v1015
        %v1172 = vpack.c.b16 %v1018, %v1017
        %v1173 = vpack.c.b16 %v1020, %v1019
        %v1174 = vpack.c.b16 %v1022, %v1021
        %v1175 = vpack.c.b16 %v1024, %v1023
        %v1176 = vpack.c.b16 %v1026, %v1025
        %v1177 = vpack.c.b16 %v1028, %v1027
        %v1178 = vpack.c.b16 %v1030, %v1029
        %v1179 = vpack.c.b16 %v1032, %v1031
        %v1180 = vpack.c.b16 %v1034, %v1033
        %v1181 = vpack.c.b16 %v1036, %v1035
        %v1182 = vpack.c.b16 %v1038, %v1037
        %v1183 = vpack.c.b16 %v1040, %v1039
        %v1184 = vpack.c.b16 %v1042, %v1041
        %v1185 = vpack.c.b16 %v1044, %v1043
        %v1186 = vpack.c.b16 %v1046, %v1045
        %v1187 = vpack.c.b16 %v1048, %v1047
        %v1188 = vpack.c.b16 %v1050, %v1049
        %v1189 = vpack.c.b16 %v1052, %v1051
        %v1190 = vpack.c.b16 %v1054, %v1053
        %v1191 = vpack.c.b16 %v1056, %v1055
        %v1192 = vpack.c.b16 %v1058, %v1057
        %v1193 = vpack.c.b16 %v1060, %v1059
        %v1194 = vpack.c.b16 %v1062, %v1061
        %v1195 = vpack.c.b16 %v1064, %v1063
        %v1196 = vpack.c.b16 %v1066, %v1065
        %v1197 = vpack.c.b16 %v1068, %v1067
        %v1198 = vpack.c.b16 %v1070, %v1069
        %v1199 = vpack.c.b16 %v1072, %v1071
        %v1200 = vpack.c.b16 %v1074, %v1073
        %v1201 = vpack.c.b16 %v1076, %v1075
        %v1202 = vpack.c.b16 %v1078, %v1077
        %v1203 = vpack.c.b16 %v1080, %v1079
        %v1204 = vpack.c.b16 %v1082, %v1081
        %v1205 = vpack.c.b16 %v1084, %v1083
        %v1206 = vpack.c.b16 %v1086, %v1085
        %v1207 = vpack.c.b16 %v1088, %v1087
        %v1208 = vpack.c.b16 %v1090, %v1089
        %v1209 = vpack.c.b16 %v1092, %v1091
        %v1210 = vpack.c.b16 %v1094, %v1093
        %v1211 = vpack.c.b16 %v1096, %v1095
        %v1212 = vpack.c.b16 %v1098, %v1097
        %v1213 = vpack.c.b16 %v1100, %v1099
        %v1214 = vpack.c.b16 %v1102, %v1101
        %v1215 = vpack.c.b16 %v1104, %v1103
        %v1216 = vpack.c.b16 %v1106, %v1105
        %v1217 = vpack.c.b16 %v1108, %v1107
        %v1218 = vpack.c.b16 %v1110, %v1109
        %v1219 = vpack.c.b16 %v1112, %v1111
        %v1220 = vpack.c.b16 %v1114, %v1113
        %v1221 = vpack.c.b16 %v1116, %v1115
        %v1222 = vpack.c.b16 %v1118, %v1117
        %v1223 = vpack.c.b16 %v1120, %v1119
        %v1224 = vpack.c.b16 %v1122, %v1121
        %v1225 = vpack.c.b16 %v1124, %v1123
        %v1226 = vpack.c.b16 %v1126, %v1125
        %v1227 = vpack.c.b16 %v1128, %v1127
        %v1228 = vpack.c.b16 %v1130, %v1129
        %vm1327 = vcmask 261120
        %v1329 = vsel %vm1327, %v726, 0
        %1331 = vmatprep.subr.bf16.mxu0 0
        %1332 = vmatpush1.bf16.msra.mxu0 %v1138
        %1333 = vmatprep.subr.bf16.mxu0 0
        %1334 = vmatpush1.bf16.msra.mxu0 %v1137
        %1335 = vmatprep.subr.bf16.mxu0 0
        %1336 = vmatpush1.bf16.msra.mxu0 %v1136
        %1337 = vmatprep.subr.bf16.mxu0 0
        %1338 = vmatpush1.bf16.msra.mxu0 %v1135
        %1339 = vmatprep.subr.bf16.mxu0 0
        %1340 = vmatpush1.bf16.msra.mxu0 %v1134
        %1341 = vmatprep.subr.bf16.mxu0 0
        %1342 = vmatpush1.bf16.msra.mxu0 %v1133
        %1343 = vmatprep.subr.bf16.mxu0 0
        %1344 = vmatpush1.bf16.msra.mxu0 %v1132
        %1345 = vmatprep.subr.bf16.mxu0 0
        %1346 = vmatpush1.bf16.msra.mxu0 %v1131
        %1347 = vmatprep.subr.bf16.mxu0 0
        %1348 = vmatpush2.bf16.msra.mxu0 %v1146
        %1349 = vmatprep.subr.bf16.mxu0 0
        %1350 = vmatpush2.bf16.msra.mxu0 %v1145
        %1351 = vmatprep.subr.bf16.mxu0 0
        %1352 = vmatpush2.bf16.msra.mxu0 %v1144
        %1353 = vmatprep.subr.bf16.mxu0 0
        %1354 = vmatpush2.bf16.msra.mxu0 %v1143
        %1355 = vmatprep.subr.bf16.mxu0 0
        %1356 = vmatpush2.bf16.msra.mxu0 %v1142
        %1357 = vmatprep.subr.bf16.mxu0 0
        %1358 = vmatpush2.bf16.msra.mxu0 %v1141
        %1359 = vmatprep.subr.bf16.mxu0 0
        %1360 = vmatpush2.bf16.msra.mxu0 %v1140
        %1361 = vmatprep.subr.bf16.mxu0 0
        %1362 = vmatpush2.bf16.msra.mxu0 %v1139
        %1363 = vmatprep.mubr.bf16.mxu0 %v715
        %1364 = vmatmul.mubr.bf16.gmra.mxu0 %v714
        %v1365 = vpop.f32.mrf.mxu0
        %v1366 = vadd.f32 %v672, %v1365
        %v1367 = vpop.f32.mrf.mxu0
        %v1368 = vpop.f32.mrf.mxu0
        %v1369 = vadd.f32 %v672, %v1368
        %v1370 = vpop.f32.mrf.mxu0
        %1371 = vdwg.mxu0
        %1372 = vmatprep.subr.bf16.mxu0 0
        %1373 = vmatpush1.bf16.msra.mxu0 %v1154
        %1374 = vmatprep.subr.bf16.mxu0 0
        %1375 = vmatpush1.bf16.msra.mxu0 %v1153
        %1376 = vmatprep.subr.bf16.mxu0 0
        %1377 = vmatpush1.bf16.msra.mxu0 %v1152
        %1378 = vmatprep.subr.bf16.mxu0 0
        %1379 = vmatpush1.bf16.msra.mxu0 %v1151
        %1380 = vmatprep.subr.bf16.mxu0 0
        %1381 = vmatpush1.bf16.msra.mxu0 %v1150
        %1382 = vmatprep.subr.bf16.mxu0 0
        %1383 = vmatpush1.bf16.msra.mxu0 %v1149
        %1384 = vmatprep.subr.bf16.mxu0 0
        %1385 = vmatpush1.bf16.msra.mxu0 %v1148
        %1386 = vmatprep.subr.bf16.mxu0 0
        %1387 = vmatpush1.bf16.msra.mxu0 %v1147
        %1388 = vmatprep.subr.bf16.mxu0 0
        %1389 = vmatpush2.bf16.msra.mxu0 %v1162
        %1390 = vmatprep.subr.bf16.mxu0 0
        %1391 = vmatpush2.bf16.msra.mxu0 %v1161
        %1392 = vmatprep.subr.bf16.mxu0 0
        %1393 = vmatpush2.bf16.msra.mxu0 %v1160
        %1394 = vmatprep.subr.bf16.mxu0 0
        %1395 = vmatpush2.bf16.msra.mxu0 %v1159
        %1396 = vmatprep.subr.bf16.mxu0 0
        %1397 = vmatpush2.bf16.msra.mxu0 %v1158
        %1398 = vmatprep.subr.bf16.mxu0 0
        %1399 = vmatpush2.bf16.msra.mxu0 %v1157
        %1400 = vmatprep.subr.bf16.mxu0 0
        %1401 = vmatpush2.bf16.msra.mxu0 %v1156
        %1402 = vmatprep.subr.bf16.mxu0 0
        %1403 = vmatpush2.bf16.msra.mxu0 %v1155
        %1404 = vmatprep.mubr.bf16.mxu0 %v717
        %1405 = vmatmul.mubr.bf16.gmra.mxu0 %v716
        %v1406 = vpop.f32.mrf.mxu0
        %v1407 = vadd.f32 %v1366, %v1406
        %v1408 = vpop.f32.mrf.mxu0
        %v1409 = vpop.f32.mrf.mxu0
        %v1410 = vadd.f32 %v1369, %v1409
        %v1411 = vpop.f32.mrf.mxu0
        %1412 = vdwg.mxu0
        %1413 = vmatprep.subr.bf16.mxu0 0
        %1414 = vmatpush1.bf16.msra.mxu0 %v1170
        %1415 = vmatprep.subr.bf16.mxu0 0
        %1416 = vmatpush1.bf16.msra.mxu0 %v1169
        %1417 = vmatprep.subr.bf16.mxu0 0
        %1418 = vmatpush1.bf16.msra.mxu0 %v1168
        %1419 = vmatprep.subr.bf16.mxu0 0
        %1420 = vmatpush1.bf16.msra.mxu0 %v1167
        %1421 = vmatprep.subr.bf16.mxu0 0
        %1422 = vmatpush1.bf16.msra.mxu0 %v1166
        %1423 = vmatprep.subr.bf16.mxu0 0
        %1424 = vmatpush1.bf16.msra.mxu0 %v1165
        %1425 = vmatprep.subr.bf16.mxu0 0
        %1426 = vmatpush1.bf16.msra.mxu0 %v1164
        %1427 = vmatprep.subr.bf16.mxu0 0
        %1428 = vmatpush1.bf16.msra.mxu0 %v1163
        %1429 = vmatprep.subr.bf16.mxu0 0
        %1430 = vmatpush2.bf16.msra.mxu0 %v1178
        %1431 = vmatprep.subr.bf16.mxu0 0
        %1432 = vmatpush2.bf16.msra.mxu0 %v1177
        %1433 = vmatprep.subr.bf16.mxu0 0
        %1434 = vmatpush2.bf16.msra.mxu0 %v1176
        %1435 = vmatprep.subr.bf16.mxu0 0
        %1436 = vmatpush2.bf16.msra.mxu0 %v1175
        %1437 = vmatprep.subr.bf16.mxu0 0
        %1438 = vmatpush2.bf16.msra.mxu0 %v1174
        %1439 = vmatprep.subr.bf16.mxu0 0
        %1440 = vmatpush2.bf16.msra.mxu0 %v1173
        %1441 = vmatprep.subr.bf16.mxu0 0
        %1442 = vmatpush2.bf16.msra.mxu0 %v1172
        %1443 = vmatprep.subr.bf16.mxu0 0
        %1444 = vmatpush2.bf16.msra.mxu0 %v1171
        %1445 = vmatprep.mubr.bf16.mxu0 %v719
        %1446 = vmatmul.mubr.bf16.gmra.mxu0 %v718
        %v1447 = vpop.f32.mrf.mxu0
        %v1448 = vadd.f32 %v1407, %v1447
        %v1449 = vpop.f32.mrf.mxu0
        %v1450 = vpop.f32.mrf.mxu0
        %v1451 = vadd.f32 %v1410, %v1450
        %v1452 = vpop.f32.mrf.mxu0
        %1453 = vdwg.mxu0
        %1454 = vmatprep.subr.bf16.mxu0 0
        %1455 = vmatpush1.bf16.msra.mxu0 %v1186
        %1456 = vmatprep.subr.bf16.mxu0 0
        %1457 = vmatpush1.bf16.msra.mxu0 %v1185
        %1458 = vmatprep.subr.bf16.mxu0 0
        %1459 = vmatpush1.bf16.msra.mxu0 %v1184
        %1460 = vmatprep.subr.bf16.mxu0 0
        %1461 = vmatpush1.bf16.msra.mxu0 %v1183
        %1462 = vmatprep.subr.bf16.mxu0 0
        %1463 = vmatpush1.bf16.msra.mxu0 %v1182
        %1464 = vmatprep.subr.bf16.mxu0 0
        %1465 = vmatpush1.bf16.msra.mxu0 %v1181
        %1466 = vmatprep.subr.bf16.mxu0 0
        %1467 = vmatpush1.bf16.msra.mxu0 %v1180
        %1468 = vmatprep.subr.bf16.mxu0 0
        %1469 = vmatpush1.bf16.msra.mxu0 %v1179
        %1470 = vmatprep.subr.bf16.mxu0 0
        %1471 = vmatpush2.bf16.msra.mxu0 %v1194
        %1472 = vmatprep.subr.bf16.mxu0 0
        %1473 = vmatpush2.bf16.msra.mxu0 %v1193
        %1474 = vmatprep.subr.bf16.mxu0 0
        %1475 = vmatpush2.bf16.msra.mxu0 %v1192
        %1476 = vmatprep.subr.bf16.mxu0 0
        %1477 = vmatpush2.bf16.msra.mxu0 %v1191
        %1478 = vmatprep.subr.bf16.mxu0 0
        %1479 = vmatpush2.bf16.msra.mxu0 %v1190
        %1480 = vmatprep.subr.bf16.mxu0 0
        %1481 = vmatpush2.bf16.msra.mxu0 %v1189
        %1482 = vmatprep.subr.bf16.mxu0 0
        %1483 = vmatpush2.bf16.msra.mxu0 %v1188
        %1484 = vmatprep.subr.bf16.mxu0 0
        %1485 = vmatpush2.bf16.msra.mxu0 %v1187
        %1486 = vmatprep.mubr.bf16.mxu0 %v721
        %1487 = vmatmul.mubr.bf16.gmra.mxu0 %v720
        %v1488 = vpop.f32.mrf.mxu0
        %v1489 = vadd.f32 %v1448, %v1488
        %v1490 = vpop.f32.mrf.mxu0
        %v1491 = vpop.f32.mrf.mxu0
        %v1492 = vadd.f32 %v1451, %v1491
        %v1493 = vpop.f32.mrf.mxu0
        %1494 = vdwg.mxu0
        %1495 = vmatprep.subr.bf16.mxu0 0
        %1496 = vmatpush1.bf16.msra.mxu0 %v1202
        %1497 = vmatprep.subr.bf16.mxu0 0
        %1498 = vmatpush1.bf16.msra.mxu0 %v1201
        %1499 = vmatprep.subr.bf16.mxu0 0
        %1500 = vmatpush1.bf16.msra.mxu0 %v1200
        %1501 = vmatprep.subr.bf16.mxu0 0
        %1502 = vmatpush1.bf16.msra.mxu0 %v1199
        %1503 = vmatprep.subr.bf16.mxu0 0
        %1504 = vmatpush1.bf16.msra.mxu0 %v1198
        %1505 = vmatprep.subr.bf16.mxu0 0
        %1506 = vmatpush1.bf16.msra.mxu0 %v1197
        %1507 = vmatprep.subr.bf16.mxu0 0
        %1508 = vmatpush1.bf16.msra.mxu0 %v1196
        %1509 = vmatprep.subr.bf16.mxu0 0
        %1510 = vmatpush1.bf16.msra.mxu0 %v1195
        %1511 = vmatprep.subr.bf16.mxu0 0
        %1512 = vmatpush2.bf16.msra.mxu0 %v1210
        %1513 = vmatprep.subr.bf16.mxu0 0
        %1514 = vmatpush2.bf16.msra.mxu0 %v1209
        %1515 = vmatprep.subr.bf16.mxu0 0
        %1516 = vmatpush2.bf16.msra.mxu0 %v1208
        %1517 = vmatprep.subr.bf16.mxu0 0
        %1518 = vmatpush2.bf16.msra.mxu0 %v1207
        %1519 = vmatprep.subr.bf16.mxu0 0
        %1520 = vmatpush2.bf16.msra.mxu0 %v1206
        %1521 = vmatprep.subr.bf16.mxu0 0
        %1522 = vmatpush2.bf16.msra.mxu0 %v1205
        %1523 = vmatprep.subr.bf16.mxu0 0
        %1524 = vmatpush2.bf16.msra.mxu0 %v1204
        %1525 = vmatprep.subr.bf16.mxu0 0
        %1526 = vmatpush2.bf16.msra.mxu0 %v1203
        %1527 = vmatprep.mubr.bf16.mxu0 %v723
        %1528 = vmatmul.mubr.bf16.gmra.mxu0 %v722
        %v1529 = vpop.f32.mrf.mxu0
        %v1530 = vadd.f32 %v1489, %v1529
        %v1531 = vpop.f32.mrf.mxu0
        %v1532 = vpop.f32.mrf.mxu0
        %v1533 = vadd.f32 %v1492, %v1532
        %v1534 = vpop.f32.mrf.mxu0
        %1535 = vdwg.mxu0
        %1536 = vmatprep.subr.bf16.mxu0 0
        %1537 = vmatpush1.bf16.msra.mxu0 %v1218
        %1538 = vmatprep.subr.bf16.mxu0 0
        %1539 = vmatpush1.bf16.msra.mxu0 %v1217
        %1540 = vmatprep.subr.bf16.mxu0 0
        %1541 = vmatpush1.bf16.msra.mxu0 %v1216
        %1542 = vmatprep.subr.bf16.mxu0 0
        %1543 = vmatpush1.bf16.msra.mxu0 %v1215
        %1544 = vmatprep.subr.bf16.mxu0 0
        %1545 = vmatpush1.bf16.msra.mxu0 %v1214
        %1546 = vmatprep.subr.bf16.mxu0 0
        %1547 = vmatpush1.bf16.msra.mxu0 %v1213
        %1548 = vmatprep.subr.bf16.mxu0 0
        %1549 = vmatpush1.bf16.msra.mxu0 %v1212
        %1550 = vmatprep.subr.bf16.mxu0 0
        %1551 = vmatpush1.bf16.msra.mxu0 %v1211
        %1552 = vmatprep.subr.bf16.mxu0 0
        %1553 = vmatpush2.bf16.msra.mxu0 %v1226
        %1554 = vmatprep.subr.bf16.mxu0 0
        %1555 = vmatpush2.bf16.msra.mxu0 %v1225
        %1556 = vmatprep.subr.bf16.mxu0 0
        %1557 = vmatpush2.bf16.msra.mxu0 %v1224
        %1558 = vmatprep.subr.bf16.mxu0 0
        %1559 = vmatpush2.bf16.msra.mxu0 %v1223
        %1560 = vmatprep.subr.bf16.mxu0 0
        %1561 = vmatpush2.bf16.msra.mxu0 %v1222
        %1562 = vmatprep.subr.bf16.mxu0 0
        %1563 = vmatpush2.bf16.msra.mxu0 %v1221
        %1564 = vmatprep.subr.bf16.mxu0 0
        %1565 = vmatpush2.bf16.msra.mxu0 %v1220
        %1566 = vmatprep.subr.bf16.mxu0 0
        %1567 = vmatpush2.bf16.msra.mxu0 %v1219
        %1568 = vmatprep.mubr.bf16.mxu0 %v725
        %1569 = vmatmul.mubr.bf16.gmra.mxu0 %v724
        %v1570 = vpop.f32.mrf.mxu0
        %v1571 = vadd.f32 %v1530, %v1570
        %v1572 = vpop.f32.mrf.mxu0
        %v1573 = vpop.f32.mrf.mxu0
        %v1574 = vadd.f32 %v1533, %v1573
        %v1575 = vpop.f32.mrf.mxu0
        %1576 = vdwg.mxu0
        %1577 = vmatprep.subr.bf16.mxu0 0
        %1578 = vmatpush1.bf16.msra.mxu0 0
        %1579 = vmatprep.subr.bf16.mxu0 0
        %1580 = vmatpush1.bf16.msra.mxu0 0
        %1581 = vmatprep.subr.bf16.mxu0 0
        %1582 = vmatpush1.bf16.msra.mxu0 0
        %1583 = vmatprep.subr.bf16.mxu0 0
        %1584 = vmatpush1.bf16.msra.mxu0 0
        %1585 = vmatprep.subr.bf16.mxu0 0
        %1586 = vmatpush1.bf16.msra.mxu0 0
        %1587 = vmatprep.subr.bf16.mxu0 0
        %1588 = vmatpush1.bf16.msra.mxu0 0
        %1589 = vmatprep.subr.bf16.mxu0 0
        %1590 = vmatpush1.bf16.msra.mxu0 %v1228
        %1591 = vmatprep.subr.bf16.mxu0 0
        %1592 = vmatpush1.bf16.msra.mxu0 %v1227
        %1593 = vmatprep.subr.bf16.mxu0 0
        %1594 = vmatpush2.bf16.msra.mxu0 0
        %1595 = vmatprep.subr.bf16.mxu0 0
        %1596 = vmatpush2.bf16.msra.mxu0 0
        %1597 = vmatprep.subr.bf16.mxu0 0
        %1598 = vmatpush2.bf16.msra.mxu0 0
        %1599 = vmatprep.subr.bf16.mxu0 0
        %1600 = vmatpush2.bf16.msra.mxu0 0
        %1601 = vmatprep.subr.bf16.mxu0 0
        %1602 = vmatpush2.bf16.msra.mxu0 0
        %1603 = vmatprep.subr.bf16.mxu0 0
        %1604 = vmatpush2.bf16.msra.mxu0 0
        %1605 = vmatprep.subr.bf16.mxu0 0
        %1606 = vmatpush2.bf16.msra.mxu0 0
        %1607 = vmatprep.subr.bf16.mxu0 0
        %1608 = vmatpush2.bf16.msra.mxu0 0
        %1609 = vmatprep.mubr.bf16.mxu0 0
        %1610 = vmatmul.mubr.bf16.gmra.mxu0 %v1329
        %v1611 = vpop.f32.mrf.mxu0
        %v1612 = vadd.f32 %v1571, %v1611
        %v1613 = vpop.f32.mrf.mxu0
        %v1614 = vpop.f32.mrf.mxu0
        %v1615 = vadd.f32 %v1574, %v1614
        %v1616 = vpop.f32.mrf.mxu0
        %1617 = vdwg.mxu0
        %v1618 = vmax.f32 %v1612, 0.0
        %v1619 = vmax.f32 %v1615, 0.0
        %v1620 = vpack.c.bf16 %v1619, %v1618
        %v1621 = vld [vmem:[%s3] sm:$0xf]
        %v1622 = vld [vmem:[%s3 + $0x4] sm:$0xf]
        %v1623 = vld [vmem:[%s3 + $0x8] sm:$0xf]
        %v1624 = vld [vmem:[%s3 + $0xc] sm:$0xf]
        %v1625 = vld [vmem:[%s3 + $0x10] sm:$0xf]
        %v1626 = vld [vmem:[%s3 + $0x14] sm:$0xf]
        %v1627 = vld [vmem:[%s3 + $0x18] sm:$0xf]
        %v1628 = vld [vmem:[%s3 + $0x1c] sm:$0xf]
        %v1629 = vld [vmem:[%s4] sm:$0x1]
        %v1631 = vlaneseq
        %v1632 = vshrl.u32 %v1631, 7
        %v1633 = vsub.s32 0, %v1632
        %v1634 = vrot.slane %v1629, %v1633
        %v1644 = vunpack.c.l.b16 %v1621
        %v1645 = vunpack.c.l.b16 %v1622
        %v1646 = vunpack.c.l.b16 %v1623
        %v1647 = vunpack.c.l.b16 %v1624
        %v1648 = vunpack.c.l.b16 %v1625
        %v1649 = vunpack.c.l.b16 %v1626
        %v1650 = vunpack.c.l.b16 %v1627
        %v1651 = vunpack.c.l.b16 %v1628
        %v1652 = vpack.c.b16 %v1645, %v1644
        %v1653 = vpack.c.b16 %v1647, %v1646
        %v1654 = vpack.c.b16 %v1649, %v1648
        %v1655 = vpack.c.b16 %v1651, %v1650
        %vm1660 = vcmask 523264
        %v1662 = vsel %vm1660, %v1620, 0
        %1664 = vmatprep.subr.bf16.mxu0 0
        %1665 = vmatpush1.bf16.msra.mxu0 0
        %1666 = vmatprep.subr.bf16.mxu0 0
        %1667 = vmatpush1.bf16.msra.mxu0 0
        %1668 = vmatprep.subr.bf16.mxu0 0
        %1669 = vmatpush1.bf16.msra.mxu0 0
        %1670 = vmatprep.subr.bf16.mxu0 0
        %1671 = vmatpush1.bf16.msra.mxu0 0
        %1672 = vmatprep.subr.bf16.mxu0 0
        %1673 = vmatpush1.bf16.msra.mxu0 %v1655
        %1674 = vmatprep.subr.bf16.mxu0 0
        %1675 = vmatpush1.bf16.msra.mxu0 %v1654
        %1676 = vmatprep.subr.bf16.mxu0 0
        %1677 = vmatpush1.bf16.msra.mxu0 %v1653
        %1678 = vmatprep.subr.bf16.mxu0 0
        %1679 = vmatpush1.bf16.msra.mxu0 %v1652
        %1680 = vmatprep.subr.bf16.mxu0 0
        %1681 = vmatpush2.bf16.msra.mxu0 0
        %1682 = vmatprep.subr.bf16.mxu0 0
        %1683 = vmatpush2.bf16.msra.mxu0 0
        %1684 = vmatprep.subr.bf16.mxu0 0
        %1685 = vmatpush2.bf16.msra.mxu0 0
        %1686 = vmatprep.subr.bf16.mxu0 0
        %1687 = vmatpush2.bf16.msra.mxu0 0
        %1688 = vmatprep.subr.bf16.mxu0 0
        %1689 = vmatpush2.bf16.msra.mxu0 0
        %1690 = vmatprep.subr.bf16.mxu0 0
        %1691 = vmatpush2.bf16.msra.mxu0 0
        %1692 = vmatprep.subr.bf16.mxu0 0
        %1693 = vmatpush2.bf16.msra.mxu0 0
        %1694 = vmatprep.subr.bf16.mxu0 0
        %1695 = vmatpush2.bf16.msra.mxu0 0
        %1696 = vmatprep.mubr.bf16.mxu0 0
        %1697 = vmatmul.mubr.bf16.gmra.mxu0 %v1662
        %v1698 = vpop.f32.mrf.mxu0
        %v1699 = vadd.f32 %v1634, %v1698
        %v1700 = vpop.f32.mrf.mxu0
        %v1701 = vpop.f32.mrf.mxu0
        %v1702 = vadd.f32 %v1634, %v1701
        %v1703 = vpop.f32.mrf.mxu0
        %1704 = vdwg.mxu0
        %v1705 = vmax.f32 %v1699, 0.0
        %v1706 = vmax.f32 %v1702, 0.0
        %1707 = vst.msk [vmem:[%s413] sm:$0xff] %vm1660, %v1705
        %1708 = vst.msk [vmem:[%s413 + $0x8] sm:$0xff] %vm1660, %v1706
        %v1709 = vpack.c.bf16 %v1706, %v1705
        %v1710 = vld [vmem:[%s5] sm:$0xf]
        %v1711 = vld [vmem:[%s5 + $0x4] sm:$0xf]
        %v1712 = vld [vmem:[%s5 + $0x8] sm:$0xf]
        %v1713 = vld [vmem:[%s5 + $0xc] sm:$0xf]
        %v1714 = vld [vmem:[%s5 + $0x10] sm:$0xf]
        %v1715 = vld [vmem:[%s5 + $0x14] sm:$0xf]
        %v1716 = vld [vmem:[%s5 + $0x18] sm:$0xf]
        %v1717 = vld [vmem:[%s5 + $0x1c] sm:$0xf]
        %v1718 = vld [vmem:[%s6] sm:$0x1]
        %v1720 = vlaneseq
        %v1721 = vshrl.u32 %v1720, 7
        %v1722 = vsub.s32 0, %v1721
        %v1723 = vrot.slane %v1718, %v1722
        %v1733 = vunpack.c.l.b16 %v1710
        %v1734 = vunpack.c.l.b16 %v1711
        %v1735 = vunpack.c.l.b16 %v1712
        %v1736 = vunpack.c.l.b16 %v1713
        %v1737 = vunpack.c.l.b16 %v1714
        %v1738 = vunpack.c.l.b16 %v1715
        %v1739 = vunpack.c.l.b16 %v1716
        %v1740 = vunpack.c.l.b16 %v1717
        %v1741 = vpack.c.b16 %v1734, %v1733
        %v1742 = vpack.c.b16 %v1736, %v1735
        %v1743 = vpack.c.b16 %v1738, %v1737
        %v1744 = vpack.c.b16 %v1740, %v1739
        %v1750 = vsel %vm1660, %v1709, 0
        %1752 = vmatprep.subr.bf16.mxu0 0
        %1753 = vmatpush1.bf16.msra.mxu0 0
        %1754 = vmatprep.subr.bf16.mxu0 0
        %1755 = vmatpush1.bf16.msra.mxu0 0
        %1756 = vmatprep.subr.bf16.mxu0 0
        %1757 = vmatpush1.bf16.msra.mxu0 0
        %1758 = vmatprep.subr.bf16.mxu0 0
        %1759 = vmatpush1.bf16.msra.mxu0 0
        %1760 = vmatprep.subr.bf16.mxu0 0
        %1761 = vmatpush1.bf16.msra.mxu0 %v1744
        %1762 = vmatprep.subr.bf16.mxu0 0
        %1763 = vmatpush1.bf16.msra.mxu0 %v1743
        %1764 = vmatprep.subr.bf16.mxu0 0
        %1765 = vmatpush1.bf16.msra.mxu0 %v1742
        %1766 = vmatprep.subr.bf16.mxu0 0
        %1767 = vmatpush1.bf16.msra.mxu0 %v1741
        %1768 = vmatprep.subr.bf16.mxu0 0
        %1769 = vmatpush2.bf16.msra.mxu0 0
        %1770 = vmatprep.subr.bf16.mxu0 0
        %1771 = vmatpush2.bf16.msra.mxu0 0
        %1772 = vmatprep.subr.bf16.mxu0 0
        %1773 = vmatpush2.bf16.msra.mxu0 0
        %1774 = vmatprep.subr.bf16.mxu0 0
        %1775 = vmatpush2.bf16.msra.mxu0 0
        %1776 = vmatprep.subr.bf16.mxu0 0
        %1777 = vmatpush2.bf16.msra.mxu0 0
        %1778 = vmatprep.subr.bf16.mxu0 0
        %1779 = vmatpush2.bf16.msra.mxu0 0
        %1780 = vmatprep.subr.bf16.mxu0 0
        %1781 = vmatpush2.bf16.msra.mxu0 0
        %1782 = vmatprep.subr.bf16.mxu0 0
        %1783 = vmatpush2.bf16.msra.mxu0 0
        %1784 = vmatprep.mubr.bf16.mxu0 0
        %1785 = vmatmul.mubr.bf16.gmra.mxu0 %v1750
        %v1786 = vpop.f32.mrf.mxu0
        %v1787 = vadd.f32 %v1723, %v1786
        %v1788 = vpop.f32.mrf.mxu0
        %v1789 = vpop.f32.mrf.mxu0
        %v1790 = vadd.f32 %v1723, %v1789
        %v1791 = vpop.f32.mrf.mxu0
        %1792 = vdwg.mxu0
        %vm1793 = vcmask 31744
        %1794 = vst.msk [vmem:[%s420] sm:$0xff] %vm1793, %v1787
        %1795 = vst.msk [vmem:[%s420 + $0x8] sm:$0xff] %vm1793, %v1790
        %v1796 = vld [vmem:[%s7] sm:$0xf]
        %v1797 = vld [vmem:[%s7 + $0x4] sm:$0xf]
        %v1798 = vld [vmem:[%s7 + $0x8] sm:$0xf]
        %v1799 = vld [vmem:[%s7 + $0xc] sm:$0xf]
        %v1800 = vld [vmem:[%s7 + $0x10] sm:$0xf]
        %v1801 = vld [vmem:[%s7 + $0x14] sm:$0xf]
        %v1802 = vld [vmem:[%s7 + $0x18] sm:$0xf]
        %v1803 = vld [vmem:[%s7 + $0x1c] sm:$0xf]
        %v1804 = vld [vmem:[%s8] sm:$0x1]
        %v1806 = vlaneseq
        %v1807 = vshrl.u32 %v1806, 7
        %v1808 = vsub.s32 0, %v1807
        %v1809 = vrot.slane %v1804, %v1808
        %v1819 = vunpack.c.l.b16 %v1796
        %v1820 = vunpack.c.l.b16 %v1797
        %v1821 = vunpack.c.l.b16 %v1798
        %v1822 = vunpack.c.l.b16 %v1799
        %v1823 = vunpack.c.l.b16 %v1800
        %v1824 = vunpack.c.l.b16 %v1801
        %v1825 = vunpack.c.l.b16 %v1802
        %v1826 = vunpack.c.l.b16 %v1803
        %v1827 = vpack.c.b16 %v1820, %v1819
        %v1828 = vpack.c.b16 %v1822, %v1821
        %v1829 = vpack.c.b16 %v1824, %v1823
        %v1830 = vpack.c.b16 %v1826, %v1825
        %1835 = vmatprep.subr.bf16.mxu0 0
        %1836 = vmatpush1.bf16.msra.mxu0 0
        %1837 = vmatprep.subr.bf16.mxu0 0
        %1838 = vmatpush1.bf16.msra.mxu0 0
        %1839 = vmatprep.subr.bf16.mxu0 0
        %1840 = vmatpush1.bf16.msra.mxu0 0
        %1841 = vmatprep.subr.bf16.mxu0 0
        %1842 = vmatpush1.bf16.msra.mxu0 0
        %1843 = vmatprep.subr.bf16.mxu0 0
        %1844 = vmatpush1.bf16.msra.mxu0 %v1830
        %1845 = vmatprep.subr.bf16.mxu0 0
        %1846 = vmatpush1.bf16.msra.mxu0 %v1829
        %1847 = vmatprep.subr.bf16.mxu0 0
        %1848 = vmatpush1.bf16.msra.mxu0 %v1828
        %1849 = vmatprep.subr.bf16.mxu0 0
        %1850 = vmatpush1.bf16.msra.mxu0 %v1827
        %1851 = vmatprep.subr.bf16.mxu0 0
        %1852 = vmatpush2.bf16.msra.mxu0 0
        %1853 = vmatprep.subr.bf16.mxu0 0
        %1854 = vmatpush2.bf16.msra.mxu0 0
        %1855 = vmatprep.subr.bf16.mxu0 0
        %1856 = vmatpush2.bf16.msra.mxu0 0
        %1857 = vmatprep.subr.bf16.mxu0 0
        %1858 = vmatpush2.bf16.msra.mxu0 0
        %1859 = vmatprep.subr.bf16.mxu0 0
        %1860 = vmatpush2.bf16.msra.mxu0 0
        %1861 = vmatprep.subr.bf16.mxu0 0
        %1862 = vmatpush2.bf16.msra.mxu0 0
        %1863 = vmatprep.subr.bf16.mxu0 0
        %1864 = vmatpush2.bf16.msra.mxu0 0
        %1865 = vmatprep.subr.bf16.mxu0 0
        %1866 = vmatpush2.bf16.msra.mxu0 0
        %1867 = vmatprep.mubr.bf16.mxu0 0
        %1868 = vmatmul.mubr.bf16.gmra.mxu0 %v1750
        %v1869 = vpop.f32.mrf.mxu0
        %v1870 = vadd.f32 %v1809, %v1869
        %v1871 = vpop.f32.mrf.mxu0
        %v1872 = vpop.f32.mrf.mxu0
        %v1873 = vadd.f32 %v1809, %v1872
        %v1874 = vpop.f32.mrf.mxu0
        %1875 = vdwg.mxu0
        %vm1876 = vcmask 130048
        %1877 = vst.msk [vmem:[%s448] sm:$0xff] %vm1876, %v1870
        %1878 = vst.msk [vmem:[%s448 + $0x8] sm:$0xff] %vm1876, %v1873
        %v1879 = vsel %vm1793, %v1787, -inf
        %1880 = vmax.xlane.f32.xlu0 %v1879
        %v1881 = vpop.xlane.xlu0 %1880
        %v1882 = vsel %vm1793, %v1790, -inf
        %1883 = vmax.xlane.f32.xlu0 %v1882
        %v1884 = vpop.xlane.xlu0 %1883
        %v1885 = vsub.f32 %v1787, %v1881
        %v1886 = vsub.f32 %v1790, %v1884
        %v1887 = vmul.f32 %v1885, 1.442695
        %v1888 = vpow.pop %v1887
        %v1889 = vmul.f32 %v1886, 1.442695
        %v1890 = vpow.pop %v1889
        %v1891 = vsel %vm1793, %v1888, 0.0
        %1892 = vadd.xlane.f32.xlu0 %v1891
        %v1893 = vpop.xlane.xlu0 %1892
        %v1894 = vsel %vm1793, %v1890, 0.0
        %1895 = vadd.xlane.f32.xlu0 %v1894
        %v1896 = vpop.xlane.xlu0 %1895
        %v1897 = vrcp.pop %v1893
        %v1898 = vrcp.pop %v1896
        %v1899 = vmul.f32 %v1888, %v1897
        %v1900 = vmul.f32 %v1890, %v1898
        %1901 = vst.msk [vmem:[%s454] sm:$0xff] %vm1793, %v1899
        %1902 = vst.msk [vmem:[%s454 + $0x8] sm:$0xff] %vm1793, %v1900
        %s1903 = sand.u32 %s232, 1
        %s1904 = scalar_lea.sflag [#allocation3], %s1903
        %s1905 = sand.u32 %s232, 1
        %s1906 = smul.addr %s1905, 16
        %s1907 = scalar_lea.vmem [#allocation2], %s1906
        %s1908 = sand.u32 %s258, 1
        %s1909 = scalar_lea.sflag [#allocation5], %s1908
        %s1910 = sand.u32 %s258, 1
        %s1911 = smul.addr %s1910, 16
        %s1912 = scalar_lea.vmem [#allocation4], %s1911
        %s1913 = smul.u32 2, %s30
        %p1914 = scmp.lt.s32.totalorder %s1913, 7
        %s1915 = scalar_select %p1914, %s1913, 7
        %s1916 = smul.addr %s1915, 8
        %s1917 = scalar_lea.vmem %s11, %s1916
        %s1918 = smul.u32 2, %s30
        %p1919 = scmp.lt.s32.totalorder %s1918, 7
        %s1920 = scalar_select %p1919, %s1918, 7
        %s1921 = smul.addr %s1920, 8
        %s1922 = scalar_lea.vmem %s12, %s1921
        // Predicated region
        $region57: #{_forward.7} parent=55 // pred_check
          %p1923 = pneg %p242
        $region58: #{_forward.7} parent=55 // pred_check_branch
          %1925 = sbr.rel (%p1923) target = $region60
        $region59: #{_forward.7} parent=55 // pred_region
          %s1926 = smul.u32 2, %s30
          %s1928 = ssub.s32 256, 256
          %1929 = vsyncadd %s1904, %s1928
          %s1930 = smul.addr %s1926, 128
          %s1931 = scalar_lea.hbm %s9, %s1930
          %s1932 = sshll.u32 %s1907, 4
          %s1933 = int_to_ptr.vmem [resolvable:$true] %s1932
          %1938 = dma.vmem_to_hbm [thread:$0]  %s1933, 256, %s1931, %s1904, 128, 128, 8
        $region60: #{_forward.7} parent=55 // pred_fallthru
          _
        // Predicated region
        $region61: #{_forward.7} parent=55 // pred_check
          %p1939 = pneg %p268
        $region62: #{_forward.7} parent=55 // pred_check_branch
          %1941 = sbr.rel (%p1939) target = $region64
        $region63: #{_forward.7} parent=55 // pred_region
          %s1942 = smul.u32 2, %s30
          %s1944 = ssub.s32 256, 256
          %1945 = vsyncadd %s1909, %s1944
          %s1946 = smul.addr %s1942, 128
          %s1947 = scalar_lea.hbm %s10, %s1946
          %s1948 = sshll.u32 %s1912, 4
          %s1949 = int_to_ptr.vmem [resolvable:$true] %s1948
          %1954 = dma.vmem_to_hbm [thread:$0]  %s1949, 256, %s1947, %s1909, 128, 128, 8
        $region64: #{_forward.7} parent=55 // pred_fallthru
          _
        // Predicated region
        $region65: #{_forward.7} parent=55 // pred_check
          %p1955 = pneg %p294
        $region66: #{_forward.7} parent=55 // pred_check_branch
          %1957 = sbr.rel (%p1955) target = $region68
        $region67: #{_forward.7} parent=55 // pred_region
          %s1958 = smul.u32 2, %s30
        $region68: #{_forward.7} parent=55 // pred_fallthru
          _
        // Predicated region
        $region69: #{_forward.7} parent=55 // pred_check
          %p1959 = pneg %p320
        $region70: #{_forward.7} parent=55 // pred_check_branch
          %1961 = sbr.rel (%p1959) target = $region72
        $region71: #{_forward.7} parent=55 // pred_region
          %s1962 = smul.u32 2, %s30
        $region72: #{_forward.7} parent=55 // pred_fallthru
          _
      $region56: #{_forward.7} parent=5 // pred_fallthru
        _
      %p1963 = scmp.le.s32.totalorder 2, %s25
      // Predicated region
      $region73: #{_forward.7} parent=5 // pred_check
        %p1964 = pneg %p1963
      $region74: #{_forward.7} parent=5 // pred_check_branch
        %1966 = sbr.rel (%p1964) target = $region76
      $region75: #{_forward.7} parent=5 // pred_region
        %s1967 = ssub.s32 %s25, 2
        // Predicated region
        $region77: #{_forward.7} parent=75 // pred_check
          %p1968 = pneg %p248
        $region78: #{_forward.7} parent=75 // pred_check_branch
          %1970 = sbr.rel (%p1968) target = $region80
        $region79: #{_forward.7} parent=75 // pred_region
          %s1971 = sand.u32 %s233, 1
          %s1972 = scalar_lea.sflag [#allocation3], %s1971
          %s1973 = sand.u32 %s233, 1
          %s1974 = smul.addr %s1973, 16
          %s1975 = scalar_lea.vmem [#allocation2], %s1974
          %1976 = dma.done %s1972, 256
        $region80: #{_forward.7} parent=75 // pred_fallthru
          _
        // Predicated region
        $region81: #{_forward.7} parent=75 // pred_check
          %p1977 = pneg %p274
        $region82: #{_forward.7} parent=75 // pred_check_branch
          %1979 = sbr.rel (%p1977) target = $region84
        $region83: #{_forward.7} parent=75 // pred_region
          %s1980 = sand.u32 %s259, 1
          %s1981 = scalar_lea.sflag [#allocation5], %s1980
          %s1982 = sand.u32 %s259, 1
          %s1983 = smul.addr %s1982, 16
          %s1984 = scalar_lea.vmem [#allocation4], %s1983
          %1985 = dma.done %s1981, 256
        $region84: #{_forward.7} parent=75 // pred_fallthru
          _
        // Predicated region
        $region85: #{_forward.7} parent=75 // pred_check
          %p1986 = pneg %p300
        $region86: #{_forward.7} parent=75 // pred_check_branch
          %1988 = sbr.rel (%p1986) target = $region88
        $region87: #{_forward.7} parent=75 // pred_region
          %s1989 = smul.u32 2, %s31
          %p1990 = scmp.lt.s32.totalorder %s1989, 7
          %s1991 = scalar_select %p1990, %s1989, 7
          %s1992 = smul.addr %s1991, 8
          %s1993 = scalar_lea.vmem %s11, %s1992
        $region88: #{_forward.7} parent=75 // pred_fallthru
          _
        // Predicated region
        $region89: #{_forward.7} parent=75 // pred_check
          %p1994 = pneg %p326
        $region90: #{_forward.7} parent=75 // pred_check_branch
          %1996 = sbr.rel (%p1994) target = $region92
        $region91: #{_forward.7} parent=75 // pred_region
          %s1997 = smul.u32 2, %s31
          %p1998 = scmp.lt.s32.totalorder %s1997, 7
          %s1999 = scalar_select %p1998, %s1997, 7
          %s2000 = smul.addr %s1999, 8
          %s2001 = scalar_lea.vmem %s12, %s2000
        $region92: #{_forward.7} parent=75 // pred_fallthru
          _
      $region76: #{_forward.7} parent=5 // pred_fallthru
        _
    $region6: #{_forward.7} parent=1 // loop_footer
      %s29 = sadd.s32 1, %s25
    $region7: #{_forward.7} parent=1 // loop_footer_branch
      %24 = sbr.rel target = $region3
    $region8: #{_forward.7} parent=1 // loop_exit
      _
    %2002 = vsyncpa [#allocation3], 1
    %s2003 = scalar_lea.sflag [#allocation3], 1
    %2004 = vsyncpa %s2003, 1
    %2005 = vsyncpa [#allocation5], 1
    %s2006 = scalar_lea.sflag [#allocation5], 1
    %2007 = vsyncpa %s2006, 1

// kernel: tile.8
$region0: #{tile.8}
  #allocation0 [shape = 's32[1]{0}', space=sflag, size = 0x4, scoped, tag = 'scoped memory for tile.8']
  %s0 = inlined_call_operand.vmem [shape: s32[3], index: 0, kind: input, shape index: {}]
  %s1 = inlined_call_operand.vmem [shape: s32[32,3], index: 1, kind: output, shape index: {}]
  // Predicated region
  $region2: #{tile.8} parent=0 // pred_check
    _
  $region3: #{tile.8} parent=0 // pred_check_branch
    %3 = sbr.rel (0) target = $region5
  $region4: #{tile.8} parent=0 // pred_region
    _
  $region5: #{tile.8} parent=0 // pred_fallthru
    _
  %v4 = vld [vmem:[%s0] ss:$0 sm:$0xff]
  %5 = vst [vmem:[%s1] sm:$0xff] %v4
  %s6 = scalar_lea.vmem %s1, 8
  %7 = vst [vmem:[%s6] sm:$0xff] %v4
  %s8 = scalar_lea.vmem %s1, 16
  %9 = vst [vmem:[%s8] sm:$0xff] %v4
  %s10 = scalar_lea.vmem %s1, 24
  %11 = vst [vmem:[%s10] sm:$0xff] %v4

// kernel: tile.9
$region0: #{tile.9}
  %s0 = inlined_call_operand.vmem [shape: s32[32,3], index: 0, kind: input, shape index: {}]
  %s1 = inlined_call_operand.vmem [shape: s32[96], index: 1, kind: output, shape index: {}]
  $region1: #{tile.9} parent=0
    #allocation0 [shape = 'u8[4096]{0}', space=vmem, size = 0x1000, scoped, tag = 'scoped mem for output reshape']
    %v2 = vld [vmem:[%s0] sm:$0x1]
    %vm3 = vcmask 23552
    %4 = vst.msk [vmem:[#allocation0] sm:$0x1] %vm3, %v2
    %s5 = scalar_lea.vmem %s0, 31
    %v6 = vld [vmem:[%s5] sm:$0x1]
    %7 = vrot.lane.b32.xlu0 %v6, 93
    %v8 = vpop.permute.xlu0 %7
    %vm9 = vcmask 786152
    %10 = vst.msk [vmem:[#allocation0] sm:$0x1] %vm9, %v8
    %s11 = scalar_lea.vmem %s0, 30
    %v12 = vld [vmem:[%s11] sm:$0x1]
    %13 = vrot.lane.b32.xlu0 %v12, 90
    %v14 = vpop.permute.xlu0 %13
    %vm15 = vcmask 761552
    %16 = vst.msk [vmem:[#allocation0] sm:$0x1] %vm15, %v14
    %s17 = scalar_lea.vmem %s0, 29
    %v18 = vld [vmem:[%s17] sm:$0x1]
    %19 = vrot.lane.b32.xlu0 %v18, 87
    %v20 = vpop.permute.xlu0 %19
    %vm21 = vcmask 736952
    %22 = vst.msk [vmem:[#allocation0] sm:$0x1] %vm21, %v20
    %s23 = scalar_lea.vmem %s0, 28
    %v24 = vld [vmem:[%s23] sm:$0x1]
    %25 = vrot.lane.b32.xlu0 %v24, 84
    %v26 = vpop.permute.xlu0 %25
    %vm27 = vcmask 712352
    %28 = vst.msk [vmem:[#allocation0] sm:$0x1] %vm27, %v26
    %s29 = scalar_lea.vmem %s0, 27
    %v30 = vld [vmem:[%s29] sm:$0x1]
    %31 = vrot.lane.b32.xlu0 %v30, 81
    %v32 = vpop.permute.xlu0 %31
    %vm33 = vcmask 687752
    %34 = vst.msk [vmem:[#allocation0] sm:$0x1] %vm33, %v32
    %s35 = scalar_lea.vmem %s0, 26
    %v36 = vld [vmem:[%s35] sm:$0x1]
    %37 = vrot.lane.b32.xlu0 %v36, 78
    %v38 = vpop.permute.xlu0 %37
    %vm39 = vcmask 663152
    %40 = vst.msk [vmem:[#allocation0] sm:$0x1] %vm39, %v38
    %s41 = scalar_lea.vmem %s0, 25
    %v42 = vld [vmem:[%s41] sm:$0x1]
    %43 = vrot.lane.b32.xlu0 %v42, 75
    %v44 = vpop.permute.xlu0 %43
    %vm45 = vcmask 638552
    %46 = vst.msk [vmem:[#allocation0] sm:$0x1] %vm45, %v44
    %s47 = scalar_lea.vmem %s0, 24
    %v48 = vld [vmem:[%s47] sm:$0x1]
    %49 = vrot.lane.b32.xlu0 %v48, 72
    %v50 = vpop.permute.xlu0 %49
    %vm51 = vcmask 613952
    %52 = vst.msk [vmem:[#allocation0] sm:$0x1] %vm51, %v50
    %s53 = scalar_lea.vmem %s0, 23
    %v54 = vld [vmem:[%s53] sm:$0x1]
    %55 = vrot.lane.b32.xlu0 %v54, 69
    %v56 = vpop.permute.xlu0 %55
    %vm57 = vcmask 589352
    %58 = vst.msk [vmem:[#allocation0] sm:$0x1] %vm57, %v56
    %s59 = scalar_lea.vmem %s0, 22
    %v60 = vld [vmem:[%s59] sm:$0x1]
    %61 = vrot.lane.b32.xlu0 %v60, 66
    %v62 = vpop.permute.xlu0 %61
    %vm63 = vcmask 564752
    %64 = vst.msk [vmem:[#allocation0] sm:$0x1] %vm63, %v62
    %s65 = scalar_lea.vmem %s0, 21
    %v66 = vld [vmem:[%s65] sm:$0x1]
    %67 = vrot.lane.b32.xlu0 %v66, 63
    %v68 = vpop.permute.xlu0 %67
    %vm69 = vcmask 540152
    %70 = vst.msk [vmem:[#allocation0] sm:$0x1] %vm69, %v68
    %s71 = scalar_lea.vmem %s0, 20
    %v72 = vld [vmem:[%s71] sm:$0x1]
    %73 = vrot.lane.b32.xlu0 %v72, 60
    %v74 = vpop.permute.xlu0 %73
    %vm75 = vcmask 515552
    %76 = vst.msk [vmem:[#allocation0] sm:$0x1] %vm75, %v74
    %s77 = scalar_lea.vmem %s0, 19
    %v78 = vld [vmem:[%s77] sm:$0x1]
    %79 = vrot.lane.b32.xlu0 %v78, 57
    %v80 = vpop.permute.xlu0 %79
    %vm81 = vcmask 490952
    %82 = vst.msk [vmem:[#allocation0] sm:$0x1] %vm81, %v80
    %s83 = scalar_lea.vmem %s0, 18
    %v84 = vld [vmem:[%s83] sm:$0x1]
    %85 = vrot.lane.b32.xlu0 %v84, 54
    %v86 = vpop.permute.xlu0 %85
    %vm87 = vcmask 466352
    %88 = vst.msk [vmem:[#allocation0] sm:$0x1] %vm87, %v86
    %s89 = scalar_lea.vmem %s0, 17
    %v90 = vld [vmem:[%s89] sm:$0x1]
    %91 = vrot.lane.b32.xlu0 %v90, 51
    %v92 = vpop.permute.xlu0 %91
    %vm93 = vcmask 441752
    %94 = vst.msk [vmem:[#allocation0] sm:$0x1] %vm93, %v92
    %s95 = scalar_lea.vmem %s0, 16
    %v96 = vld [vmem:[%s95] sm:$0x1]
    %97 = vrot.lane.b32.xlu0 %v96, 48
    %v98 = vpop.permute.xlu0 %97
    %vm99 = vcmask 417152
    %100 = vst.msk [vmem:[#allocation0] sm:$0x1] %vm99, %v98
    %s101 = scalar_lea.vmem %s0, 15
    %v102 = vld [vmem:[%s101] sm:$0x1]
    %103 = vrot.lane.b32.xlu0 %v102, 45
    %v104 = vpop.permute.xlu0 %103
    %vm105 = vcmask 392552
    %106 = vst.msk [vmem:[#allocation0] sm:$0x1] %vm105, %v104
    %s107 = scalar_lea.vmem %s0, 14
    %v108 = vld [vmem:[%s107] sm:$0x1]
    %109 = vrot.lane.b32.xlu0 %v108, 42
    %v110 = vpop.permute.xlu0 %109
    %vm111 = vcmask 367952
    %112 = vst.msk [vmem:[#allocation0] sm:$0x1] %vm111, %v110
    %s113 = scalar_lea.vmem %s0, 13
    %v114 = vld [vmem:[%s113] sm:$0x1]
    %115 = vrot.lane.b32.xlu0 %v114, 39
    %v116 = vpop.permute.xlu0 %115
    %vm117 = vcmask 343352
    %118 = vst.msk [vmem:[#allocation0] sm:$0x1] %vm117, %v116
    %s119 = scalar_lea.vmem %s0, 12
    %v120 = vld [vmem:[%s119] sm:$0x1]
    %121 = vrot.lane.b32.xlu0 %v120, 36
    %v122 = vpop.permute.xlu0 %121
    %vm123 = vcmask 318752
    %124 = vst.msk [vmem:[#allocation0] sm:$0x1] %vm123, %v122
    %s125 = scalar_lea.vmem %s0, 11
    %v126 = vld [vmem:[%s125] sm:$0x1]
    %127 = vrot.lane.b32.xlu0 %v126, 33
    %v128 = vpop.permute.xlu0 %127
    %vm129 = vcmask 294152
    %130 = vst.msk [vmem:[#allocation0] sm:$0x1] %vm129, %v128
    %s131 = scalar_lea.vmem %s0, 10
    %v132 = vld [vmem:[%s131] sm:$0x1]
    %133 = vrot.lane.b32.xlu0 %v132, 30
    %v134 = vpop.permute.xlu0 %133
    %vm135 = vcmask 269552
    %136 = vst.msk [vmem:[#allocation0] sm:$0x1] %vm135, %v134
    %s137 = scalar_lea.vmem %s0, 9
    %v138 = vld [vmem:[%s137] sm:$0x1]
    %139 = vrot.lane.b32.xlu0 %v138, 27
    %v140 = vpop.permute.xlu0 %139
    %vm141 = vcmask 244952
    %142 = vst.msk [vmem:[#allocation0] sm:$0x1] %vm141, %v140
    %s143 = scalar_lea.vmem %s0, 8
    %v144 = vld [vmem:[%s143] sm:$0x1]
    %145 = vrot.lane.b32.xlu0 %v144, 24
    %v146 = vpop.permute.xlu0 %145
    %vm147 = vcmask 220352
    %148 = vst.msk [vmem:[#allocation0] sm:$0x1] %vm147, %v146
    %s149 = scalar_lea.vmem %s0, 7
    %v150 = vld [vmem:[%s149] sm:$0x1]
    %151 = vrot.lane.b32.xlu0 %v150, 21
    %v152 = vpop.permute.xlu0 %151
    %vm153 = vcmask 195752
    %154 = vst.msk [vmem:[#allocation0] sm:$0x1] %vm153, %v152
    %s155 = scalar_lea.vmem %s0, 6
    %v156 = vld [vmem:[%s155] sm:$0x1]
    %157 = vrot.lane.b32.xlu0 %v156, 18
    %v158 = vpop.permute.xlu0 %157
    %vm159 = vcmask 171152
    %160 = vst.msk [vmem:[#allocation0] sm:$0x1] %vm159, %v158
    %s161 = scalar_lea.vmem %s0, 5
    %v162 = vld [vmem:[%s161] sm:$0x1]
    %163 = vrot.lane.b32.xlu0 %v162, 15
    %v164 = vpop.permute.xlu0 %163
    %vm165 = vcmask 146552
    %166 = vst.msk [vmem:[#allocation0] sm:$0x1] %vm165, %v164
    %s167 = scalar_lea.vmem %s0, 4
    %v168 = vld [vmem:[%s167] sm:$0x1]
    %169 = vrot.lane.b32.xlu0 %v168, 12
    %v170 = vpop.permute.xlu0 %169
    %vm171 = vcmask 121952
    %172 = vst.msk [vmem:[#allocation0] sm:$0x1] %vm171, %v170
    %s173 = scalar_lea.vmem %s0, 3
    %v174 = vld [vmem:[%s173] sm:$0x1]
    %175 = vrot.lane.b32.xlu0 %v174, 9
    %v176 = vpop.permute.xlu0 %175
    %vm177 = vcmask 97352
    %178 = vst.msk [vmem:[#allocation0] sm:$0x1] %vm177, %v176
    %s179 = scalar_lea.vmem %s0, 2
    %v180 = vld [vmem:[%s179] sm:$0x1]
    %181 = vrot.lane.b32.xlu0 %v180, 6
    %v182 = vpop.permute.xlu0 %181
    %vm183 = vcmask 72752
    %184 = vst.msk [vmem:[#allocation0] sm:$0x1] %vm183, %v182
    %s185 = scalar_lea.vmem %s0, 1
    %v186 = vld [vmem:[%s185] sm:$0x1]
    %187 = vrot.lane.b32.xlu0 %v186, 3
    %v188 = vpop.permute.xlu0 %187
    %vm189 = vcmask 48152
    %190 = vst.msk [vmem:[#allocation0] sm:$0x1] %vm189, %v188
    %s192 = sshll.u32 1, 1
    %s193 = ssub.s32 %s192, 1
    %v195 = vld [vmem:[#allocation0] sm:%s193]
    %s196 = sshll.u32 1, 1
    %s197 = ssub.s32 %s196, 1
    %198 = vst [vmem:[%s1] sm:%s197] %v195

</llo_original>
